<compile_context>
chip_gen: v6e
topology: v6e:2x2x1
jax: 0.10.0
libtpu: 0.0.40
codegen_flags: <defaults>
</compile_context>

<pallas_src>
import math
from functools import partial

import jax
import jax.numpy as jnp
import numpy as np
from jax.experimental import pallas as pl
from jax.experimental.pallas import tpu as pltpu

# ---- small, config-consistent dimensions (analog of GPTConfig, shrunk) ----
EMB_DIM = 32          # molecule embedding dim         (1024 in the real model)
ACT_DIM = 16          # activity embedding dim         (64)
N_EMBD = EMB_DIM + ACT_DIM   # transformer width        (1088)
N_HEAD = 2            # number of attention heads      (8)
D_QK = 16             # per-head q/k projection dim    (136)
D_V = 16              # per-head v projection dim      (136)
MLP_HID = 64          # MLP hidden dim                 (567)
LN_EPS = 1e-5
DROPOUT = 0.0         # dropout is identity at p=0.0 (as in the reference config)

LANE = 128
SUBLANE = 8


def _round_up(n, m):
    return ((n + m - 1) // m) * m


D_PAD = _round_up(N_EMBD, LANE)            # 128   (1152 real)
QKV_OUT = N_HEAD * (2 * D_QK + D_V)        # 96
QKV_PAD = _round_up(QKV_OUT, LANE)         # 128
HID_PAD = _round_up(MLP_HID, LANE)         # 128   (640 real)
HQK = N_HEAD * D_QK
HV = N_HEAD * D_V
NEG_BIG = -1e30                            # finite => no NaN even if a row were fully masked


# --------------------------- Pallas kernel ---------------------------------
def _transformer_block_kernel(s_ref, bias_ref,
                              ln1_w_ref, ln1_b_ref,
                              wqkv_ref, bqkv_ref,
                              wc_ref, bc_ref,
                              ln2_w_ref, ln2_b_ref,
                              wfc_ref, bfc_ref,
                              wpj_ref, bpj_ref,
                              out_ref):
    # s_ref:    (B_BLK, T_PAD, D_PAD) f32, padded feature cols / seq rows are zero
    # bias_ref: (B_BLK, 1, T_PAD)     f32 additive key-mask bias (0 or -1e30)
    x = s_ref[...]
    bb, t, dp = x.shape
    inv_d = 1.0 / float(N_EMBD)

    def layer_norm(z, w, b):
        # One-pass stats over the TRUE feature width (padded cols are zero so
        # they contribute nothing to either sum).
        mu = jnp.sum(z, axis=-1, keepdims=True) * inv_d
        ms = jnp.sum(z * z, axis=-1, keepdims=True) * inv_d
        var = ms - mu * mu
        # w/b are zero in the padded region -> padded columns stay exactly 0.
        return (z - mu) * jax.lax.rsqrt(var + LN_EPS) * w + b

    # ---------------- attention branch: attn(ln_1(x)) ----------------
    xn = layer_norm(x, ln1_w_ref[...], ln1_b_ref[...])
    xn2d = xn.reshape(bb * t, dp).astype(jnp.bfloat16)

    # Fused Q/K/V projection for all heads in one lane-dense matmul
    # (1/sqrt(d_qk) is folded into Wq / bq at pack time).
    qkv = jnp.dot(xn2d, wqkv_ref[...],
                  preferred_element_type=jnp.float32) + bqkv_ref[...]   # (bb*t, QKV_PAD)
    qkv_bf = qkv.astype(jnp.bfloat16)                # cast once, sliced per head

    # Key-mask bias broadcast hoisted out of the head loop (no per-head
    # re-materialized broadcast_in_dim).
    bias_full = jnp.broadcast_to(bias_ref[...], (bb, t, t))

    # Per-head attention, output projection accumulated in-register (no VMEM
    # scratch, no masked 16-lane stores).
    attn_acc = jnp.zeros((bb * t, dp), jnp.float32)
    for h in range(N_HEAD):     # static unrolled (2 heads)
        qh = qkv_bf[:, h * D_QK:(h + 1) * D_QK].reshape(bb, t, D_QK)
        kh = qkv_bf[:, HQK + h * D_QK:HQK + (h + 1) * D_QK].reshape(bb, t, D_QK)
        vh = qkv_bf[:, 2 * HQK + h * D_V:2 * HQK + (h + 1) * D_V].reshape(bb, t, D_V)

        # q.k^T via batched einsum (no explicit .T / XLU transpose)
        att = jnp.einsum('bqd,bkd->bqk', qh, kh,
                         preferred_element_type=jnp.float32)            # (bb, t, t)
        att = att + bias_full                                           # mask padded keys
        att = att - jnp.max(att, axis=-1, keepdims=True)
        p = jnp.exp(att)
        p = p * pl.reciprocal(jnp.sum(p, axis=-1, keepdims=True), approx=True)

        yh = jnp.einsum('bqk,bkd->bqd', p.astype(jnp.bfloat16), vh,
                        preferred_element_type=jnp.float32)             # (bb, t, D_V)
        # per-head slice of the packed output projection weight (static,
        # sublane-aligned ref slice) accumulated on the MXU.
        attn_acc = attn_acc + jnp.dot(
            yh.reshape(bb * t, D_V).astype(jnp.bfloat16),
            wc_ref[h * D_V:(h + 1) * D_V, :],
            preferred_element_type=jnp.float32)

    attn_out = attn_acc + bc_ref[...]
    x1 = x + attn_out.reshape(bb, t, dp)            # residual #1

    # ---------------- MLP branch: mlp(ln_2(x1)) ----------------
    xn2 = layer_norm(x1, ln2_w_ref[...], ln2_b_ref[...])
    xn2d2 = xn2.reshape(bb * t, dp).astype(jnp.bfloat16)
    hid = jnp.maximum(
        jnp.dot(xn2d2, wfc_ref[...], preferred_element_type=jnp.float32)
        + bfc_ref[...], 0.0)
    mlp_out = jnp.dot(hid.astype(jnp.bfloat16), wpj_ref[...],
                      preferred_element_type=jnp.float32) + bpj_ref[...]

    s_h = x1 + mlp_out.reshape(bb, t, dp)           # transformer block output
    out_ref[...] = x + s_h                          # outer residual: s + s_h


def transformer_block_pallas(s_pad, bias, packed, *, b_blk):
    """s_pad: (B, T_PAD, D_PAD) f32, bias: (B, 1, T_PAD) f32, packed: weight tuple."""
    B, T_P, _ = s_pad.shape
    assert B % b_blk == 0, "batch must be divisible by the batch tile"

    def full_spec(a):
        nd = a.ndim
        return pl.BlockSpec(a.shape, lambda b, _nd=nd: (0,) * _nd)

    in_specs = [
        pl.BlockSpec((b_blk, T_P, D_PAD), lambda b: (b, 0, 0)),   # activations tile
        pl.BlockSpec((b_blk, 1, T_P), lambda b: (b, 0, 0)),       # additive mask bias
    ] + [full_spec(w) for w in packed]                            # weights: full, constant

    # VMEM budget derived from actual block / weight sizes (double-buffered
    # activations + resident weights) with generous headroom, capped at the
    # smallest scoped default (32 MiB) so it is safe on all generations.
    act_bytes = b_blk * T_P * D_PAD * 4
    bias_bytes = b_blk * T_P * 4
    w_bytes = sum(int(w.size) * w.dtype.itemsize for w in packed)
    need = 2 * (2 * act_bytes + bias_bytes) + 2 * w_bytes
    vmem_limit = int(min(32 * 1024 * 1024, max(8 * 1024 * 1024, 4 * need)))

    return pl.pallas_call(
        _transformer_block_kernel,
        out_shape=jax.ShapeDtypeStruct((B, T_P, D_PAD), jnp.float32),
        grid=(B // b_blk,),
        in_specs=in_specs,
        out_specs=pl.BlockSpec((b_blk, T_P, D_PAD), lambda b: (b, 0, 0)),
        compiler_params=pltpu.CompilerParams(
            dimension_semantics=("parallel",),
            vmem_limit_bytes=vmem_limit),
    )(s_pad, bias, *packed)


def _default_b_blk(batch):
    """One grid step per TensorCore: whole batch on single-TC chips (v5e/v6e),
    two parallel steps on dual-TC chips (v4 megacore / v7x)."""
    try:
        kind = jax.devices()[0].device_kind.lower()
    except Exception:
        kind = ""
    two_cores = ("v7" in kind) or ("v4" in kind)
    if two_cores and batch % 2 == 0:
        return batch // 2
    return batch


# --------------------------- weight packing ---------------------------------
def pack_params(params):
    """Pack per-head f32 params into fused, lane-padded, bf16 matmul weights.
    Called exactly once (outside the jitted forward)."""
    (ln1_w, ln1_b, wq, bq, wk, bk, wv, bv, wc, bc,
     ln2_w, ln2_b, wfc, bfc, wpj, bpj) = params
    scale = 1.0 / math.sqrt(D_QK)

    def pad_cols(a, width):
        return jnp.pad(a, ((0, 0), (0, width - a.shape[1]))).astype(jnp.float32)

    # LayerNorm params: zero-padded so padded activation columns stay zero.
    ln1_wp = pad_cols(ln1_w, D_PAD)
    ln1_bp = pad_cols(ln1_b, D_PAD)
    ln2_wp = pad_cols(ln2_w, D_PAD)
    ln2_bp = pad_cols(ln2_b, D_PAD)

    # Fused QKV weight: columns = [q_h0..q_hH | k_h0..k_hH | v_h0..v_hH | pad]
    wqkv = jnp.zeros((D_PAD, QKV_PAD), jnp.float32)
    bqkv = jnp.zeros((1, QKV_PAD), jnp.float32)
    for h in range(N_HEAD):
        wqkv = wqkv.at[:N_EMBD, h * D_QK:(h + 1) * D_QK].set(wq[h] * scale)
        wqkv = wqkv.at[:N_EMBD, HQK + h * D_QK:HQK + (h + 1) * D_QK].set(wk[h])
        wqkv = wqkv.at[:N_EMBD, 2 * HQK + h * D_V:2 * HQK + (h + 1) * D_V].set(wv[h])
        bqkv = bqkv.at[:, h * D_QK:(h + 1) * D_QK].set(bq[h] * scale)
        bqkv = bqkv.at[:, HQK + h * D_QK:HQK + (h + 1) * D_QK].set(bk[h])
        bqkv = bqkv.at[:, 2 * HQK + h * D_V:2 * HQK + (h + 1) * D_V].set(bv[h])

    # Output projection packed head-major along rows: (H*D_V, D_PAD); the
    # kernel slices per-head (D_V, D_PAD) slabs (sublane-aligned) and
    # accumulates per head -> no head-stacking scratch needed.
    wc_p = jnp.zeros((HV, D_PAD), jnp.float32)
    for h in range(N_HEAD):
        wc_p = wc_p.at[h * D_V:(h + 1) * D_V, :N_EMBD].set(wc[h])
    bc_p = pad_cols(bc, D_PAD)

    # MLP weights, zero-padded on both axes.
    wfc_p = jnp.zeros((D_PAD, HID_PAD), jnp.float32).at[:N_EMBD, :MLP_HID].set(wfc)
    bfc_p = pad_cols(bfc, HID_PAD)
    wpj_p = jnp.zeros((HID_PAD, D_PAD), jnp.float32).at[:MLP_HID, :N_EMBD].set(wpj)
    bpj_p = pad_cols(bpj, D_PAD)

    bf = jnp.bfloat16
    return (ln1_wp, ln1_bp,
            wqkv.astype(bf), bqkv,
            wc_p.astype(bf), bc_p,
            ln2_wp, ln2_bp,
            wfc_p.astype(bf), bfc_p,
            wpj_p.astype(bf), bpj_p)


# --------------------------- wrapper (glue, jitted) --------------------------
def cross_attention_forward(packed, query, sup_act, sup_inact, mask_act, mask_inact,
                            *, b_blk):
    B, _, E = query.shape
    NA = sup_act.shape[1]
    NI = sup_inact.shape[1]
    T = 1 + NA + NI
    T_P = _round_up(T, SUBLANE)

    # append activity embedding: 0 for query, +1 for actives, -1 for inactives
    q = jnp.concatenate([query, jnp.zeros((B, 1, ACT_DIM), query.dtype)], axis=2)
    a = jnp.concatenate([sup_act, jnp.ones((B, NA, ACT_DIM), sup_act.dtype)], axis=2)
    i = jnp.concatenate(
        [sup_inact, -jnp.ones((B, NI, ACT_DIM), sup_inact.dtype)], axis=2)
    s = jnp.concatenate([q, a, i], axis=1).astype(jnp.float32)          # (B, T, N_EMBD)
    # lane-dense feature dim + sublane-aligned sequence dim (padded rows are
    # zero; they are masked out of attention and sliced away at the end)
    s_pad = jnp.pad(s, ((0, 0), (0, T_P - T), (0, D_PAD - N_EMBD)))

    # key-padding mask -> additive attention bias (built once, finite constant)
    pad = jnp.concatenate([jnp.zeros((B, 1), jnp.float32),
                           mask_act.astype(jnp.float32),
                           mask_inact.astype(jnp.float32)], axis=1)     # (B, T)
    pad = jnp.pad(pad, ((0, 0), (0, T_P - T)), constant_values=1.0)     # mask padded rows
    bias = jnp.where(pad == 1.0, NEG_BIG, 0.0).astype(jnp.float32)[:, None, :]

    s_updated = transformer_block_pallas(s_pad, bias, packed, b_blk=b_blk)

    q_out = s_updated[:, 0:1, :E]
    a_out = s_updated[:, 1:NA + 1, :E]
    i_out = s_updated[:, NA + 1:T, :E]
    return q_out, a_out, i_out


# --------------------------- params & reference -----------------------------
def init_params(key):
    ks = jax.random.split(key, 8)

    def lin(k, shape, scale=0.05):
        return (scale * jax.random.normal(k, shape)).astype(jnp.float32)

    ln1_w = jnp.ones((1, N_EMBD), jnp.float32)
    ln1_b = jnp.zeros((1, N_EMBD), jnp.float32)
    ln2_w = jnp.ones((1, N_EMBD), jnp.float32)
    ln2_b = jnp.zeros((1, N_EMBD), jnp.float32)
    wq = lin(ks[0], (N_HEAD, N_EMBD, D_QK))
    wk = lin(ks[1], (N_HEAD, N_EMBD, D_QK))
    wv = lin(ks[2], (N_HEAD, N_EMBD, D_V))
    wc = lin(ks[3], (N_HEAD, D_V, N_EMBD))
    bq = lin(ks[4], (N_HEAD, 1, D_QK))
    bk = lin(ks[5], (N_HEAD, 1, D_QK))
    bv = jnp.zeros((N_HEAD, 1, D_V), jnp.float32)
    bc = jnp.zeros((1, N_EMBD), jnp.float32)
    wfc = lin(ks[6], (N_EMBD, MLP_HID))
    bfc = jnp.zeros((1, MLP_HID), jnp.float32)
    wpj = lin(ks[7], (MLP_HID, N_EMBD))
    bpj = jnp.zeros((1, N_EMBD), jnp.float32)
    return (ln1_w, ln1_b, wq, bq, wk, bk, wv, bv, wc, bc,
            ln2_w, ln2_b, wfc, bfc, wpj, bpj)


def reference_forward(params, query, sup_act, sup_inact, mask_act, mask_inact):
    """Pure-JAX f32 reference mirroring the PyTorch forward (dropout p=0)."""
    (ln1_w, ln1_b, wq, bq, wk, bk, wv, bv, wc, bc,
     ln2_w, ln2_b, wfc, bfc, wpj, bpj) = params
    B, _, E = query.shape
    NA = sup_act.shape[1]
    q = jnp.concatenate([query, jnp.zeros((B, 1, ACT_DIM), query.dtype)], axis=2)
    a = jnp.concatenate([sup_act, jnp.ones((B, NA, ACT_DIM), sup_act.dtype)], axis=2)
    i = jnp.concatenate(
        [sup_inact, -jnp.ones((B, sup_inact.shape[1], ACT_DIM), sup_inact.dtype)], axis=2)
    s = jnp.concatenate([q, a, i], axis=1).astype(jnp.float32)
    pad = jnp.concatenate([jnp.zeros((B, 1), jnp.float32),
                           mask_act.astype(jnp.float32),
                           mask_inact.astype(jnp.float32)], axis=1)

    def ln(z, w, b):
        mu = z.mean(-1, keepdims=True)
        var = ((z - mu) ** 2).mean(-1, keepdims=True)
        return (z - mu) * jax.lax.rsqrt(var + LN_EPS) * w.reshape(-1) + b.reshape(-1)

    x = s
    xn = ln(x, ln1_w, ln1_b)
    qh = jnp.einsum('btd,hdk->bhtk', xn, wq) + bq[None]
    kh = jnp.einsum('btd,hdk->bhtk', xn, wk) + bk[None]
    vh = jnp.einsum('btd,hdk->bhtk', xn, wv) + bv[None]
    att = jnp.einsum('btk,bsk->bts', qh.reshape(-1, *qh.shape[2:]),
                     kh.reshape(-1, *kh.shape[2:]))
    att = att.reshape(qh.shape[0], qh.shape[1], qh.shape[2], kh.shape[2]) / math.sqrt(D_QK)
    key_mask = (pad == 1.0)[:, None, None, :]
    att = jnp.where(key_mask, -jnp.inf, att)
    att = jax.nn.softmax(att, axis=-1)
    y = jnp.einsum('bhts,bhsk->bhtk', att, vh)
    attn_out = jnp.einsum('bhtk,hkd->btd', y, wc) + bc.reshape(-1)
    x1 = x + attn_out
    xn2 = ln(x1, ln2_w, ln2_b)
    hid = jax.nn.relu(xn2 @ wfc + bfc.reshape(-1))
    mlp_out = hid @ wpj + bpj.reshape(-1)
    s_upd = x + (x1 + mlp_out)
    return s_upd[:, 0:1, :E], s_upd[:, 1:NA + 1, :E], s_upd[:, NA + 1:, :E]


# --------------------------------- main --------------------------------------
if __name__ == "__main__":
    key = jax.random.PRNGKey(0)
    kq, ka, ki, kp = jax.random.split(key, 4)

    # T = 1 + NA + NI = 8 ; B = 8
    B, NA, NI = 8, 3, 4
    query = jax.random.normal(kq, (B, 1, EMB_DIM), jnp.float32)
    sup_act = jax.random.normal(ka, (B, NA, EMB_DIM), jnp.float32)
    sup_inact = jax.random.normal(ki, (B, NI, EMB_DIM), jnp.float32)

    # padding masks: 1.0 => padded (masked out of attention), 0.0 => real molecule
    n_act = 1 + (jnp.arange(B) % NA)
    n_inact = 1 + (jnp.arange(B) % NI)
    mask_act = (jnp.arange(NA)[None, :] >= n_act[:, None]).astype(jnp.float32)
    mask_inact = (jnp.arange(NI)[None, :] >= n_inact[:, None]).astype(jnp.float32)

    params = init_params(kp)
    packed = pack_params(params)            # packed ONCE, reused across calls

    b_blk = _default_b_blk(B)               # B on v5e/v6e (1 step), B//2 on v4/v7x
    fwd = jax.jit(partial(cross_attention_forward, b_blk=b_blk))

    q_out, a_out, i_out = fwd(packed, query, sup_act, sup_inact, mask_act, mask_inact)
    jax.block_until_ready((q_out, a_out, i_out))

    # correctness check against pure-JAX f32 reference (kernel uses bf16 MXU
    # operands with f32 accumulation -> slightly looser tolerance)
    q_ref, a_ref, i_ref = reference_forward(
        params, query, sup_act, sup_inact, mask_act, mask_inact)
    np.testing.assert_allclose(np.asarray(q_out), np.asarray(q_ref), rtol=1e-2, atol=1e-2)
    np.testing.assert_allclose(np.asarray(a_out), np.asarray(a_ref), rtol=1e-2, atol=1e-2)
    np.testing.assert_allclose(np.asarray(i_out), np.asarray(i_ref), rtol=1e-2, atol=1e-2)

    assert q_out.shape == (B, 1, EMB_DIM)
    assert a_out.shape == (B, NA, EMB_DIM)
    assert i_out.shape == (B, NI, EMB_DIM)

    print("KERNEL_OK")
</pallas_src>

<mosaic_0001>
module attributes {stable_mosaic.version = 11 : i64} {
  func.func @_transformer_block_kernel(%arg0: i32, %arg1: memref<8x8x128xf32, #tpu.memory_space<vmem>>, %arg2: memref<8x1x8xf32, #tpu.memory_space<vmem>>, %arg3: memref<1x128xf32, #tpu.memory_space<vmem>>, %arg4: memref<1x128xf32, #tpu.memory_space<vmem>>, %arg5: memref<128x128xbf16, #tpu.memory_space<vmem>>, %arg6: memref<1x128xf32, #tpu.memory_space<vmem>>, %arg7: memref<32x128xbf16, #tpu.memory_space<vmem>>, %arg8: memref<1x128xf32, #tpu.memory_space<vmem>>, %arg9: memref<1x128xf32, #tpu.memory_space<vmem>>, %arg10: memref<1x128xf32, #tpu.memory_space<vmem>>, %arg11: memref<128x128xbf16, #tpu.memory_space<vmem>>, %arg12: memref<1x128xf32, #tpu.memory_space<vmem>>, %arg13: memref<128x128xbf16, #tpu.memory_space<vmem>>, %arg14: memref<1x128xf32, #tpu.memory_space<vmem>>, %arg15: memref<8x8x128xf32, #tpu.memory_space<vmem>>) attributes {dimension_semantics = [#tpu.dimension_semantics<parallel>], iteration_bounds = array<i64: 1>, scalar_prefetch = 0 : i64, scratch_operands = 0 : i64, tpu.core_type = #tpu.core_type<tc>, window_params = [{transform_indices = @transform_0, window_bounds = array<i64: 8, 8, 128>}, {transform_indices = @transform_1, window_bounds = array<i64: 8, 1, 8>}, {pipeline_mode = #tpu.pipeline_mode<synchronous>, transform_indices = @transform_2, window_bounds = array<i64: 1, 128>}, {pipeline_mode = #tpu.pipeline_mode<synchronous>, transform_indices = @transform_3, window_bounds = array<i64: 1, 128>}, {pipeline_mode = #tpu.pipeline_mode<synchronous>, transform_indices = @transform_4, window_bounds = array<i64: 128, 128>}, {pipeline_mode = #tpu.pipeline_mode<synchronous>, transform_indices = @transform_5, window_bounds = array<i64: 1, 128>}, {pipeline_mode = #tpu.pipeline_mode<synchronous>, transform_indices = @transform_6, window_bounds = array<i64: 32, 128>}, {pipeline_mode = #tpu.pipeline_mode<synchronous>, transform_indices = @transform_7, window_bounds = array<i64: 1, 128>}, {pipeline_mode = #tpu.pipeline_mode<synchronous>, transform_indices = @transform_8, window_bounds = array<i64: 1, 128>}, {pipeline_mode = #tpu.pipeline_mode<synchronous>, transform_indices = @transform_9, window_bounds = array<i64: 1, 128>}, {pipeline_mode = #tpu.pipeline_mode<synchronous>, transform_indices = @transform_10, window_bounds = array<i64: 128, 128>}, {pipeline_mode = #tpu.pipeline_mode<synchronous>, transform_indices = @transform_11, window_bounds = array<i64: 1, 128>}, {pipeline_mode = #tpu.pipeline_mode<synchronous>, transform_indices = @transform_12, window_bounds = array<i64: 128, 128>}, {pipeline_mode = #tpu.pipeline_mode<synchronous>, transform_indices = @transform_13, window_bounds = array<i64: 1, 128>}, {transform_indices = @transform_14, window_bounds = array<i64: 8, 8, 128>}]} {
    %c0 = arith.constant 0 : index
    %c0_0 = arith.constant 0 : index
    %c0_1 = arith.constant 0 : index
    %0 = vector.load %arg1[%c0, %c0_0, %c0_1] : memref<8x8x128xf32, #tpu.memory_space<vmem>>, vector<8x8x128xf32>
    %c0_2 = arith.constant 0 : index
    %c0_3 = arith.constant 0 : index
    %1 = vector.load %arg3[%c0_2, %c0_3] : memref<1x128xf32, #tpu.memory_space<vmem>>, vector<1x128xf32>
    %c0_4 = arith.constant 0 : index
    %c0_5 = arith.constant 0 : index
    %2 = vector.load %arg4[%c0_4, %c0_5] : memref<1x128xf32, #tpu.memory_space<vmem>>, vector<1x128xf32>
    %cst = arith.constant dense<0.000000e+00> : vector<8x8xf32>
    %3 = vector.multi_reduction <add>, %0, %cst [2] : vector<8x8x128xf32> to vector<8x8xf32>
    %4 = vector.shape_cast %3 : vector<8x8xf32> to vector<8x8x1xf32>
    %cst_6 = arith.constant 0.020833334 : f32
    %5 = vector.broadcast %cst_6 : f32 to vector<8x8x1xf32>
    %6 = arith.mulf %4, %5 : vector<8x8x1xf32>
    %7 = arith.mulf %0, %0 : vector<8x8x128xf32>
    %cst_7 = arith.constant dense<0.000000e+00> : vector<8x8xf32>
    %8 = vector.multi_reduction <add>, %7, %cst_7 [2] : vector<8x8x128xf32> to vector<8x8xf32>
    %9 = vector.shape_cast %8 : vector<8x8xf32> to vector<8x8x1xf32>
    %cst_8 = arith.constant 0.020833334 : f32
    %10 = vector.broadcast %cst_8 : f32 to vector<8x8x1xf32>
    %11 = arith.mulf %9, %10 : vector<8x8x1xf32>
    %12 = arith.mulf %6, %6 : vector<8x8x1xf32>
    %13 = arith.subf %11, %12 : vector<8x8x1xf32>
    %14 = vector.broadcast %6 : vector<8x8x1xf32> to vector<8x8x128xf32>
    %15 = arith.subf %0, %14 : vector<8x8x128xf32>
    %cst_9 = arith.constant 9.99999974E-6 : f32
    %16 = vector.broadcast %cst_9 : f32 to vector<8x8x1xf32>
    %17 = arith.addf %13, %16 : vector<8x8x1xf32>
    %18 = math.rsqrt %17 : vector<8x8x1xf32>
    %19 = vector.broadcast %18 : vector<8x8x1xf32> to vector<8x8x128xf32>
    %20 = arith.mulf %15, %19 : vector<8x8x128xf32>
    %21 = vector.shape_cast %1 : vector<1x128xf32> to vector<1x1x128xf32>
    %22 = vector.broadcast %21 : vector<1x1x128xf32> to vector<8x8x128xf32>
    %23 = arith.mulf %20, %22 : vector<8x8x128xf32>
    %24 = vector.shape_cast %2 : vector<1x128xf32> to vector<1x1x128xf32>
    %25 = vector.broadcast %24 : vector<1x1x128xf32> to vector<8x8x128xf32>
    %26 = arith.addf %23, %25 : vector<8x8x128xf32>
    %27 = vector.shape_cast %26 : vector<8x8x128xf32> to vector<64x128xf32>
    %28 = arith.truncf %27 : vector<64x128xf32> to vector<64x128xbf16>
    %c0_10 = arith.constant 0 : index
    %c0_11 = arith.constant 0 : index
    %29 = vector.load %arg5[%c0_10, %c0_11] : memref<128x128xbf16, #tpu.memory_space<vmem>>, vector<128x128xbf16>
    %cst_12 = arith.constant dense<0.000000e+00> : vector<64x128xf32>
    %30 = tpu.matmul %28, %29, %cst_12 {dimension_numbers = #tpu.dot_dimension_numbers<[1], [0], [0], [1], [0, 0, 1, 1], [], []>} : vector<64x128xbf16>, vector<128x128xbf16>, vector<64x128xf32> -> vector<64x128xf32>
    %c0_13 = arith.constant 0 : index
    %c0_14 = arith.constant 0 : index
    %31 = vector.load %arg6[%c0_13, %c0_14] : memref<1x128xf32, #tpu.memory_space<vmem>>, vector<1x128xf32>
    %32 = vector.broadcast %31 : vector<1x128xf32> to vector<64x128xf32>
    %33 = arith.addf %30, %32 : vector<64x128xf32>
    %34 = arith.truncf %33 : vector<64x128xf32> to vector<64x128xbf16>
    %c0_15 = arith.constant 0 : index
    %c0_16 = arith.constant 0 : index
    %c0_17 = arith.constant 0 : index
    %35 = vector.load %arg2[%c0_15, %c0_16, %c0_17] : memref<8x1x8xf32, #tpu.memory_space<vmem>>, vector<8x1x8xf32>
    %36 = vector.shape_cast %35 : vector<8x1x8xf32> to vector<8x1x8xf32>
    %37 = vector.broadcast %36 : vector<8x1x8xf32> to vector<8x8x8xf32>
    %cst_18 = arith.constant 0.000000e+00 : f32
    %38 = vector.broadcast %cst_18 : f32 to vector<64x128xf32>
    %39 = vector.extract_strided_slice %34 {offsets = [0, 0], sizes = [64, 16], strides = [1, 1]} : vector<64x128xbf16> to vector<64x16xbf16>
    %40 = vector.shape_cast %39 : vector<64x16xbf16> to vector<8x8x16xbf16>
    %41 = vector.extract_strided_slice %34 {offsets = [0, 32], sizes = [64, 16], strides = [1, 1]} : vector<64x128xbf16> to vector<64x16xbf16>
    %42 = vector.shape_cast %41 : vector<64x16xbf16> to vector<8x8x16xbf16>
    %43 = vector.extract_strided_slice %34 {offsets = [0, 64], sizes = [64, 16], strides = [1, 1]} : vector<64x128xbf16> to vector<64x16xbf16>
    %44 = vector.shape_cast %43 : vector<64x16xbf16> to vector<8x8x16xbf16>
    "tpu.trace_start"() <{level = 10 : i32, message = "bqd,bkd->bqk"}> : () -> ()
    %cst_19 = arith.constant dense<0.000000e+00> : vector<8x8x8xf32>
    %45 = tpu.matmul %40, %42, %cst_19 {dimension_numbers = #tpu.dot_dimension_numbers<[2], [2], [1], [1], [0, 0, 0, 1, 1, 1], [0], [0]>} : vector<8x8x16xbf16>, vector<8x8x16xbf16>, vector<8x8x8xf32> -> vector<8x8x8xf32>
    "tpu.trace_stop"() : () -> ()
    %46 = arith.addf %45, %37 : vector<8x8x8xf32>
    %cst_20 = arith.constant dense<0xFF800000> : vector<8x8xf32>
    %47 = vector.multi_reduction <maximumf>, %46, %cst_20 [2] : vector<8x8x8xf32> to vector<8x8xf32>
    %48 = vector.shape_cast %47 : vector<8x8xf32> to vector<8x8x1xf32>
    %49 = vector.broadcast %48 : vector<8x8x1xf32> to vector<8x8x8xf32>
    %50 = arith.subf %46, %49 : vector<8x8x8xf32>
    %51 = math.exp %50 : vector<8x8x8xf32>
    %cst_21 = arith.constant dense<0.000000e+00> : vector<8x8xf32>
    %52 = vector.multi_reduction <add>, %51, %cst_21 [2] : vector<8x8x8xf32> to vector<8x8xf32>
    %53 = vector.shape_cast %52 : vector<8x8xf32> to vector<8x8x1xf32>
    %54 = tpu.reciprocal %53 {approx = true} : vector<8x8x1xf32> -> vector<8x8x1xf32>
    %55 = vector.broadcast %54 : vector<8x8x1xf32> to vector<8x8x8xf32>
    %56 = arith.mulf %51, %55 : vector<8x8x8xf32>
    %57 = arith.truncf %56 : vector<8x8x8xf32> to vector<8x8x8xbf16>
    "tpu.trace_start"() <{level = 10 : i32, message = "bqk,bkd->bqd"}> : () -> ()
    %cst_22 = arith.constant dense<0.000000e+00> : vector<8x8x16xf32>
    %58 = tpu.matmul %57, %44, %cst_22 {dimension_numbers = #tpu.dot_dimension_numbers<[2], [1], [1], [2], [0, 0, 0, 1, 1, 2], [0], [0]>} : vector<8x8x8xbf16>, vector<8x8x16xbf16>, vector<8x8x16xf32> -> vector<8x8x16xf32>
    "tpu.trace_stop"() : () -> ()
    %59 = vector.shape_cast %58 : vector<8x8x16xf32> to vector<64x16xf32>
    %60 = arith.truncf %59 : vector<64x16xf32> to vector<64x16xbf16>
    %c0_23 = arith.constant 0 : index
    %c0_24 = arith.constant 0 : index
    %61 = vector.load %arg7[%c0_23, %c0_24] : memref<32x128xbf16, #tpu.memory_space<vmem>>, vector<16x128xbf16>
    %cst_25 = arith.constant dense<0.000000e+00> : vector<64x128xf32>
    %62 = tpu.matmul %60, %61, %cst_25 {dimension_numbers = #tpu.dot_dimension_numbers<[1], [0], [0], [1], [0, 0, 1, 1], [], []>} : vector<64x16xbf16>, vector<16x128xbf16>, vector<64x128xf32> -> vector<64x128xf32>
    %63 = arith.addf %38, %62 : vector<64x128xf32>
    %64 = vector.extract_strided_slice %34 {offsets = [0, 16], sizes = [64, 16], strides = [1, 1]} : vector<64x128xbf16> to vector<64x16xbf16>
    %65 = vector.shape_cast %64 : vector<64x16xbf16> to vector<8x8x16xbf16>
    %66 = vector.extract_strided_slice %34 {offsets = [0, 48], sizes = [64, 16], strides = [1, 1]} : vector<64x128xbf16> to vector<64x16xbf16>
    %67 = vector.shape_cast %66 : vector<64x16xbf16> to vector<8x8x16xbf16>
    %68 = vector.extract_strided_slice %34 {offsets = [0, 80], sizes = [64, 16], strides = [1, 1]} : vector<64x128xbf16> to vector<64x16xbf16>
    %69 = vector.shape_cast %68 : vector<64x16xbf16> to vector<8x8x16xbf16>
    "tpu.trace_start"() <{level = 10 : i32, message = "bqd,bkd->bqk"}> : () -> ()
    %cst_26 = arith.constant dense<0.000000e+00> : vector<8x8x8xf32>
    %70 = tpu.matmul %65, %67, %cst_26 {dimension_numbers = #tpu.dot_dimension_numbers<[2], [2], [1], [1], [0, 0, 0, 1, 1, 1], [0], [0]>} : vector<8x8x16xbf16>, vector<8x8x16xbf16>, vector<8x8x8xf32> -> vector<8x8x8xf32>
    "tpu.trace_stop"() : () -> ()
    %71 = arith.addf %70, %37 : vector<8x8x8xf32>
    %cst_27 = arith.constant dense<0xFF800000> : vector<8x8xf32>
    %72 = vector.multi_reduction <maximumf>, %71, %cst_27 [2] : vector<8x8x8xf32> to vector<8x8xf32>
    %73 = vector.shape_cast %72 : vector<8x8xf32> to vector<8x8x1xf32>
    %74 = vector.broadcast %73 : vector<8x8x1xf32> to vector<8x8x8xf32>
    %75 = arith.subf %71, %74 : vector<8x8x8xf32>
    %76 = math.exp %75 : vector<8x8x8xf32>
    %cst_28 = arith.constant dense<0.000000e+00> : vector<8x8xf32>
    %77 = vector.multi_reduction <add>, %76, %cst_28 [2] : vector<8x8x8xf32> to vector<8x8xf32>
    %78 = vector.shape_cast %77 : vector<8x8xf32> to vector<8x8x1xf32>
    %79 = tpu.reciprocal %78 {approx = true} : vector<8x8x1xf32> -> vector<8x8x1xf32>
    %80 = vector.broadcast %79 : vector<8x8x1xf32> to vector<8x8x8xf32>
    %81 = arith.mulf %76, %80 : vector<8x8x8xf32>
    %82 = arith.truncf %81 : vector<8x8x8xf32> to vector<8x8x8xbf16>
    "tpu.trace_start"() <{level = 10 : i32, message = "bqk,bkd->bqd"}> : () -> ()
    %cst_29 = arith.constant dense<0.000000e+00> : vector<8x8x16xf32>
    %83 = tpu.matmul %82, %69, %cst_29 {dimension_numbers = #tpu.dot_dimension_numbers<[2], [1], [1], [2], [0, 0, 0, 1, 1, 2], [0], [0]>} : vector<8x8x8xbf16>, vector<8x8x16xbf16>, vector<8x8x16xf32> -> vector<8x8x16xf32>
    "tpu.trace_stop"() : () -> ()
    %84 = vector.shape_cast %83 : vector<8x8x16xf32> to vector<64x16xf32>
    %85 = arith.truncf %84 : vector<64x16xf32> to vector<64x16xbf16>
    %c16 = arith.constant 16 : index
    %c0_30 = arith.constant 0 : index
    %86 = vector.load %arg7[%c16, %c0_30] : memref<32x128xbf16, #tpu.memory_space<vmem>>, vector<16x128xbf16>
    %cst_31 = arith.constant dense<0.000000e+00> : vector<64x128xf32>
    %87 = tpu.matmul %85, %86, %cst_31 {dimension_numbers = #tpu.dot_dimension_numbers<[1], [0], [0], [1], [0, 0, 1, 1], [], []>} : vector<64x16xbf16>, vector<16x128xbf16>, vector<64x128xf32> -> vector<64x128xf32>
    %88 = arith.addf %63, %87 : vector<64x128xf32>
    %c0_32 = arith.constant 0 : index
    %c0_33 = arith.constant 0 : index
    %89 = vector.load %arg8[%c0_32, %c0_33] : memref<1x128xf32, #tpu.memory_space<vmem>>, vector<1x128xf32>
    %90 = vector.broadcast %89 : vector<1x128xf32> to vector<64x128xf32>
    %91 = arith.addf %88, %90 : vector<64x128xf32>
    %92 = vector.shape_cast %91 : vector<64x128xf32> to vector<8x8x128xf32>
    %93 = arith.addf %0, %92 : vector<8x8x128xf32>
    %c0_34 = arith.constant 0 : index
    %c0_35 = arith.constant 0 : index
    %94 = vector.load %arg9[%c0_34, %c0_35] : memref<1x128xf32, #tpu.memory_space<vmem>>, vector<1x128xf32>
    %c0_36 = arith.constant 0 : index
    %c0_37 = arith.constant 0 : index
    %95 = vector.load %arg10[%c0_36, %c0_37] : memref<1x128xf32, #tpu.memory_space<vmem>>, vector<1x128xf32>
    %cst_38 = arith.constant dense<0.000000e+00> : vector<8x8xf32>
    %96 = vector.multi_reduction <add>, %93, %cst_38 [2] : vector<8x8x128xf32> to vector<8x8xf32>
    %97 = vector.shape_cast %96 : vector<8x8xf32> to vector<8x8x1xf32>
    %cst_39 = arith.constant 0.020833334 : f32
    %98 = vector.broadcast %cst_39 : f32 to vector<8x8x1xf32>
    %99 = arith.mulf %97, %98 : vector<8x8x1xf32>
    %100 = arith.mulf %93, %93 : vector<8x8x128xf32>
    %cst_40 = arith.constant dense<0.000000e+00> : vector<8x8xf32>
    %101 = vector.multi_reduction <add>, %100, %cst_40 [2] : vector<8x8x128xf32> to vector<8x8xf32>
    %102 = vector.shape_cast %101 : vector<8x8xf32> to vector<8x8x1xf32>
    %cst_41 = arith.constant 0.020833334 : f32
    %103 = vector.broadcast %cst_41 : f32 to vector<8x8x1xf32>
    %104 = arith.mulf %102, %103 : vector<8x8x1xf32>
    %105 = arith.mulf %99, %99 : vector<8x8x1xf32>
    %106 = arith.subf %104, %105 : vector<8x8x1xf32>
    %107 = vector.broadcast %99 : vector<8x8x1xf32> to vector<8x8x128xf32>
    %108 = arith.subf %93, %107 : vector<8x8x128xf32>
    %cst_42 = arith.constant 9.99999974E-6 : f32
    %109 = vector.broadcast %cst_42 : f32 to vector<8x8x1xf32>
    %110 = arith.addf %106, %109 : vector<8x8x1xf32>
    %111 = math.rsqrt %110 : vector<8x8x1xf32>
    %112 = vector.broadcast %111 : vector<8x8x1xf32> to vector<8x8x128xf32>
    %113 = arith.mulf %108, %112 : vector<8x8x128xf32>
    %114 = vector.shape_cast %94 : vector<1x128xf32> to vector<1x1x128xf32>
    %115 = vector.broadcast %114 : vector<1x1x128xf32> to vector<8x8x128xf32>
    %116 = arith.mulf %113, %115 : vector<8x8x128xf32>
    %117 = vector.shape_cast %95 : vector<1x128xf32> to vector<1x1x128xf32>
    %118 = vector.broadcast %117 : vector<1x1x128xf32> to vector<8x8x128xf32>
    %119 = arith.addf %116, %118 : vector<8x8x128xf32>
    %120 = vector.shape_cast %119 : vector<8x8x128xf32> to vector<64x128xf32>
    %121 = arith.truncf %120 : vector<64x128xf32> to vector<64x128xbf16>
    %c0_43 = arith.constant 0 : index
    %c0_44 = arith.constant 0 : index
    %122 = vector.load %arg11[%c0_43, %c0_44] : memref<128x128xbf16, #tpu.memory_space<vmem>>, vector<128x128xbf16>
    %cst_45 = arith.constant dense<0.000000e+00> : vector<64x128xf32>
    %123 = tpu.matmul %121, %122, %cst_45 {dimension_numbers = #tpu.dot_dimension_numbers<[1], [0], [0], [1], [0, 0, 1, 1], [], []>} : vector<64x128xbf16>, vector<128x128xbf16>, vector<64x128xf32> -> vector<64x128xf32>
    %c0_46 = arith.constant 0 : index
    %c0_47 = arith.constant 0 : index
    %124 = vector.load %arg12[%c0_46, %c0_47] : memref<1x128xf32, #tpu.memory_space<vmem>>, vector<1x128xf32>
    %125 = vector.broadcast %124 : vector<1x128xf32> to vector<64x128xf32>
    %126 = arith.addf %123, %125 : vector<64x128xf32>
    %cst_48 = arith.constant 0.000000e+00 : f32
    %127 = vector.broadcast %cst_48 : f32 to vector<64x128xf32>
    %128 = arith.maximumf %126, %127 : vector<64x128xf32>
    %129 = arith.truncf %128 : vector<64x128xf32> to vector<64x128xbf16>
    %c0_49 = arith.constant 0 : index
    %c0_50 = arith.constant 0 : index
    %130 = vector.load %arg13[%c0_49, %c0_50] : memref<128x128xbf16, #tpu.memory_space<vmem>>, vector<128x128xbf16>
    %cst_51 = arith.constant dense<0.000000e+00> : vector<64x128xf32>
    %131 = tpu.matmul %129, %130, %cst_51 {dimension_numbers = #tpu.dot_dimension_numbers<[1], [0], [0], [1], [0, 0, 1, 1], [], []>} : vector<64x128xbf16>, vector<128x128xbf16>, vector<64x128xf32> -> vector<64x128xf32>
    %c0_52 = arith.constant 0 : index
    %c0_53 = arith.constant 0 : index
    %132 = vector.load %arg14[%c0_52, %c0_53] : memref<1x128xf32, #tpu.memory_space<vmem>>, vector<1x128xf32>
    %133 = vector.broadcast %132 : vector<1x128xf32> to vector<64x128xf32>
    %134 = arith.addf %131, %133 : vector<64x128xf32>
    %135 = vector.shape_cast %134 : vector<64x128xf32> to vector<8x8x128xf32>
    %136 = arith.addf %93, %135 : vector<8x8x128xf32>
    %137 = arith.addf %0, %136 : vector<8x8x128xf32>
    %c0_54 = arith.constant 0 : index
    %c0_55 = arith.constant 0 : index
    %c0_56 = arith.constant 0 : index
    %138 = vector.load %arg15[%c0_54, %c0_55, %c0_56] : memref<8x8x128xf32, #tpu.memory_space<vmem>>, vector<8x8x128xf32>
    tpu.vector_store %arg15[%c0_54, %c0_55, %c0_56], %137 {strides = array<i32>} : memref<8x8x128xf32, #tpu.memory_space<vmem>>, vector<8x8x128xf32>,
    return
  }
  func.func @transform_0(%arg0: i32) -> (i32, i32, i32) {
    %c0_i32 = arith.constant 0 : i32
    %c0_i32_0 = arith.constant 0 : i32
    %c0_i32_1 = arith.constant 0 : i32
    return %arg0, %c0_i32, %c0_i32_0 : i32, i32, i32
  }
  func.func @transform_1(%arg0: i32) -> (i32, i32, i32) {
    %c0_i32 = arith.constant 0 : i32
    %c0_i32_0 = arith.constant 0 : i32
    %c0_i32_1 = arith.constant 0 : i32
    return %arg0, %c0_i32, %c0_i32_0 : i32, i32, i32
  }
  func.func @transform_2(%arg0: i32) -> (i32, i32) {
    %c0_i32 = arith.constant 0 : i32
    %c0_i32_0 = arith.constant 0 : i32
    %c0_i32_1 = arith.constant 0 : i32
    return %c0_i32, %c0_i32_0 : i32, i32
  }
  func.func @transform_3(%arg0: i32) -> (i32, i32) {
    %c0_i32 = arith.constant 0 : i32
    %c0_i32_0 = arith.constant 0 : i32
    %c0_i32_1 = arith.constant 0 : i32
    return %c0_i32, %c0_i32_0 : i32, i32
  }
  func.func @transform_4(%arg0: i32) -> (i32, i32) {
    %c0_i32 = arith.constant 0 : i32
    %c0_i32_0 = arith.constant 0 : i32
    %c0_i32_1 = arith.constant 0 : i32
    return %c0_i32, %c0_i32_0 : i32, i32
  }
  func.func @transform_5(%arg0: i32) -> (i32, i32) {
    %c0_i32 = arith.constant 0 : i32
    %c0_i32_0 = arith.constant 0 : i32
    %c0_i32_1 = arith.constant 0 : i32
    return %c0_i32, %c0_i32_0 : i32, i32
  }
  func.func @transform_6(%arg0: i32) -> (i32, i32) {
    %c0_i32 = arith.constant 0 : i32
    %c0_i32_0 = arith.constant 0 : i32
    %c0_i32_1 = arith.constant 0 : i32
    return %c0_i32, %c0_i32_0 : i32, i32
  }
  func.func @transform_7(%arg0: i32) -> (i32, i32) {
    %c0_i32 = arith.constant 0 : i32
    %c0_i32_0 = arith.constant 0 : i32
    %c0_i32_1 = arith.constant 0 : i32
    return %c0_i32, %c0_i32_0 : i32, i32
  }
  func.func @transform_8(%arg0: i32) -> (i32, i32) {
    %c0_i32 = arith.constant 0 : i32
    %c0_i32_0 = arith.constant 0 : i32
    %c0_i32_1 = arith.constant 0 : i32
    return %c0_i32, %c0_i32_0 : i32, i32
  }
  func.func @transform_9(%arg0: i32) -> (i32, i32) {
    %c0_i32 = arith.constant 0 : i32
    %c0_i32_0 = arith.constant 0 : i32
    %c0_i32_1 = arith.constant 0 : i32
    return %c0_i32, %c0_i32_0 : i32, i32
  }
  func.func @transform_10(%arg0: i32) -> (i32, i32) {
    %c0_i32 = arith.constant 0 : i32
    %c0_i32_0 = arith.constant 0 : i32
    %c0_i32_1 = arith.constant 0 : i32
    return %c0_i32, %c0_i32_0 : i32, i32
  }
  func.func @transform_11(%arg0: i32) -> (i32, i32) {
    %c0_i32 = arith.constant 0 : i32
    %c0_i32_0 = arith.constant 0 : i32
    %c0_i32_1 = arith.constant 0 : i32
    return %c0_i32, %c0_i32_0 : i32, i32
  }
  func.func @transform_12(%arg0: i32) -> (i32, i32) {
    %c0_i32 = arith.constant 0 : i32
    %c0_i32_0 = arith.constant 0 : i32
    %c0_i32_1 = arith.constant 0 : i32
    return %c0_i32, %c0_i32_0 : i32, i32
  }
  func.func @transform_13(%arg0: i32) -> (i32, i32) {
    %c0_i32 = arith.constant 0 : i32
    %c0_i32_0 = arith.constant 0 : i32
    %c0_i32_1 = arith.constant 0 : i32
    return %c0_i32, %c0_i32_0 : i32, i32
  }
  func.func @transform_14(%arg0: i32) -> (i32, i32, i32) {
    %c0_i32 = arith.constant 0 : i32
    %c0_i32_0 = arith.constant 0 : i32
    %c0_i32_1 = arith.constant 0 : i32
    return %arg0, %c0_i32, %c0_i32_0 : i32, i32, i32
  }
}

</mosaic_0001>

<llo_original>
// kernel: cross_attention_forward.1
$region0: #{cross_attention_forward.1}
  #allocation0 [shape = 'u32[]', space=smem, size = 0x4, offset = 0x4, fixed_abs, tag = 'smem constant byte address 0x4 - core index']
  #allocation1 [shape = 'u32[144,128]{1,0:T(1,128)}', space=vmem, size = 0x12000, scoped, tag = 'internal scratch']
  %s0 = inlined_call_operand.vmem [shape: f32[8,8,128], index: 0, kind: input, shape index: {}]
  %s1 = inlined_call_operand.vmem [shape: f32[8,1,8], index: 1, kind: input, shape index: {}]
  %s2 = inlined_call_operand.vmem [shape: f32[1,128], index: 2, kind: input, shape index: {}]
  %s3 = inlined_call_operand.vmem [shape: f32[1,128], index: 3, kind: input, shape index: {}]
  %s4 = inlined_call_operand.vmem [shape: bf16[128,128], index: 4, kind: input, shape index: {}]
  %s5 = inlined_call_operand.vmem [shape: f32[1,128], index: 5, kind: input, shape index: {}]
  %s6 = inlined_call_operand.vmem [shape: bf16[32,128], index: 6, kind: input, shape index: {}]
  %s7 = inlined_call_operand.vmem [shape: f32[1,128], index: 7, kind: input, shape index: {}]
  %s8 = inlined_call_operand.vmem [shape: f32[1,128], index: 8, kind: input, shape index: {}]
  %s9 = inlined_call_operand.vmem [shape: f32[1,128], index: 9, kind: input, shape index: {}]
  %s10 = inlined_call_operand.vmem [shape: bf16[128,128], index: 10, kind: input, shape index: {}]
  %s11 = inlined_call_operand.vmem [shape: f32[1,128], index: 11, kind: input, shape index: {}]
  %s12 = inlined_call_operand.vmem [shape: bf16[128,128], index: 12, kind: input, shape index: {}]
  %s13 = inlined_call_operand.vmem [shape: f32[1,128], index: 13, kind: input, shape index: {}]
  %s14 = inlined_call_operand.vmem [shape: f32[8,8,128], index: 14, kind: output, shape index: {}]
  %s15 = sld [smem:[#allocation0]]
  $region66: #{cross_attention_forward.1} parent=0
    _
  %s17 = ssub.s32 1, %s15
  %s18 = scalar_select 0, %s17, %s15
  // Predicated region
  $region2: #{cross_attention_forward.1} parent=0 // pred_check
    _
  $region3: #{cross_attention_forward.1} parent=0 // pred_check_branch
    %20 = sbr.rel (0) target = $region5
  $region4: #{cross_attention_forward.1} parent=0 // pred_region
    _
  $region5: #{cross_attention_forward.1} parent=0 // pred_fallthru
    _
  // Predicated region
  $region6: #{cross_attention_forward.1} parent=0 // pred_check
    _
  $region7: #{cross_attention_forward.1} parent=0 // pred_check_branch
    %22 = sbr.rel (0) target = $region9
  $region8: #{cross_attention_forward.1} parent=0 // pred_region
    _
  $region9: #{cross_attention_forward.1} parent=0 // pred_fallthru
    _
  // Predicated region
  $region10: #{cross_attention_forward.1} parent=0 // pred_check
    _
  $region11: #{cross_attention_forward.1} parent=0 // pred_check_branch
    %24 = sbr.rel (0) target = $region13
  $region12: #{cross_attention_forward.1} parent=0 // pred_region
    _
  $region13: #{cross_attention_forward.1} parent=0 // pred_fallthru
    _
  // Predicated region
  $region14: #{cross_attention_forward.1} parent=0 // pred_check
    _
  $region15: #{cross_attention_forward.1} parent=0 // pred_check_branch
    %26 = sbr.rel (0) target = $region17
  $region16: #{cross_attention_forward.1} parent=0 // pred_region
    _
  $region17: #{cross_attention_forward.1} parent=0 // pred_fallthru
    _
  // Predicated region
  $region18: #{cross_attention_forward.1} parent=0 // pred_check
    _
  $region19: #{cross_attention_forward.1} parent=0 // pred_check_branch
    %28 = sbr.rel (0) target = $region21
  $region20: #{cross_attention_forward.1} parent=0 // pred_region
    _
  $region21: #{cross_attention_forward.1} parent=0 // pred_fallthru
    _
  // Predicated region
  $region22: #{cross_attention_forward.1} parent=0 // pred_check
    _
  $region23: #{cross_attention_forward.1} parent=0 // pred_check_branch
    %30 = sbr.rel (0) target = $region25
  $region24: #{cross_attention_forward.1} parent=0 // pred_region
    _
  $region25: #{cross_attention_forward.1} parent=0 // pred_fallthru
    _
  // Predicated region
  $region26: #{cross_attention_forward.1} parent=0 // pred_check
    _
  $region27: #{cross_attention_forward.1} parent=0 // pred_check_branch
    %32 = sbr.rel (0) target = $region29
  $region28: #{cross_attention_forward.1} parent=0 // pred_region
    _
  $region29: #{cross_attention_forward.1} parent=0 // pred_fallthru
    _
  // Predicated region
  $region30: #{cross_attention_forward.1} parent=0 // pred_check
    _
  $region31: #{cross_attention_forward.1} parent=0 // pred_check_branch
    %34 = sbr.rel (0) target = $region33
  $region32: #{cross_attention_forward.1} parent=0 // pred_region
    _
  $region33: #{cross_attention_forward.1} parent=0 // pred_fallthru
    _
  // Predicated region
  $region34: #{cross_attention_forward.1} parent=0 // pred_check
    _
  $region35: #{cross_attention_forward.1} parent=0 // pred_check_branch
    %36 = sbr.rel (0) target = $region37
  $region36: #{cross_attention_forward.1} parent=0 // pred_region
    _
  $region37: #{cross_attention_forward.1} parent=0 // pred_fallthru
    _
  // Predicated region
  $region38: #{cross_attention_forward.1} parent=0 // pred_check
    _
  $region39: #{cross_attention_forward.1} parent=0 // pred_check_branch
    %38 = sbr.rel (0) target = $region41
  $region40: #{cross_attention_forward.1} parent=0 // pred_region
    _
  $region41: #{cross_attention_forward.1} parent=0 // pred_fallthru
    _
  // Predicated region
  $region42: #{cross_attention_forward.1} parent=0 // pred_check
    _
  $region43: #{cross_attention_forward.1} parent=0 // pred_check_branch
    %40 = sbr.rel (0) target = $region45
  $region44: #{cross_attention_forward.1} parent=0 // pred_region
    _
  $region45: #{cross_attention_forward.1} parent=0 // pred_fallthru
    _
  // Predicated region
  $region46: #{cross_attention_forward.1} parent=0 // pred_check
    _
  $region47: #{cross_attention_forward.1} parent=0 // pred_check_branch
    %42 = sbr.rel (0) target = $region49
  $region48: #{cross_attention_forward.1} parent=0 // pred_region
    _
  $region49: #{cross_attention_forward.1} parent=0 // pred_fallthru
    _
  // Predicated region
  $region50: #{cross_attention_forward.1} parent=0 // pred_check
    _
  $region51: #{cross_attention_forward.1} parent=0 // pred_check_branch
    %44 = sbr.rel (0) target = $region53
  $region52: #{cross_attention_forward.1} parent=0 // pred_region
    _
  $region53: #{cross_attention_forward.1} parent=0 // pred_fallthru
    _
  // Predicated region
  $region54: #{cross_attention_forward.1} parent=0 // pred_check
    _
  $region55: #{cross_attention_forward.1} parent=0 // pred_check_branch
    %46 = sbr.rel (0) target = $region57
  $region56: #{cross_attention_forward.1} parent=0 // pred_region
    _
  $region57: #{cross_attention_forward.1} parent=0 // pred_fallthru
    _
  %v48 = vld [vmem:[%s0] sm:$0xff]
  %v49 = vld [vmem:[%s0 + $0x8] sm:$0xff]
  %v50 = vld [vmem:[%s0 + $0x10] sm:$0xff]
  %v51 = vld [vmem:[%s0 + $0x18] sm:$0xff]
  %v52 = vld [vmem:[%s0 + $0x20] sm:$0xff]
  %v53 = vld [vmem:[%s0 + $0x28] sm:$0xff]
  %v54 = vld [vmem:[%s0 + $0x30] sm:$0xff]
  %v55 = vld [vmem:[%s0 + $0x38] sm:$0xff]
  %v56 = vld [vmem:[%s2] sm:$0x1]
  %v57 = vld [vmem:[%s3] sm:$0x1]
  %58 = vadd.xlane.f32.xlu0 %v48
  %v59 = vpop.xlane.xlu0 %58
  %60 = vadd.xlane.f32.xlu0 %v49
  %v61 = vpop.xlane.xlu0 %60
  %62 = vadd.xlane.f32.xlu0 %v50
  %v63 = vpop.xlane.xlu0 %62
  %64 = vadd.xlane.f32.xlu0 %v51
  %v65 = vpop.xlane.xlu0 %64
  %66 = vadd.xlane.f32.xlu0 %v52
  %v67 = vpop.xlane.xlu0 %66
  %68 = vadd.xlane.f32.xlu0 %v53
  %v69 = vpop.xlane.xlu0 %68
  %70 = vadd.xlane.f32.xlu0 %v54
  %v71 = vpop.xlane.xlu0 %70
  %72 = vadd.xlane.f32.xlu0 %v55
  %v73 = vpop.xlane.xlu0 %72
  %v74 = vmul.f32 %v59, 0.020833334
  %v75 = vmul.f32 %v61, 0.020833334
  %v76 = vmul.f32 %v63, 0.020833334
  %v77 = vmul.f32 %v65, 0.020833334
  %v78 = vmul.f32 %v67, 0.020833334
  %v79 = vmul.f32 %v69, 0.020833334
  %v80 = vmul.f32 %v71, 0.020833334
  %v81 = vmul.f32 %v73, 0.020833334
  %v82 = vmul.f32 %v48, %v48
  %v83 = vmul.f32 %v49, %v49
  %v84 = vmul.f32 %v50, %v50
  %v85 = vmul.f32 %v51, %v51
  %v86 = vmul.f32 %v52, %v52
  %v87 = vmul.f32 %v53, %v53
  %v88 = vmul.f32 %v54, %v54
  %v89 = vmul.f32 %v55, %v55
  %90 = vadd.xlane.f32.xlu0 %v82
  %v91 = vpop.xlane.xlu0 %90
  %92 = vadd.xlane.f32.xlu0 %v83
  %v93 = vpop.xlane.xlu0 %92
  %94 = vadd.xlane.f32.xlu0 %v84
  %v95 = vpop.xlane.xlu0 %94
  %96 = vadd.xlane.f32.xlu0 %v85
  %v97 = vpop.xlane.xlu0 %96
  %98 = vadd.xlane.f32.xlu0 %v86
  %v99 = vpop.xlane.xlu0 %98
  %100 = vadd.xlane.f32.xlu0 %v87
  %v101 = vpop.xlane.xlu0 %100
  %102 = vadd.xlane.f32.xlu0 %v88
  %v103 = vpop.xlane.xlu0 %102
  %104 = vadd.xlane.f32.xlu0 %v89
  %v105 = vpop.xlane.xlu0 %104
  %v106 = vmul.f32 %v91, 0.020833334
  %v107 = vmul.f32 %v93, 0.020833334
  %v108 = vmul.f32 %v95, 0.020833334
  %v109 = vmul.f32 %v97, 0.020833334
  %v110 = vmul.f32 %v99, 0.020833334
  %v111 = vmul.f32 %v101, 0.020833334
  %v112 = vmul.f32 %v103, 0.020833334
  %v113 = vmul.f32 %v105, 0.020833334
  %v114 = vmul.f32 %v74, %v74
  %v115 = vmul.f32 %v75, %v75
  %v116 = vmul.f32 %v76, %v76
  %v117 = vmul.f32 %v77, %v77
  %v118 = vmul.f32 %v78, %v78
  %v119 = vmul.f32 %v79, %v79
  %v120 = vmul.f32 %v80, %v80
  %v121 = vmul.f32 %v81, %v81
  %v122 = vsub.f32 %v106, %v114
  %v123 = vsub.f32 %v107, %v115
  %v124 = vsub.f32 %v108, %v116
  %v125 = vsub.f32 %v109, %v117
  %v126 = vsub.f32 %v110, %v118
  %v127 = vsub.f32 %v111, %v119
  %v128 = vsub.f32 %v112, %v120
  %v129 = vsub.f32 %v113, %v121
  %v130 = vsub.f32 %v48, %v74
  %v131 = vsub.f32 %v49, %v75
  %v132 = vsub.f32 %v50, %v76
  %v133 = vsub.f32 %v51, %v77
  %v134 = vsub.f32 %v52, %v78
  %v135 = vsub.f32 %v53, %v79
  %v136 = vsub.f32 %v54, %v80
  %v137 = vsub.f32 %v55, %v81
  %v138 = vadd.f32 %v122, 1e-05
  %v139 = vadd.f32 %v123, 1e-05
  %v140 = vadd.f32 %v124, 1e-05
  %v141 = vadd.f32 %v125, 1e-05
  %v142 = vadd.f32 %v126, 1e-05
  %v143 = vadd.f32 %v127, 1e-05
  %v144 = vadd.f32 %v128, 1e-05
  %v145 = vadd.f32 %v129, 1e-05
  %v146 = vrsqrt.pop %v138
  %v147 = vrsqrt.pop %v139
  %v148 = vrsqrt.pop %v140
  %v149 = vrsqrt.pop %v141
  %v150 = vrsqrt.pop %v142
  %v151 = vrsqrt.pop %v143
  %v152 = vrsqrt.pop %v144
  %v153 = vrsqrt.pop %v145
  %v154 = vmul.f32 %v130, %v146
  %v155 = vmul.f32 %v131, %v147
  %v156 = vmul.f32 %v132, %v148
  %v157 = vmul.f32 %v133, %v149
  %v158 = vmul.f32 %v134, %v150
  %v159 = vmul.f32 %v135, %v151
  %v160 = vmul.f32 %v136, %v152
  %v161 = vmul.f32 %v137, %v153
  %v163 = vlaneseq
  %v164 = vshrl.u32 %v163, 7
  %v165 = vsub.s32 0, %v164
  %v166 = vrot.slane %v56, %v165
  %v168 = vmul.f32 %v154, %v166
  %v169 = vmul.f32 %v155, %v166
  %v170 = vmul.f32 %v156, %v166
  %v171 = vmul.f32 %v157, %v166
  %v172 = vmul.f32 %v158, %v166
  %v173 = vmul.f32 %v159, %v166
  %v174 = vmul.f32 %v160, %v166
  %v175 = vmul.f32 %v161, %v166
  %v177 = vlaneseq
  %v178 = vshrl.u32 %v177, 7
  %v179 = vsub.s32 0, %v178
  %v180 = vrot.slane %v57, %v179
  %v182 = vadd.f32 %v168, %v180
  %v183 = vadd.f32 %v169, %v180
  %v184 = vadd.f32 %v170, %v180
  %v185 = vadd.f32 %v171, %v180
  %v186 = vadd.f32 %v172, %v180
  %v187 = vadd.f32 %v173, %v180
  %v188 = vadd.f32 %v174, %v180
  %v189 = vadd.f32 %v175, %v180
  %v190 = vpack.c.bf16 %v183, %v182
  %v191 = vpack.c.bf16 %v185, %v184
  %v192 = vpack.c.bf16 %v187, %v186
  %v193 = vpack.c.bf16 %v189, %v188
  %v194 = vld [vmem:[%s4] sm:$0xf]
  %v195 = vld [vmem:[%s4 + $0x4] sm:$0xf]
  %v196 = vld [vmem:[%s4 + $0x8] sm:$0xf]
  %v197 = vld [vmem:[%s4 + $0xc] sm:$0xf]
  %v198 = vld [vmem:[%s4 + $0x10] sm:$0xf]
  %v199 = vld [vmem:[%s4 + $0x14] sm:$0xf]
  %v200 = vld [vmem:[%s4 + $0x18] sm:$0xf]
  %v201 = vld [vmem:[%s4 + $0x1c] sm:$0xf]
  %v202 = vld [vmem:[%s4 + $0x20] sm:$0xf]
  %v203 = vld [vmem:[%s4 + $0x24] sm:$0xf]
  %v204 = vld [vmem:[%s4 + $0x28] sm:$0xf]
  %v205 = vld [vmem:[%s4 + $0x2c] sm:$0xf]
  %v206 = vld [vmem:[%s4 + $0x30] sm:$0xf]
  %v207 = vld [vmem:[%s4 + $0x34] sm:$0xf]
  %v208 = vld [vmem:[%s4 + $0x38] sm:$0xf]
  %v209 = vld [vmem:[%s4 + $0x3c] sm:$0xf]
  %v210 = vld [vmem:[%s5] sm:$0x1]
  %v212 = vlaneseq
  %v213 = vshrl.u32 %v212, 7
  %v214 = vsub.s32 0, %v213
  %v215 = vrot.slane %v210, %v214
  %v233 = vunpack.c.l.b16 %v194
  %v234 = vunpack.c.l.b16 %v195
  %v235 = vunpack.c.l.b16 %v196
  %v236 = vunpack.c.l.b16 %v197
  %v237 = vunpack.c.l.b16 %v198
  %v238 = vunpack.c.l.b16 %v199
  %v239 = vunpack.c.l.b16 %v200
  %v240 = vunpack.c.l.b16 %v201
  %v241 = vunpack.c.l.b16 %v202
  %v242 = vunpack.c.l.b16 %v203
  %v243 = vunpack.c.l.b16 %v204
  %v244 = vunpack.c.l.b16 %v205
  %v245 = vunpack.c.l.b16 %v206
  %v246 = vunpack.c.l.b16 %v207
  %v247 = vunpack.c.l.b16 %v208
  %v248 = vunpack.c.l.b16 %v209
  %v249 = vpack.c.b16 %v234, %v233
  %v250 = vpack.c.b16 %v236, %v235
  %v251 = vpack.c.b16 %v238, %v237
  %v252 = vpack.c.b16 %v240, %v239
  %v253 = vpack.c.b16 %v242, %v241
  %v254 = vpack.c.b16 %v244, %v243
  %v255 = vpack.c.b16 %v246, %v245
  %v256 = vpack.c.b16 %v248, %v247
  %265 = vmatprep.subr.bf16.mxu0 0
  %266 = vmatpush1.bf16.msra.mxu0 %v256
  %267 = vmatprep.subr.bf16.mxu0 0
  %268 = vmatpush1.bf16.msra.mxu0 %v255
  %269 = vmatprep.subr.bf16.mxu0 0
  %270 = vmatpush1.bf16.msra.mxu0 %v254
  %271 = vmatprep.subr.bf16.mxu0 0
  %272 = vmatpush1.bf16.msra.mxu0 %v253
  %273 = vmatprep.subr.bf16.mxu0 0
  %274 = vmatpush1.bf16.msra.mxu0 %v252
  %275 = vmatprep.subr.bf16.mxu0 0
  %276 = vmatpush1.bf16.msra.mxu0 %v251
  %277 = vmatprep.subr.bf16.mxu0 0
  %278 = vmatpush1.bf16.msra.mxu0 %v250
  %279 = vmatprep.subr.bf16.mxu0 0
  %280 = vmatpush1.bf16.msra.mxu0 %v249
  %281 = vmatprep.subr.bf16.mxu0 0
  %282 = vmatpush2.bf16.msra.mxu0 0
  %283 = vmatprep.subr.bf16.mxu0 0
  %284 = vmatpush2.bf16.msra.mxu0 0
  %285 = vmatprep.subr.bf16.mxu0 0
  %286 = vmatpush2.bf16.msra.mxu0 0
  %287 = vmatprep.subr.bf16.mxu0 0
  %288 = vmatpush2.bf16.msra.mxu0 0
  %289 = vmatprep.subr.bf16.mxu0 0
  %290 = vmatpush2.bf16.msra.mxu0 0
  %291 = vmatprep.subr.bf16.mxu0 0
  %292 = vmatpush2.bf16.msra.mxu0 0
  %293 = vmatprep.subr.bf16.mxu0 0
  %294 = vmatpush2.bf16.msra.mxu0 0
  %295 = vmatprep.subr.bf16.mxu0 0
  %296 = vmatpush2.bf16.msra.mxu0 0
  %297 = vmatprep.mubr.bf16.mxu0 0
  %298 = vmatmul.mubr.bf16.gmra.mxu0 %v190
  %v299 = vpop.f32.mrf.mxu0
  %v300 = vadd.f32 %v215, %v299
  %v301 = vpop.f32.mrf.mxu0
  %v302 = vpop.f32.mrf.mxu0
  %v303 = vadd.f32 %v215, %v302
  %v304 = vpop.f32.mrf.mxu0
  %305 = vmatprep.mubr.bf16.mxu0 0
  %306 = vmatmul.mubr.bf16.gmra.mxu0 %v191
  %v307 = vpop.f32.mrf.mxu0
  %v308 = vadd.f32 %v215, %v307
  %v309 = vpop.f32.mrf.mxu0
  %v310 = vpop.f32.mrf.mxu0
  %v311 = vadd.f32 %v215, %v310
  %v312 = vpop.f32.mrf.mxu0
  %313 = vmatprep.mubr.bf16.mxu0 0
  %314 = vmatmul.mubr.bf16.gmra.mxu0 %v192
  %v315 = vpop.f32.mrf.mxu0
  %v316 = vadd.f32 %v215, %v315
  %v317 = vpop.f32.mrf.mxu0
  %v318 = vpop.f32.mrf.mxu0
  %v319 = vadd.f32 %v215, %v318
  %v320 = vpop.f32.mrf.mxu0
  %321 = vmatprep.mubr.bf16.mxu0 0
  %322 = vmatmul.mubr.bf16.gmra.mxu0 %v193
  %v323 = vpop.f32.mrf.mxu0
  %v324 = vadd.f32 %v215, %v323
  %v325 = vpop.f32.mrf.mxu0
  %v326 = vpop.f32.mrf.mxu0
  %v327 = vadd.f32 %v215, %v326
  %v328 = vpop.f32.mrf.mxu0
  %329 = vdwg.mxu0
  %v330 = vpack.c.bf16 %v303, %v300
  %v331 = vpack.c.bf16 %v311, %v308
  %v332 = vpack.c.bf16 %v319, %v316
  %v333 = vpack.c.bf16 %v327, %v324
  %v334 = vld [vmem:[%s1] sm:$0x1]
  %v335 = vld [vmem:[%s1 + $0x1] sm:$0x1]
  %v336 = vld [vmem:[%s1 + $0x2] sm:$0x1]
  %v337 = vld [vmem:[%s1 + $0x3] sm:$0x1]
  %v338 = vld [vmem:[%s1 + $0x4] sm:$0x1]
  %v339 = vld [vmem:[%s1 + $0x5] sm:$0x1]
  %v340 = vld [vmem:[%s1 + $0x6] sm:$0x1]
  %v341 = vld [vmem:[%s1 + $0x7] sm:$0x1]
  %v350 = vlaneseq
  %v351 = vshrl.u32 %v350, 7
  %v352 = vsub.s32 0, %v351
  %v353 = vrot.slane %v334, %v352
  %v354 = vlaneseq
  %v355 = vshrl.u32 %v354, 7
  %v356 = vsub.s32 0, %v355
  %v357 = vrot.slane %v335, %v356
  %v358 = vlaneseq
  %v359 = vshrl.u32 %v358, 7
  %v360 = vsub.s32 0, %v359
  %v361 = vrot.slane %v336, %v360
  %v362 = vlaneseq
  %v363 = vshrl.u32 %v362, 7
  %v364 = vsub.s32 0, %v363
  %v365 = vrot.slane %v337, %v364
  %v366 = vlaneseq
  %v367 = vshrl.u32 %v366, 7
  %v368 = vsub.s32 0, %v367
  %v369 = vrot.slane %v338, %v368
  %v370 = vlaneseq
  %v371 = vshrl.u32 %v370, 7
  %v372 = vsub.s32 0, %v371
  %v373 = vrot.slane %v339, %v372
  %v374 = vlaneseq
  %v375 = vshrl.u32 %v374, 7
  %v376 = vsub.s32 0, %v375
  %v377 = vrot.slane %v340, %v376
  %v378 = vlaneseq
  %v379 = vshrl.u32 %v378, 7
  %v380 = vsub.s32 0, %v379
  %v381 = vrot.slane %v341, %v380
  %v394 = vunpack.c.l.b16 %v330
  %v395 = vunpack.c.h.b16 %v330
  %v396 = vunpack.c.l.b16 %v331
  %v397 = vunpack.c.h.b16 %v331
  %v398 = vunpack.c.l.b16 %v332
  %v399 = vunpack.c.h.b16 %v332
  %v400 = vunpack.c.l.b16 %v333
  %v401 = vunpack.c.h.b16 %v333
  %v402 = vpack.c.b16 %v394, %v394
  %v403 = vpack.c.b16 %v395, %v395
  %v404 = vpack.c.b16 %v396, %v396
  %v405 = vpack.c.b16 %v397, %v397
  %v406 = vpack.c.b16 %v398, %v398
  %v407 = vpack.c.b16 %v399, %v399
  %v408 = vpack.c.b16 %v400, %v400
  %v409 = vpack.c.b16 %v401, %v401
  %410 = vrot.lane.b32.xlu0 %v402, 96
  %v411 = vpop.permute.xlu0 %410
  %vm412 = vcmask 130048
  %v414 = vsel %vm412, %v402, 0
  %v417 = vsel %vm412, %v411, 0
  %419 = vmatprep.subr.bf16.mxu0 0
  %420 = vmatpush1.bf16.xpose.msra.mxu0 0
  %421 = vmatprep.subr.bf16.mxu0 0
  %422 = vmatpush1.bf16.xpose.msra.mxu0 0
  %423 = vmatprep.subr.bf16.mxu0 0
  %424 = vmatpush1.bf16.xpose.msra.mxu0 0
  %425 = vmatprep.subr.bf16.mxu0 0
  %426 = vmatpush1.bf16.xpose.msra.mxu0 0
  %427 = vmatprep.subr.bf16.mxu0 0
  %428 = vmatpush1.bf16.xpose.msra.mxu0 0
  %429 = vmatprep.subr.bf16.mxu0 0
  %430 = vmatpush1.bf16.xpose.msra.mxu0 0
  %431 = vmatprep.subr.bf16.mxu0 0
  %432 = vmatpush1.bf16.xpose.msra.mxu0 0
  %433 = vmatprep.subr.bf16.mxu0 0
  %434 = vmatpush1.bf16.xpose.msra.mxu0 %v417
  %435 = vmatprep.subr.bf16.mxu0 0
  %436 = vmatpush2.bf16.xpose.msra.mxu0 0
  %437 = vmatprep.subr.bf16.mxu0 0
  %438 = vmatpush2.bf16.xpose.msra.mxu0 0
  %439 = vmatprep.subr.bf16.mxu0 0
  %440 = vmatpush2.bf16.xpose.msra.mxu0 0
  %441 = vmatprep.subr.bf16.mxu0 0
  %442 = vmatpush2.bf16.xpose.msra.mxu0 0
  %443 = vmatprep.subr.bf16.mxu0 0
  %444 = vmatpush2.bf16.xpose.msra.mxu0 0
  %445 = vmatprep.subr.bf16.mxu0 0
  %446 = vmatpush2.bf16.xpose.msra.mxu0 0
  %447 = vmatprep.subr.bf16.mxu0 0
  %448 = vmatpush2.bf16.xpose.msra.mxu0 0
  %449 = vmatprep.subr.bf16.mxu0 0
  %450 = vmatpush2.bf16.xpose.msra.mxu0 0
  %451 = vmatprep.mubr.bf16.mxu0 0
  %452 = vmatmul.mubr.bf16.gmra.mxu0 %v414
  %v453 = vpop.f32.mrf.mxu0
  %v454 = vadd.f32 %v353, %v453
  %v455 = vpop.f32.mrf.mxu0
  %v456 = vpop.f32.mrf.mxu0
  %v457 = vpop.f32.mrf.mxu0
  %458 = vdwg.mxu0
  %459 = vrot.lane.b32.xlu0 %v403, 96
  %v460 = vpop.permute.xlu0 %459
  %v462 = vsel %vm412, %v403, 0
  %v465 = vsel %vm412, %v460, 0
  %467 = vmatprep.subr.bf16.mxu0 0
  %468 = vmatpush1.bf16.xpose.msra.mxu0 0
  %469 = vmatprep.subr.bf16.mxu0 0
  %470 = vmatpush1.bf16.xpose.msra.mxu0 0
  %471 = vmatprep.subr.bf16.mxu0 0
  %472 = vmatpush1.bf16.xpose.msra.mxu0 0
  %473 = vmatprep.subr.bf16.mxu0 0
  %474 = vmatpush1.bf16.xpose.msra.mxu0 0
  %475 = vmatprep.subr.bf16.mxu0 0
  %476 = vmatpush1.bf16.xpose.msra.mxu0 0
  %477 = vmatprep.subr.bf16.mxu0 0
  %478 = vmatpush1.bf16.xpose.msra.mxu0 0
  %479 = vmatprep.subr.bf16.mxu0 0
  %480 = vmatpush1.bf16.xpose.msra.mxu0 0
  %481 = vmatprep.subr.bf16.mxu0 0
  %482 = vmatpush1.bf16.xpose.msra.mxu0 %v465
  %483 = vmatprep.subr.bf16.mxu0 0
  %484 = vmatpush2.bf16.xpose.msra.mxu0 0
  %485 = vmatprep.subr.bf16.mxu0 0
  %486 = vmatpush2.bf16.xpose.msra.mxu0 0
  %487 = vmatprep.subr.bf16.mxu0 0
  %488 = vmatpush2.bf16.xpose.msra.mxu0 0
  %489 = vmatprep.subr.bf16.mxu0 0
  %490 = vmatpush2.bf16.xpose.msra.mxu0 0
  %491 = vmatprep.subr.bf16.mxu0 0
  %492 = vmatpush2.bf16.xpose.msra.mxu0 0
  %493 = vmatprep.subr.bf16.mxu0 0
  %494 = vmatpush2.bf16.xpose.msra.mxu0 0
  %495 = vmatprep.subr.bf16.mxu0 0
  %496 = vmatpush2.bf16.xpose.msra.mxu0 0
  %497 = vmatprep.subr.bf16.mxu0 0
  %498 = vmatpush2.bf16.xpose.msra.mxu0 0
  %499 = vmatprep.mubr.bf16.mxu0 0
  %500 = vmatmul.mubr.bf16.gmra.mxu0 %v462
  %v501 = vpop.f32.mrf.mxu0
  %v502 = vadd.f32 %v357, %v501
  %v503 = vpop.f32.mrf.mxu0
  %v504 = vpop.f32.mrf.mxu0
  %v505 = vpop.f32.mrf.mxu0
  %506 = vdwg.mxu0
  %507 = vrot.lane.b32.xlu0 %v404, 96
  %v508 = vpop.permute.xlu0 %507
  %v510 = vsel %vm412, %v404, 0
  %v513 = vsel %vm412, %v508, 0
  %515 = vmatprep.subr.bf16.mxu0 0
  %516 = vmatpush1.bf16.xpose.msra.mxu0 0
  %517 = vmatprep.subr.bf16.mxu0 0
  %518 = vmatpush1.bf16.xpose.msra.mxu0 0
  %519 = vmatprep.subr.bf16.mxu0 0
  %520 = vmatpush1.bf16.xpose.msra.mxu0 0
  %521 = vmatprep.subr.bf16.mxu0 0
  %522 = vmatpush1.bf16.xpose.msra.mxu0 0
  %523 = vmatprep.subr.bf16.mxu0 0
  %524 = vmatpush1.bf16.xpose.msra.mxu0 0
  %525 = vmatprep.subr.bf16.mxu0 0
  %526 = vmatpush1.bf16.xpose.msra.mxu0 0
  %527 = vmatprep.subr.bf16.mxu0 0
  %528 = vmatpush1.bf16.xpose.msra.mxu0 0
  %529 = vmatprep.subr.bf16.mxu0 0
  %530 = vmatpush1.bf16.xpose.msra.mxu0 %v513
  %531 = vmatprep.subr.bf16.mxu0 0
  %532 = vmatpush2.bf16.xpose.msra.mxu0 0
  %533 = vmatprep.subr.bf16.mxu0 0
  %534 = vmatpush2.bf16.xpose.msra.mxu0 0
  %535 = vmatprep.subr.bf16.mxu0 0
  %536 = vmatpush2.bf16.xpose.msra.mxu0 0
  %537 = vmatprep.subr.bf16.mxu0 0
  %538 = vmatpush2.bf16.xpose.msra.mxu0 0
  %539 = vmatprep.subr.bf16.mxu0 0
  %540 = vmatpush2.bf16.xpose.msra.mxu0 0
  %541 = vmatprep.subr.bf16.mxu0 0
  %542 = vmatpush2.bf16.xpose.msra.mxu0 0
  %543 = vmatprep.subr.bf16.mxu0 0
  %544 = vmatpush2.bf16.xpose.msra.mxu0 0
  %545 = vmatprep.subr.bf16.mxu0 0
  %546 = vmatpush2.bf16.xpose.msra.mxu0 0
  %547 = vmatprep.mubr.bf16.mxu0 0
  %548 = vmatmul.mubr.bf16.gmra.mxu0 %v510
  %v549 = vpop.f32.mrf.mxu0
  %v550 = vadd.f32 %v361, %v549
  %v551 = vpop.f32.mrf.mxu0
  %v552 = vpop.f32.mrf.mxu0
  %v553 = vpop.f32.mrf.mxu0
  %554 = vdwg.mxu0
  %555 = vrot.lane.b32.xlu0 %v405, 96
  %v556 = vpop.permute.xlu0 %555
  %v558 = vsel %vm412, %v405, 0
  %v561 = vsel %vm412, %v556, 0
  %563 = vmatprep.subr.bf16.mxu0 0
  %564 = vmatpush1.bf16.xpose.msra.mxu0 0
  %565 = vmatprep.subr.bf16.mxu0 0
  %566 = vmatpush1.bf16.xpose.msra.mxu0 0
  %567 = vmatprep.subr.bf16.mxu0 0
  %568 = vmatpush1.bf16.xpose.msra.mxu0 0
  %569 = vmatprep.subr.bf16.mxu0 0
  %570 = vmatpush1.bf16.xpose.msra.mxu0 0
  %571 = vmatprep.subr.bf16.mxu0 0
  %572 = vmatpush1.bf16.xpose.msra.mxu0 0
  %573 = vmatprep.subr.bf16.mxu0 0
  %574 = vmatpush1.bf16.xpose.msra.mxu0 0
  %575 = vmatprep.subr.bf16.mxu0 0
  %576 = vmatpush1.bf16.xpose.msra.mxu0 0
  %577 = vmatprep.subr.bf16.mxu0 0
  %578 = vmatpush1.bf16.xpose.msra.mxu0 %v561
  %579 = vmatprep.subr.bf16.mxu0 0
  %580 = vmatpush2.bf16.xpose.msra.mxu0 0
  %581 = vmatprep.subr.bf16.mxu0 0
  %582 = vmatpush2.bf16.xpose.msra.mxu0 0
  %583 = vmatprep.subr.bf16.mxu0 0
  %584 = vmatpush2.bf16.xpose.msra.mxu0 0
  %585 = vmatprep.subr.bf16.mxu0 0
  %586 = vmatpush2.bf16.xpose.msra.mxu0 0
  %587 = vmatprep.subr.bf16.mxu0 0
  %588 = vmatpush2.bf16.xpose.msra.mxu0 0
  %589 = vmatprep.subr.bf16.mxu0 0
  %590 = vmatpush2.bf16.xpose.msra.mxu0 0
  %591 = vmatprep.subr.bf16.mxu0 0
  %592 = vmatpush2.bf16.xpose.msra.mxu0 0
  %593 = vmatprep.subr.bf16.mxu0 0
  %594 = vmatpush2.bf16.xpose.msra.mxu0 0
  %595 = vmatprep.mubr.bf16.mxu0 0
  %596 = vmatmul.mubr.bf16.gmra.mxu0 %v558
  %v597 = vpop.f32.mrf.mxu0
  %v598 = vadd.f32 %v365, %v597
  %v599 = vpop.f32.mrf.mxu0
  %v600 = vpop.f32.mrf.mxu0
  %v601 = vpop.f32.mrf.mxu0
  %602 = vdwg.mxu0
  %603 = vrot.lane.b32.xlu0 %v406, 96
  %v604 = vpop.permute.xlu0 %603
  %v606 = vsel %vm412, %v406, 0
  %v609 = vsel %vm412, %v604, 0
  %611 = vmatprep.subr.bf16.mxu0 0
  %612 = vmatpush1.bf16.xpose.msra.mxu0 0
  %613 = vmatprep.subr.bf16.mxu0 0
  %614 = vmatpush1.bf16.xpose.msra.mxu0 0
  %615 = vmatprep.subr.bf16.mxu0 0
  %616 = vmatpush1.bf16.xpose.msra.mxu0 0
  %617 = vmatprep.subr.bf16.mxu0 0
  %618 = vmatpush1.bf16.xpose.msra.mxu0 0
  %619 = vmatprep.subr.bf16.mxu0 0
  %620 = vmatpush1.bf16.xpose.msra.mxu0 0
  %621 = vmatprep.subr.bf16.mxu0 0
  %622 = vmatpush1.bf16.xpose.msra.mxu0 0
  %623 = vmatprep.subr.bf16.mxu0 0
  %624 = vmatpush1.bf16.xpose.msra.mxu0 0
  %625 = vmatprep.subr.bf16.mxu0 0
  %626 = vmatpush1.bf16.xpose.msra.mxu0 %v609
  %627 = vmatprep.subr.bf16.mxu0 0
  %628 = vmatpush2.bf16.xpose.msra.mxu0 0
  %629 = vmatprep.subr.bf16.mxu0 0
  %630 = vmatpush2.bf16.xpose.msra.mxu0 0
  %631 = vmatprep.subr.bf16.mxu0 0
  %632 = vmatpush2.bf16.xpose.msra.mxu0 0
  %633 = vmatprep.subr.bf16.mxu0 0
  %634 = vmatpush2.bf16.xpose.msra.mxu0 0
  %635 = vmatprep.subr.bf16.mxu0 0
  %636 = vmatpush2.bf16.xpose.msra.mxu0 0
  %637 = vmatprep.subr.bf16.mxu0 0
  %638 = vmatpush2.bf16.xpose.msra.mxu0 0
  %639 = vmatprep.subr.bf16.mxu0 0
  %640 = vmatpush2.bf16.xpose.msra.mxu0 0
  %641 = vmatprep.subr.bf16.mxu0 0
  %642 = vmatpush2.bf16.xpose.msra.mxu0 0
  %643 = vmatprep.mubr.bf16.mxu0 0
  %644 = vmatmul.mubr.bf16.gmra.mxu0 %v606
  %v645 = vpop.f32.mrf.mxu0
  %v646 = vadd.f32 %v369, %v645
  %v647 = vpop.f32.mrf.mxu0
  %v648 = vpop.f32.mrf.mxu0
  %v649 = vpop.f32.mrf.mxu0
  %650 = vdwg.mxu0
  %651 = vrot.lane.b32.xlu0 %v407, 96
  %v652 = vpop.permute.xlu0 %651
  %v654 = vsel %vm412, %v407, 0
  %v657 = vsel %vm412, %v652, 0
  %659 = vmatprep.subr.bf16.mxu0 0
  %660 = vmatpush1.bf16.xpose.msra.mxu0 0
  %661 = vmatprep.subr.bf16.mxu0 0
  %662 = vmatpush1.bf16.xpose.msra.mxu0 0
  %663 = vmatprep.subr.bf16.mxu0 0
  %664 = vmatpush1.bf16.xpose.msra.mxu0 0
  %665 = vmatprep.subr.bf16.mxu0 0
  %666 = vmatpush1.bf16.xpose.msra.mxu0 0
  %667 = vmatprep.subr.bf16.mxu0 0
  %668 = vmatpush1.bf16.xpose.msra.mxu0 0
  %669 = vmatprep.subr.bf16.mxu0 0
  %670 = vmatpush1.bf16.xpose.msra.mxu0 0
  %671 = vmatprep.subr.bf16.mxu0 0
  %672 = vmatpush1.bf16.xpose.msra.mxu0 0
  %673 = vmatprep.subr.bf16.mxu0 0
  %674 = vmatpush1.bf16.xpose.msra.mxu0 %v657
  %675 = vmatprep.subr.bf16.mxu0 0
  %676 = vmatpush2.bf16.xpose.msra.mxu0 0
  %677 = vmatprep.subr.bf16.mxu0 0
  %678 = vmatpush2.bf16.xpose.msra.mxu0 0
  %679 = vmatprep.subr.bf16.mxu0 0
  %680 = vmatpush2.bf16.xpose.msra.mxu0 0
  %681 = vmatprep.subr.bf16.mxu0 0
  %682 = vmatpush2.bf16.xpose.msra.mxu0 0
  %683 = vmatprep.subr.bf16.mxu0 0
  %684 = vmatpush2.bf16.xpose.msra.mxu0 0
  %685 = vmatprep.subr.bf16.mxu0 0
  %686 = vmatpush2.bf16.xpose.msra.mxu0 0
  %687 = vmatprep.subr.bf16.mxu0 0
  %688 = vmatpush2.bf16.xpose.msra.mxu0 0
  %689 = vmatprep.subr.bf16.mxu0 0
  %690 = vmatpush2.bf16.xpose.msra.mxu0 0
  %691 = vmatprep.mubr.bf16.mxu0 0
  %692 = vmatmul.mubr.bf16.gmra.mxu0 %v654
  %v693 = vpop.f32.mrf.mxu0
  %v694 = vadd.f32 %v373, %v693
  %v695 = vpop.f32.mrf.mxu0
  %v696 = vpop.f32.mrf.mxu0
  %v697 = vpop.f32.mrf.mxu0
  %698 = vdwg.mxu0
  %699 = vrot.lane.b32.xlu0 %v408, 96
  %v700 = vpop.permute.xlu0 %699
  %v702 = vsel %vm412, %v408, 0
  %v705 = vsel %vm412, %v700, 0
  %707 = vmatprep.subr.bf16.mxu0 0
  %708 = vmatpush1.bf16.xpose.msra.mxu0 0
  %709 = vmatprep.subr.bf16.mxu0 0
  %710 = vmatpush1.bf16.xpose.msra.mxu0 0
  %711 = vmatprep.subr.bf16.mxu0 0
  %712 = vmatpush1.bf16.xpose.msra.mxu0 0
  %713 = vmatprep.subr.bf16.mxu0 0
  %714 = vmatpush1.bf16.xpose.msra.mxu0 0
  %715 = vmatprep.subr.bf16.mxu0 0
  %716 = vmatpush1.bf16.xpose.msra.mxu0 0
  %717 = vmatprep.subr.bf16.mxu0 0
  %718 = vmatpush1.bf16.xpose.msra.mxu0 0
  %719 = vmatprep.subr.bf16.mxu0 0
  %720 = vmatpush1.bf16.xpose.msra.mxu0 0
  %721 = vmatprep.subr.bf16.mxu0 0
  %722 = vmatpush1.bf16.xpose.msra.mxu0 %v705
  %723 = vmatprep.subr.bf16.mxu0 0
  %724 = vmatpush2.bf16.xpose.msra.mxu0 0
  %725 = vmatprep.subr.bf16.mxu0 0
  %726 = vmatpush2.bf16.xpose.msra.mxu0 0
  %727 = vmatprep.subr.bf16.mxu0 0
  %728 = vmatpush2.bf16.xpose.msra.mxu0 0
  %729 = vmatprep.subr.bf16.mxu0 0
  %730 = vmatpush2.bf16.xpose.msra.mxu0 0
  %731 = vmatprep.subr.bf16.mxu0 0
  %732 = vmatpush2.bf16.xpose.msra.mxu0 0
  %733 = vmatprep.subr.bf16.mxu0 0
  %734 = vmatpush2.bf16.xpose.msra.mxu0 0
  %735 = vmatprep.subr.bf16.mxu0 0
  %736 = vmatpush2.bf16.xpose.msra.mxu0 0
  %737 = vmatprep.subr.bf16.mxu0 0
  %738 = vmatpush2.bf16.xpose.msra.mxu0 0
  %739 = vmatprep.mubr.bf16.mxu0 0
  %740 = vmatmul.mubr.bf16.gmra.mxu0 %v702
  %v741 = vpop.f32.mrf.mxu0
  %v742 = vadd.f32 %v377, %v741
  %v743 = vpop.f32.mrf.mxu0
  %v744 = vpop.f32.mrf.mxu0
  %v745 = vpop.f32.mrf.mxu0
  %746 = vdwg.mxu0
  %747 = vrot.lane.b32.xlu0 %v409, 96
  %v748 = vpop.permute.xlu0 %747
  %v750 = vsel %vm412, %v409, 0
  %v753 = vsel %vm412, %v748, 0
  %755 = vmatprep.subr.bf16.mxu0 0
  %756 = vmatpush1.bf16.xpose.msra.mxu0 0
  %757 = vmatprep.subr.bf16.mxu0 0
  %758 = vmatpush1.bf16.xpose.msra.mxu0 0
  %759 = vmatprep.subr.bf16.mxu0 0
  %760 = vmatpush1.bf16.xpose.msra.mxu0 0
  %761 = vmatprep.subr.bf16.mxu0 0
  %762 = vmatpush1.bf16.xpose.msra.mxu0 0
  %763 = vmatprep.subr.bf16.mxu0 0
  %764 = vmatpush1.bf16.xpose.msra.mxu0 0
  %765 = vmatprep.subr.bf16.mxu0 0
  %766 = vmatpush1.bf16.xpose.msra.mxu0 0
  %767 = vmatprep.subr.bf16.mxu0 0
  %768 = vmatpush1.bf16.xpose.msra.mxu0 0
  %769 = vmatprep.subr.bf16.mxu0 0
  %770 = vmatpush1.bf16.xpose.msra.mxu0 %v753
  %771 = vmatprep.subr.bf16.mxu0 0
  %772 = vmatpush2.bf16.xpose.msra.mxu0 0
  %773 = vmatprep.subr.bf16.mxu0 0
  %774 = vmatpush2.bf16.xpose.msra.mxu0 0
  %775 = vmatprep.subr.bf16.mxu0 0
  %776 = vmatpush2.bf16.xpose.msra.mxu0 0
  %777 = vmatprep.subr.bf16.mxu0 0
  %778 = vmatpush2.bf16.xpose.msra.mxu0 0
  %779 = vmatprep.subr.bf16.mxu0 0
  %780 = vmatpush2.bf16.xpose.msra.mxu0 0
  %781 = vmatprep.subr.bf16.mxu0 0
  %782 = vmatpush2.bf16.xpose.msra.mxu0 0
  %783 = vmatprep.subr.bf16.mxu0 0
  %784 = vmatpush2.bf16.xpose.msra.mxu0 0
  %785 = vmatprep.subr.bf16.mxu0 0
  %786 = vmatpush2.bf16.xpose.msra.mxu0 0
  %787 = vmatprep.mubr.bf16.mxu0 0
  %788 = vmatmul.mubr.bf16.gmra.mxu0 %v750
  %v789 = vpop.f32.mrf.mxu0
  %v790 = vadd.f32 %v381, %v789
  %v791 = vpop.f32.mrf.mxu0
  %v792 = vpop.f32.mrf.mxu0
  %v793 = vpop.f32.mrf.mxu0
  %794 = vdwg.mxu0
  %vm795 = vcmask 64512
  %v796 = vsel %vm795, %v454, -inf
  %797 = vmax.xlane.f32.xlu0 %v796
  %v798 = vpop.xlane.xlu0 %797
  %v799 = vsel %vm795, %v502, -inf
  %800 = vmax.xlane.f32.xlu0 %v799
  %v801 = vpop.xlane.xlu0 %800
  %v802 = vsel %vm795, %v550, -inf
  %803 = vmax.xlane.f32.xlu0 %v802
  %v804 = vpop.xlane.xlu0 %803
  %v805 = vsel %vm795, %v598, -inf
  %806 = vmax.xlane.f32.xlu0 %v805
  %v807 = vpop.xlane.xlu0 %806
  %v808 = vsel %vm795, %v646, -inf
  %809 = vmax.xlane.f32.xlu0 %v808
  %v810 = vpop.xlane.xlu0 %809
  %v811 = vsel %vm795, %v694, -inf
  %812 = vmax.xlane.f32.xlu0 %v811
  %v813 = vpop.xlane.xlu0 %812
  %v814 = vsel %vm795, %v742, -inf
  %815 = vmax.xlane.f32.xlu0 %v814
  %v816 = vpop.xlane.xlu0 %815
  %v817 = vsel %vm795, %v790, -inf
  %818 = vmax.xlane.f32.xlu0 %v817
  %v819 = vpop.xlane.xlu0 %818
  %v820 = vsub.f32 %v454, %v798
  %v821 = vsub.f32 %v502, %v801
  %v822 = vsub.f32 %v550, %v804
  %v823 = vsub.f32 %v598, %v807
  %v824 = vsub.f32 %v646, %v810
  %v825 = vsub.f32 %v694, %v813
  %v826 = vsub.f32 %v742, %v816
  %v827 = vsub.f32 %v790, %v819
  %v828 = vmul.f32 %v820, 1.442695
  %v829 = vpow.pop %v828
  %v830 = vmul.f32 %v821, 1.442695
  %v831 = vpow.pop %v830
  %v832 = vmul.f32 %v822, 1.442695
  %v833 = vpow.pop %v832
  %v834 = vmul.f32 %v823, 1.442695
  %v835 = vpow.pop %v834
  %v836 = vmul.f32 %v824, 1.442695
  %v837 = vpow.pop %v836
  %v838 = vmul.f32 %v825, 1.442695
  %v839 = vpow.pop %v838
  %v840 = vmul.f32 %v826, 1.442695
  %v841 = vpow.pop %v840
  %v842 = vmul.f32 %v827, 1.442695
  %v843 = vpow.pop %v842
  %v844 = vsel %vm795, %v829, 0.0
  %845 = vadd.xlane.f32.xlu0 %v844
  %v846 = vpop.xlane.xlu0 %845
  %v847 = vsel %vm795, %v831, 0.0
  %848 = vadd.xlane.f32.xlu0 %v847
  %v849 = vpop.xlane.xlu0 %848
  %v850 = vsel %vm795, %v833, 0.0
  %851 = vadd.xlane.f32.xlu0 %v850
  %v852 = vpop.xlane.xlu0 %851
  %v853 = vsel %vm795, %v835, 0.0
  %854 = vadd.xlane.f32.xlu0 %v853
  %v855 = vpop.xlane.xlu0 %854
  %v856 = vsel %vm795, %v837, 0.0
  %857 = vadd.xlane.f32.xlu0 %v856
  %v858 = vpop.xlane.xlu0 %857
  %v859 = vsel %vm795, %v839, 0.0
  %860 = vadd.xlane.f32.xlu0 %v859
  %v861 = vpop.xlane.xlu0 %860
  %v862 = vsel %vm795, %v841, 0.0
  %863 = vadd.xlane.f32.xlu0 %v862
  %v864 = vpop.xlane.xlu0 %863
  %v865 = vsel %vm795, %v843, 0.0
  %866 = vadd.xlane.f32.xlu0 %v865
  %v867 = vpop.xlane.xlu0 %866
  %v868 = vrcp.pop %v846
  %v869 = vrcp.pop %v849
  %v870 = vrcp.pop %v852
  %v871 = vrcp.pop %v855
  %v872 = vrcp.pop %v858
  %v873 = vrcp.pop %v861
  %v874 = vrcp.pop %v864
  %v875 = vrcp.pop %v867
  %v876 = vmul.f32 %v829, %v868
  %v877 = vmul.f32 %v831, %v869
  %v878 = vmul.f32 %v833, %v870
  %v879 = vmul.f32 %v835, %v871
  %v880 = vmul.f32 %v837, %v872
  %v881 = vmul.f32 %v839, %v873
  %v882 = vmul.f32 %v841, %v874
  %v883 = vmul.f32 %v843, %v875
  %v884 = vpack.c.bf16 %v876, %v876
  %v885 = vpack.c.bf16 %v877, %v877
  %v886 = vpack.c.bf16 %v878, %v878
  %v887 = vpack.c.bf16 %v879, %v879
  %v888 = vpack.c.bf16 %v880, %v880
  %v889 = vpack.c.bf16 %v881, %v881
  %v890 = vpack.c.bf16 %v882, %v882
  %v891 = vpack.c.bf16 %v883, %v883
  %892 = vrot.lane.b32.xlu0 %v402, 64
  %v893 = vpop.permute.xlu0 %892
  %v895 = vsel %vm795, %v884, 0
  %vm897 = vcmask 1043456
  %v899 = vsel %vm897, %v893, 0
  %901 = vmatprep.subr.bf16.mxu0 0
  %902 = vmatpush1.bf16.msra.mxu0 0
  %903 = vmatprep.subr.bf16.mxu0 0
  %904 = vmatpush1.bf16.msra.mxu0 0
  %905 = vmatprep.subr.bf16.mxu0 0
  %906 = vmatpush1.bf16.msra.mxu0 0
  %907 = vmatprep.subr.bf16.mxu0 0
  %908 = vmatpush1.bf16.msra.mxu0 0
  %909 = vmatprep.subr.bf16.mxu0 0
  %910 = vmatpush1.bf16.msra.mxu0 0
  %911 = vmatprep.subr.bf16.mxu0 0
  %912 = vmatpush1.bf16.msra.mxu0 0
  %913 = vmatprep.subr.bf16.mxu0 0
  %914 = vmatpush1.bf16.msra.mxu0 0
  %915 = vmatprep.subr.bf16.mxu0 0
  %916 = vmatpush1.bf16.msra.mxu0 %v899
  %917 = vmatprep.subr.bf16.mxu0 0
  %918 = vmatpush2.bf16.msra.mxu0 0
  %919 = vmatprep.subr.bf16.mxu0 0
  %920 = vmatpush2.bf16.msra.mxu0 0
  %921 = vmatprep.subr.bf16.mxu0 0
  %922 = vmatpush2.bf16.msra.mxu0 0
  %923 = vmatprep.subr.bf16.mxu0 0
  %924 = vmatpush2.bf16.msra.mxu0 0
  %925 = vmatprep.subr.bf16.mxu0 0
  %926 = vmatpush2.bf16.msra.mxu0 0
  %927 = vmatprep.subr.bf16.mxu0 0
  %928 = vmatpush2.bf16.msra.mxu0 0
  %929 = vmatprep.subr.bf16.mxu0 0
  %930 = vmatpush2.bf16.msra.mxu0 0
  %931 = vmatprep.subr.bf16.mxu0 0
  %932 = vmatpush2.bf16.msra.mxu0 0
  %933 = vmatprep.mubr.bf16.mxu0 0
  %934 = vmatmul.mubr.bf16.gmra.mxu0 %v895
  %v935 = vpop.f32.mrf.mxu0
  %v936 = vadd.f32 0.0, %v935
  %v937 = vpop.f32.mrf.mxu0
  %v938 = vpop.f32.mrf.mxu0
  %v939 = vpop.f32.mrf.mxu0
  %940 = vdwg.mxu0
  %941 = vrot.lane.b32.xlu0 %v403, 64
  %v942 = vpop.permute.xlu0 %941
  %v944 = vsel %vm795, %v885, 0
  %v947 = vsel %vm897, %v942, 0
  %949 = vmatprep.subr.bf16.mxu0 0
  %950 = vmatpush1.bf16.msra.mxu0 0
  %951 = vmatprep.subr.bf16.mxu0 0
  %952 = vmatpush1.bf16.msra.mxu0 0
  %953 = vmatprep.subr.bf16.mxu0 0
  %954 = vmatpush1.bf16.msra.mxu0 0
  %955 = vmatprep.subr.bf16.mxu0 0
  %956 = vmatpush1.bf16.msra.mxu0 0
  %957 = vmatprep.subr.bf16.mxu0 0
  %958 = vmatpush1.bf16.msra.mxu0 0
  %959 = vmatprep.subr.bf16.mxu0 0
  %960 = vmatpush1.bf16.msra.mxu0 0
  %961 = vmatprep.subr.bf16.mxu0 0
  %962 = vmatpush1.bf16.msra.mxu0 0
  %963 = vmatprep.subr.bf16.mxu0 0
  %964 = vmatpush1.bf16.msra.mxu0 %v947
  %965 = vmatprep.subr.bf16.mxu0 0
  %966 = vmatpush2.bf16.msra.mxu0 0
  %967 = vmatprep.subr.bf16.mxu0 0
  %968 = vmatpush2.bf16.msra.mxu0 0
  %969 = vmatprep.subr.bf16.mxu0 0
  %970 = vmatpush2.bf16.msra.mxu0 0
  %971 = vmatprep.subr.bf16.mxu0 0
  %972 = vmatpush2.bf16.msra.mxu0 0
  %973 = vmatprep.subr.bf16.mxu0 0
  %974 = vmatpush2.bf16.msra.mxu0 0
  %975 = vmatprep.subr.bf16.mxu0 0
  %976 = vmatpush2.bf16.msra.mxu0 0
  %977 = vmatprep.subr.bf16.mxu0 0
  %978 = vmatpush2.bf16.msra.mxu0 0
  %979 = vmatprep.subr.bf16.mxu0 0
  %980 = vmatpush2.bf16.msra.mxu0 0
  %981 = vmatprep.mubr.bf16.mxu0 0
  %982 = vmatmul.mubr.bf16.gmra.mxu0 %v944
  %v983 = vpop.f32.mrf.mxu0
  %v984 = vadd.f32 0.0, %v983
  %v985 = vpop.f32.mrf.mxu0
  %v986 = vpop.f32.mrf.mxu0
  %v987 = vpop.f32.mrf.mxu0
  %988 = vdwg.mxu0
  %989 = vrot.lane.b32.xlu0 %v404, 64
  %v990 = vpop.permute.xlu0 %989
  %v992 = vsel %vm795, %v886, 0
  %v995 = vsel %vm897, %v990, 0
  %997 = vmatprep.subr.bf16.mxu0 0
  %998 = vmatpush1.bf16.msra.mxu0 0
  %999 = vmatprep.subr.bf16.mxu0 0
  %1000 = vmatpush1.bf16.msra.mxu0 0
  %1001 = vmatprep.subr.bf16.mxu0 0
  %1002 = vmatpush1.bf16.msra.mxu0 0
  %1003 = vmatprep.subr.bf16.mxu0 0
  %1004 = vmatpush1.bf16.msra.mxu0 0
  %1005 = vmatprep.subr.bf16.mxu0 0
  %1006 = vmatpush1.bf16.msra.mxu0 0
  %1007 = vmatprep.subr.bf16.mxu0 0
  %1008 = vmatpush1.bf16.msra.mxu0 0
  %1009 = vmatprep.subr.bf16.mxu0 0
  %1010 = vmatpush1.bf16.msra.mxu0 0
  %1011 = vmatprep.subr.bf16.mxu0 0
  %1012 = vmatpush1.bf16.msra.mxu0 %v995
  %1013 = vmatprep.subr.bf16.mxu0 0
  %1014 = vmatpush2.bf16.msra.mxu0 0
  %1015 = vmatprep.subr.bf16.mxu0 0
  %1016 = vmatpush2.bf16.msra.mxu0 0
  %1017 = vmatprep.subr.bf16.mxu0 0
  %1018 = vmatpush2.bf16.msra.mxu0 0
  %1019 = vmatprep.subr.bf16.mxu0 0
  %1020 = vmatpush2.bf16.msra.mxu0 0
  %1021 = vmatprep.subr.bf16.mxu0 0
  %1022 = vmatpush2.bf16.msra.mxu0 0
  %1023 = vmatprep.subr.bf16.mxu0 0
  %1024 = vmatpush2.bf16.msra.mxu0 0
  %1025 = vmatprep.subr.bf16.mxu0 0
  %1026 = vmatpush2.bf16.msra.mxu0 0
  %1027 = vmatprep.subr.bf16.mxu0 0
  %1028 = vmatpush2.bf16.msra.mxu0 0
  %1029 = vmatprep.mubr.bf16.mxu0 0
  %1030 = vmatmul.mubr.bf16.gmra.mxu0 %v992
  %v1031 = vpop.f32.mrf.mxu0
  %v1032 = vadd.f32 0.0, %v1031
  %v1033 = vpop.f32.mrf.mxu0
  %v1034 = vpop.f32.mrf.mxu0
  %v1035 = vpop.f32.mrf.mxu0
  %1036 = vdwg.mxu0
  %1037 = vrot.lane.b32.xlu0 %v405, 64
  %v1038 = vpop.permute.xlu0 %1037
  %v1040 = vsel %vm795, %v887, 0
  %v1043 = vsel %vm897, %v1038, 0
  %1045 = vmatprep.subr.bf16.mxu0 0
  %1046 = vmatpush1.bf16.msra.mxu0 0
  %1047 = vmatprep.subr.bf16.mxu0 0
  %1048 = vmatpush1.bf16.msra.mxu0 0
  %1049 = vmatprep.subr.bf16.mxu0 0
  %1050 = vmatpush1.bf16.msra.mxu0 0
  %1051 = vmatprep.subr.bf16.mxu0 0
  %1052 = vmatpush1.bf16.msra.mxu0 0
  %1053 = vmatprep.subr.bf16.mxu0 0
  %1054 = vmatpush1.bf16.msra.mxu0 0
  %1055 = vmatprep.subr.bf16.mxu0 0
  %1056 = vmatpush1.bf16.msra.mxu0 0
  %1057 = vmatprep.subr.bf16.mxu0 0
  %1058 = vmatpush1.bf16.msra.mxu0 0
  %1059 = vmatprep.subr.bf16.mxu0 0
  %1060 = vmatpush1.bf16.msra.mxu0 %v1043
  %1061 = vmatprep.subr.bf16.mxu0 0
  %1062 = vmatpush2.bf16.msra.mxu0 0
  %1063 = vmatprep.subr.bf16.mxu0 0
  %1064 = vmatpush2.bf16.msra.mxu0 0
  %1065 = vmatprep.subr.bf16.mxu0 0
  %1066 = vmatpush2.bf16.msra.mxu0 0
  %1067 = vmatprep.subr.bf16.mxu0 0
  %1068 = vmatpush2.bf16.msra.mxu0 0
  %1069 = vmatprep.subr.bf16.mxu0 0
  %1070 = vmatpush2.bf16.msra.mxu0 0
  %1071 = vmatprep.subr.bf16.mxu0 0
  %1072 = vmatpush2.bf16.msra.mxu0 0
  %1073 = vmatprep.subr.bf16.mxu0 0
  %1074 = vmatpush2.bf16.msra.mxu0 0
  %1075 = vmatprep.subr.bf16.mxu0 0
  %1076 = vmatpush2.bf16.msra.mxu0 0
  %1077 = vmatprep.mubr.bf16.mxu0 0
  %1078 = vmatmul.mubr.bf16.gmra.mxu0 %v1040
  %v1079 = vpop.f32.mrf.mxu0
  %v1080 = vadd.f32 0.0, %v1079
  %v1081 = vpop.f32.mrf.mxu0
  %v1082 = vpop.f32.mrf.mxu0
  %v1083 = vpop.f32.mrf.mxu0
  %1084 = vdwg.mxu0
  %1085 = vrot.lane.b32.xlu0 %v406, 64
  %v1086 = vpop.permute.xlu0 %1085
  %v1088 = vsel %vm795, %v888, 0
  %v1091 = vsel %vm897, %v1086, 0
  %1093 = vmatprep.subr.bf16.mxu0 0
  %1094 = vmatpush1.bf16.msra.mxu0 0
  %1095 = vmatprep.subr.bf16.mxu0 0
  %1096 = vmatpush1.bf16.msra.mxu0 0
  %1097 = vmatprep.subr.bf16.mxu0 0
  %1098 = vmatpush1.bf16.msra.mxu0 0
  %1099 = vmatprep.subr.bf16.mxu0 0
  %1100 = vmatpush1.bf16.msra.mxu0 0
  %1101 = vmatprep.subr.bf16.mxu0 0
  %1102 = vmatpush1.bf16.msra.mxu0 0
  %1103 = vmatprep.subr.bf16.mxu0 0
  %1104 = vmatpush1.bf16.msra.mxu0 0
  %1105 = vmatprep.subr.bf16.mxu0 0
  %1106 = vmatpush1.bf16.msra.mxu0 0
  %1107 = vmatprep.subr.bf16.mxu0 0
  %1108 = vmatpush1.bf16.msra.mxu0 %v1091
  %1109 = vmatprep.subr.bf16.mxu0 0
  %1110 = vmatpush2.bf16.msra.mxu0 0
  %1111 = vmatprep.subr.bf16.mxu0 0
  %1112 = vmatpush2.bf16.msra.mxu0 0
  %1113 = vmatprep.subr.bf16.mxu0 0
  %1114 = vmatpush2.bf16.msra.mxu0 0
  %1115 = vmatprep.subr.bf16.mxu0 0
  %1116 = vmatpush2.bf16.msra.mxu0 0
  %1117 = vmatprep.subr.bf16.mxu0 0
  %1118 = vmatpush2.bf16.msra.mxu0 0
  %1119 = vmatprep.subr.bf16.mxu0 0
  %1120 = vmatpush2.bf16.msra.mxu0 0
  %1121 = vmatprep.subr.bf16.mxu0 0
  %1122 = vmatpush2.bf16.msra.mxu0 0
  %1123 = vmatprep.subr.bf16.mxu0 0
  %1124 = vmatpush2.bf16.msra.mxu0 0
  %1125 = vmatprep.mubr.bf16.mxu0 0
  %1126 = vmatmul.mubr.bf16.gmra.mxu0 %v1088
  %v1127 = vpop.f32.mrf.mxu0
  %v1128 = vadd.f32 0.0, %v1127
  %v1129 = vpop.f32.mrf.mxu0
  %v1130 = vpop.f32.mrf.mxu0
  %v1131 = vpop.f32.mrf.mxu0
  %1132 = vdwg.mxu0
  %1133 = vrot.lane.b32.xlu0 %v407, 64
  %v1134 = vpop.permute.xlu0 %1133
  %v1136 = vsel %vm795, %v889, 0
  %v1139 = vsel %vm897, %v1134, 0
  %1141 = vmatprep.subr.bf16.mxu0 0
  %1142 = vmatpush1.bf16.msra.mxu0 0
  %1143 = vmatprep.subr.bf16.mxu0 0
  %1144 = vmatpush1.bf16.msra.mxu0 0
  %1145 = vmatprep.subr.bf16.mxu0 0
  %1146 = vmatpush1.bf16.msra.mxu0 0
  %1147 = vmatprep.subr.bf16.mxu0 0
  %1148 = vmatpush1.bf16.msra.mxu0 0
  %1149 = vmatprep.subr.bf16.mxu0 0
  %1150 = vmatpush1.bf16.msra.mxu0 0
  %1151 = vmatprep.subr.bf16.mxu0 0
  %1152 = vmatpush1.bf16.msra.mxu0 0
  %1153 = vmatprep.subr.bf16.mxu0 0
  %1154 = vmatpush1.bf16.msra.mxu0 0
  %1155 = vmatprep.subr.bf16.mxu0 0
  %1156 = vmatpush1.bf16.msra.mxu0 %v1139
  %1157 = vmatprep.subr.bf16.mxu0 0
  %1158 = vmatpush2.bf16.msra.mxu0 0
  %1159 = vmatprep.subr.bf16.mxu0 0
  %1160 = vmatpush2.bf16.msra.mxu0 0
  %1161 = vmatprep.subr.bf16.mxu0 0
  %1162 = vmatpush2.bf16.msra.mxu0 0
  %1163 = vmatprep.subr.bf16.mxu0 0
  %1164 = vmatpush2.bf16.msra.mxu0 0
  %1165 = vmatprep.subr.bf16.mxu0 0
  %1166 = vmatpush2.bf16.msra.mxu0 0
  %1167 = vmatprep.subr.bf16.mxu0 0
  %1168 = vmatpush2.bf16.msra.mxu0 0
  %1169 = vmatprep.subr.bf16.mxu0 0
  %1170 = vmatpush2.bf16.msra.mxu0 0
  %1171 = vmatprep.subr.bf16.mxu0 0
  %1172 = vmatpush2.bf16.msra.mxu0 0
  %1173 = vmatprep.mubr.bf16.mxu0 0
  %1174 = vmatmul.mubr.bf16.gmra.mxu0 %v1136
  %v1175 = vpop.f32.mrf.mxu0
  %v1176 = vadd.f32 0.0, %v1175
  %v1177 = vpop.f32.mrf.mxu0
  %v1178 = vpop.f32.mrf.mxu0
  %v1179 = vpop.f32.mrf.mxu0
  %1180 = vdwg.mxu0
  %1181 = vrot.lane.b32.xlu0 %v408, 64
  %v1182 = vpop.permute.xlu0 %1181
  %v1184 = vsel %vm795, %v890, 0
  %v1187 = vsel %vm897, %v1182, 0
  %1189 = vmatprep.subr.bf16.mxu0 0
  %1190 = vmatpush1.bf16.msra.mxu0 0
  %1191 = vmatprep.subr.bf16.mxu0 0
  %1192 = vmatpush1.bf16.msra.mxu0 0
  %1193 = vmatprep.subr.bf16.mxu0 0
  %1194 = vmatpush1.bf16.msra.mxu0 0
  %1195 = vmatprep.subr.bf16.mxu0 0
  %1196 = vmatpush1.bf16.msra.mxu0 0
  %1197 = vmatprep.subr.bf16.mxu0 0
  %1198 = vmatpush1.bf16.msra.mxu0 0
  %1199 = vmatprep.subr.bf16.mxu0 0
  %1200 = vmatpush1.bf16.msra.mxu0 0
  %1201 = vmatprep.subr.bf16.mxu0 0
  %1202 = vmatpush1.bf16.msra.mxu0 0
  %1203 = vmatprep.subr.bf16.mxu0 0
  %1204 = vmatpush1.bf16.msra.mxu0 %v1187
  %1205 = vmatprep.subr.bf16.mxu0 0
  %1206 = vmatpush2.bf16.msra.mxu0 0
  %1207 = vmatprep.subr.bf16.mxu0 0
  %1208 = vmatpush2.bf16.msra.mxu0 0
  %1209 = vmatprep.subr.bf16.mxu0 0
  %1210 = vmatpush2.bf16.msra.mxu0 0
  %1211 = vmatprep.subr.bf16.mxu0 0
  %1212 = vmatpush2.bf16.msra.mxu0 0
  %1213 = vmatprep.subr.bf16.mxu0 0
  %1214 = vmatpush2.bf16.msra.mxu0 0
  %1215 = vmatprep.subr.bf16.mxu0 0
  %1216 = vmatpush2.bf16.msra.mxu0 0
  %1217 = vmatprep.subr.bf16.mxu0 0
  %1218 = vmatpush2.bf16.msra.mxu0 0
  %1219 = vmatprep.subr.bf16.mxu0 0
  %1220 = vmatpush2.bf16.msra.mxu0 0
  %1221 = vmatprep.mubr.bf16.mxu0 0
  %1222 = vmatmul.mubr.bf16.gmra.mxu0 %v1184
  %v1223 = vpop.f32.mrf.mxu0
  %v1224 = vadd.f32 0.0, %v1223
  %v1225 = vpop.f32.mrf.mxu0
  %v1226 = vpop.f32.mrf.mxu0
  %v1227 = vpop.f32.mrf.mxu0
  %1228 = vdwg.mxu0
  %1229 = vrot.lane.b32.xlu0 %v409, 64
  %v1230 = vpop.permute.xlu0 %1229
  %v1232 = vsel %vm795, %v891, 0
  %v1235 = vsel %vm897, %v1230, 0
  %1237 = vmatprep.subr.bf16.mxu0 0
  %1238 = vmatpush1.bf16.msra.mxu0 0
  %1239 = vmatprep.subr.bf16.mxu0 0
  %1240 = vmatpush1.bf16.msra.mxu0 0
  %1241 = vmatprep.subr.bf16.mxu0 0
  %1242 = vmatpush1.bf16.msra.mxu0 0
  %1243 = vmatprep.subr.bf16.mxu0 0
  %1244 = vmatpush1.bf16.msra.mxu0 0
  %1245 = vmatprep.subr.bf16.mxu0 0
  %1246 = vmatpush1.bf16.msra.mxu0 0
  %1247 = vmatprep.subr.bf16.mxu0 0
  %1248 = vmatpush1.bf16.msra.mxu0 0
  %1249 = vmatprep.subr.bf16.mxu0 0
  %1250 = vmatpush1.bf16.msra.mxu0 0
  %1251 = vmatprep.subr.bf16.mxu0 0
  %1252 = vmatpush1.bf16.msra.mxu0 %v1235
  %1253 = vmatprep.subr.bf16.mxu0 0
  %1254 = vmatpush2.bf16.msra.mxu0 0
  %1255 = vmatprep.subr.bf16.mxu0 0
  %1256 = vmatpush2.bf16.msra.mxu0 0
  %1257 = vmatprep.subr.bf16.mxu0 0
  %1258 = vmatpush2.bf16.msra.mxu0 0
  %1259 = vmatprep.subr.bf16.mxu0 0
  %1260 = vmatpush2.bf16.msra.mxu0 0
  %1261 = vmatprep.subr.bf16.mxu0 0
  %1262 = vmatpush2.bf16.msra.mxu0 0
  %1263 = vmatprep.subr.bf16.mxu0 0
  %1264 = vmatpush2.bf16.msra.mxu0 0
  %1265 = vmatprep.subr.bf16.mxu0 0
  %1266 = vmatpush2.bf16.msra.mxu0 0
  %1267 = vmatprep.subr.bf16.mxu0 0
  %1268 = vmatpush2.bf16.msra.mxu0 0
  %1269 = vmatprep.mubr.bf16.mxu0 0
  %1270 = vmatmul.mubr.bf16.gmra.mxu0 %v1232
  %v1271 = vpop.f32.mrf.mxu0
  %v1272 = vadd.f32 0.0, %v1271
  %v1273 = vpop.f32.mrf.mxu0
  %v1274 = vpop.f32.mrf.mxu0
  %v1275 = vpop.f32.mrf.mxu0
  %1276 = vdwg.mxu0
  %v1277 = vpack.c.bf16 %v984, %v936
  %v1278 = vpack.c.bf16 %v1080, %v1032
  %v1279 = vpack.c.bf16 %v1176, %v1128
  %v1280 = vpack.c.bf16 %v1272, %v1224
  %v1281 = vld [vmem:[%s6] sm:$0xf]
  %v1282 = vld [vmem:[%s6 + $0x4] sm:$0xf]
  %1283 = vrot.lane.b32.xlu0 %v402, 112
  %v1284 = vpop.permute.xlu0 %1283
  %1285 = vrot.lane.b32.xlu0 %v402, 80
  %v1286 = vpop.permute.xlu0 %1285
  %v1288 = vsel %vm412, %v1284, 0
  %v1291 = vsel %vm412, %v1286, 0
  %1293 = vmatprep.subr.bf16.mxu0 0
  %1294 = vmatpush1.bf16.xpose.msra.mxu0 0
  %1295 = vmatprep.subr.bf16.mxu0 0
  %1296 = vmatpush1.bf16.xpose.msra.mxu0 0
  %1297 = vmatprep.subr.bf16.mxu0 0
  %1298 = vmatpush1.bf16.xpose.msra.mxu0 0
  %1299 = vmatprep.subr.bf16.mxu0 0
  %1300 = vmatpush1.bf16.xpose.msra.mxu0 0
  %1301 = vmatprep.subr.bf16.mxu0 0
  %1302 = vmatpush1.bf16.xpose.msra.mxu0 0
  %1303 = vmatprep.subr.bf16.mxu0 0
  %1304 = vmatpush1.bf16.xpose.msra.mxu0 0
  %1305 = vmatprep.subr.bf16.mxu0 0
  %1306 = vmatpush1.bf16.xpose.msra.mxu0 0
  %1307 = vmatprep.subr.bf16.mxu0 0
  %1308 = vmatpush1.bf16.xpose.msra.mxu0 %v1291
  %1309 = vmatprep.subr.bf16.mxu0 0
  %1310 = vmatpush2.bf16.xpose.msra.mxu0 0
  %1311 = vmatprep.subr.bf16.mxu0 0
  %1312 = vmatpush2.bf16.xpose.msra.mxu0 0
  %1313 = vmatprep.subr.bf16.mxu0 0
  %1314 = vmatpush2.bf16.xpose.msra.mxu0 0
  %1315 = vmatprep.subr.bf16.mxu0 0
  %1316 = vmatpush2.bf16.xpose.msra.mxu0 0
  %1317 = vmatprep.subr.bf16.mxu0 0
  %1318 = vmatpush2.bf16.xpose.msra.mxu0 0
  %1319 = vmatprep.subr.bf16.mxu0 0
  %1320 = vmatpush2.bf16.xpose.msra.mxu0 0
  %1321 = vmatprep.subr.bf16.mxu0 0
  %1322 = vmatpush2.bf16.xpose.msra.mxu0 0
  %1323 = vmatprep.subr.bf16.mxu0 0
  %1324 = vmatpush2.bf16.xpose.msra.mxu0 0
  %1325 = vmatprep.mubr.bf16.mxu0 0
  %1326 = vmatmul.mubr.bf16.gmra.mxu0 %v1288
  %v1327 = vpop.f32.mrf.mxu0
  %v1328 = vadd.f32 %v353, %v1327
  %v1329 = vpop.f32.mrf.mxu0
  %v1330 = vpop.f32.mrf.mxu0
  %v1331 = vpop.f32.mrf.mxu0
  %1332 = vdwg.mxu0
  %1333 = vrot.lane.b32.xlu0 %v403, 112
  %v1334 = vpop.permute.xlu0 %1333
  %1335 = vrot.lane.b32.xlu0 %v403, 80
  %v1336 = vpop.permute.xlu0 %1335
  %v1338 = vsel %vm412, %v1334, 0
  %v1341 = vsel %vm412, %v1336, 0
  %1343 = vmatprep.subr.bf16.mxu0 0
  %1344 = vmatpush1.bf16.xpose.msra.mxu0 0
  %1345 = vmatprep.subr.bf16.mxu0 0
  %1346 = vmatpush1.bf16.xpose.msra.mxu0 0
  %1347 = vmatprep.subr.bf16.mxu0 0
  %1348 = vmatpush1.bf16.xpose.msra.mxu0 0
  %1349 = vmatprep.subr.bf16.mxu0 0
  %1350 = vmatpush1.bf16.xpose.msra.mxu0 0
  %1351 = vmatprep.subr.bf16.mxu0 0
  %1352 = vmatpush1.bf16.xpose.msra.mxu0 0
  %1353 = vmatprep.subr.bf16.mxu0 0
  %1354 = vmatpush1.bf16.xpose.msra.mxu0 0
  %1355 = vmatprep.subr.bf16.mxu0 0
  %1356 = vmatpush1.bf16.xpose.msra.mxu0 0
  %1357 = vmatprep.subr.bf16.mxu0 0
  %1358 = vmatpush1.bf16.xpose.msra.mxu0 %v1341
  %1359 = vmatprep.subr.bf16.mxu0 0
  %1360 = vmatpush2.bf16.xpose.msra.mxu0 0
  %1361 = vmatprep.subr.bf16.mxu0 0
  %1362 = vmatpush2.bf16.xpose.msra.mxu0 0
  %1363 = vmatprep.subr.bf16.mxu0 0
  %1364 = vmatpush2.bf16.xpose.msra.mxu0 0
  %1365 = vmatprep.subr.bf16.mxu0 0
  %1366 = vmatpush2.bf16.xpose.msra.mxu0 0
  %1367 = vmatprep.subr.bf16.mxu0 0
  %1368 = vmatpush2.bf16.xpose.msra.mxu0 0
  %1369 = vmatprep.subr.bf16.mxu0 0
  %1370 = vmatpush2.bf16.xpose.msra.mxu0 0
  %1371 = vmatprep.subr.bf16.mxu0 0
  %1372 = vmatpush2.bf16.xpose.msra.mxu0 0
  %1373 = vmatprep.subr.bf16.mxu0 0
  %1374 = vmatpush2.bf16.xpose.msra.mxu0 0
  %1375 = vmatprep.mubr.bf16.mxu0 0
  %1376 = vmatmul.mubr.bf16.gmra.mxu0 %v1338
  %v1377 = vpop.f32.mrf.mxu0
  %v1378 = vadd.f32 %v357, %v1377
  %v1379 = vpop.f32.mrf.mxu0
  %v1380 = vpop.f32.mrf.mxu0
  %v1381 = vpop.f32.mrf.mxu0
  %1382 = vdwg.mxu0
  %1383 = vrot.lane.b32.xlu0 %v404, 112
  %v1384 = vpop.permute.xlu0 %1383
  %1385 = vrot.lane.b32.xlu0 %v404, 80
  %v1386 = vpop.permute.xlu0 %1385
  %v1388 = vsel %vm412, %v1384, 0
  %v1391 = vsel %vm412, %v1386, 0
  %1393 = vmatprep.subr.bf16.mxu0 0
  %1394 = vmatpush1.bf16.xpose.msra.mxu0 0
  %1395 = vmatprep.subr.bf16.mxu0 0
  %1396 = vmatpush1.bf16.xpose.msra.mxu0 0
  %1397 = vmatprep.subr.bf16.mxu0 0
  %1398 = vmatpush1.bf16.xpose.msra.mxu0 0
  %1399 = vmatprep.subr.bf16.mxu0 0
  %1400 = vmatpush1.bf16.xpose.msra.mxu0 0
  %1401 = vmatprep.subr.bf16.mxu0 0
  %1402 = vmatpush1.bf16.xpose.msra.mxu0 0
  %1403 = vmatprep.subr.bf16.mxu0 0
  %1404 = vmatpush1.bf16.xpose.msra.mxu0 0
  %1405 = vmatprep.subr.bf16.mxu0 0
  %1406 = vmatpush1.bf16.xpose.msra.mxu0 0
  %1407 = vmatprep.subr.bf16.mxu0 0
  %1408 = vmatpush1.bf16.xpose.msra.mxu0 %v1391
  %1409 = vmatprep.subr.bf16.mxu0 0
  %1410 = vmatpush2.bf16.xpose.msra.mxu0 0
  %1411 = vmatprep.subr.bf16.mxu0 0
  %1412 = vmatpush2.bf16.xpose.msra.mxu0 0
  %1413 = vmatprep.subr.bf16.mxu0 0
  %1414 = vmatpush2.bf16.xpose.msra.mxu0 0
  %1415 = vmatprep.subr.bf16.mxu0 0
  %1416 = vmatpush2.bf16.xpose.msra.mxu0 0
  %1417 = vmatprep.subr.bf16.mxu0 0
  %1418 = vmatpush2.bf16.xpose.msra.mxu0 0
  %1419 = vmatprep.subr.bf16.mxu0 0
  %1420 = vmatpush2.bf16.xpose.msra.mxu0 0
  %1421 = vmatprep.subr.bf16.mxu0 0
  %1422 = vmatpush2.bf16.xpose.msra.mxu0 0
  %1423 = vmatprep.subr.bf16.mxu0 0
  %1424 = vmatpush2.bf16.xpose.msra.mxu0 0
  %1425 = vmatprep.mubr.bf16.mxu0 0
  %1426 = vmatmul.mubr.bf16.gmra.mxu0 %v1388
  %v1427 = vpop.f32.mrf.mxu0
  %v1428 = vadd.f32 %v361, %v1427
  %v1429 = vpop.f32.mrf.mxu0
  %v1430 = vpop.f32.mrf.mxu0
  %v1431 = vpop.f32.mrf.mxu0
  %1432 = vdwg.mxu0
  %1433 = vrot.lane.b32.xlu0 %v405, 112
  %v1434 = vpop.permute.xlu0 %1433
  %1435 = vrot.lane.b32.xlu0 %v405, 80
  %v1436 = vpop.permute.xlu0 %1435
  %v1438 = vsel %vm412, %v1434, 0
  %v1441 = vsel %vm412, %v1436, 0
  %1443 = vmatprep.subr.bf16.mxu0 0
  %1444 = vmatpush1.bf16.xpose.msra.mxu0 0
  %1445 = vmatprep.subr.bf16.mxu0 0
  %1446 = vmatpush1.bf16.xpose.msra.mxu0 0
  %1447 = vmatprep.subr.bf16.mxu0 0
  %1448 = vmatpush1.bf16.xpose.msra.mxu0 0
  %1449 = vmatprep.subr.bf16.mxu0 0
  %1450 = vmatpush1.bf16.xpose.msra.mxu0 0
  %1451 = vmatprep.subr.bf16.mxu0 0
  %1452 = vmatpush1.bf16.xpose.msra.mxu0 0
  %1453 = vmatprep.subr.bf16.mxu0 0
  %1454 = vmatpush1.bf16.xpose.msra.mxu0 0
  %1455 = vmatprep.subr.bf16.mxu0 0
  %1456 = vmatpush1.bf16.xpose.msra.mxu0 0
  %1457 = vmatprep.subr.bf16.mxu0 0
  %1458 = vmatpush1.bf16.xpose.msra.mxu0 %v1441
  %1459 = vmatprep.subr.bf16.mxu0 0
  %1460 = vmatpush2.bf16.xpose.msra.mxu0 0
  %1461 = vmatprep.subr.bf16.mxu0 0
  %1462 = vmatpush2.bf16.xpose.msra.mxu0 0
  %1463 = vmatprep.subr.bf16.mxu0 0
  %1464 = vmatpush2.bf16.xpose.msra.mxu0 0
  %1465 = vmatprep.subr.bf16.mxu0 0
  %1466 = vmatpush2.bf16.xpose.msra.mxu0 0
  %1467 = vmatprep.subr.bf16.mxu0 0
  %1468 = vmatpush2.bf16.xpose.msra.mxu0 0
  %1469 = vmatprep.subr.bf16.mxu0 0
  %1470 = vmatpush2.bf16.xpose.msra.mxu0 0
  %1471 = vmatprep.subr.bf16.mxu0 0
  %1472 = vmatpush2.bf16.xpose.msra.mxu0 0
  %1473 = vmatprep.subr.bf16.mxu0 0
  %1474 = vmatpush2.bf16.xpose.msra.mxu0 0
  %1475 = vmatprep.mubr.bf16.mxu0 0
  %1476 = vmatmul.mubr.bf16.gmra.mxu0 %v1438
  %v1477 = vpop.f32.mrf.mxu0
  %v1478 = vadd.f32 %v365, %v1477
  %v1479 = vpop.f32.mrf.mxu0
  %v1480 = vpop.f32.mrf.mxu0
  %v1481 = vpop.f32.mrf.mxu0
  %1482 = vdwg.mxu0
  %1483 = vrot.lane.b32.xlu0 %v406, 112
  %v1484 = vpop.permute.xlu0 %1483
  %1485 = vrot.lane.b32.xlu0 %v406, 80
  %v1486 = vpop.permute.xlu0 %1485
  %v1488 = vsel %vm412, %v1484, 0
  %v1491 = vsel %vm412, %v1486, 0
  %1493 = vmatprep.subr.bf16.mxu0 0
  %1494 = vmatpush1.bf16.xpose.msra.mxu0 0
  %1495 = vmatprep.subr.bf16.mxu0 0
  %1496 = vmatpush1.bf16.xpose.msra.mxu0 0
  %1497 = vmatprep.subr.bf16.mxu0 0
  %1498 = vmatpush1.bf16.xpose.msra.mxu0 0
  %1499 = vmatprep.subr.bf16.mxu0 0
  %1500 = vmatpush1.bf16.xpose.msra.mxu0 0
  %1501 = vmatprep.subr.bf16.mxu0 0
  %1502 = vmatpush1.bf16.xpose.msra.mxu0 0
  %1503 = vmatprep.subr.bf16.mxu0 0
  %1504 = vmatpush1.bf16.xpose.msra.mxu0 0
  %1505 = vmatprep.subr.bf16.mxu0 0
  %1506 = vmatpush1.bf16.xpose.msra.mxu0 0
  %1507 = vmatprep.subr.bf16.mxu0 0
  %1508 = vmatpush1.bf16.xpose.msra.mxu0 %v1491
  %1509 = vmatprep.subr.bf16.mxu0 0
  %1510 = vmatpush2.bf16.xpose.msra.mxu0 0
  %1511 = vmatprep.subr.bf16.mxu0 0
  %1512 = vmatpush2.bf16.xpose.msra.mxu0 0
  %1513 = vmatprep.subr.bf16.mxu0 0
  %1514 = vmatpush2.bf16.xpose.msra.mxu0 0
  %1515 = vmatprep.subr.bf16.mxu0 0
  %1516 = vmatpush2.bf16.xpose.msra.mxu0 0
  %1517 = vmatprep.subr.bf16.mxu0 0
  %1518 = vmatpush2.bf16.xpose.msra.mxu0 0
  %1519 = vmatprep.subr.bf16.mxu0 0
  %1520 = vmatpush2.bf16.xpose.msra.mxu0 0
  %1521 = vmatprep.subr.bf16.mxu0 0
  %1522 = vmatpush2.bf16.xpose.msra.mxu0 0
  %1523 = vmatprep.subr.bf16.mxu0 0
  %1524 = vmatpush2.bf16.xpose.msra.mxu0 0
  %1525 = vmatprep.mubr.bf16.mxu0 0
  %1526 = vmatmul.mubr.bf16.gmra.mxu0 %v1488
  %v1527 = vpop.f32.mrf.mxu0
  %v1528 = vadd.f32 %v369, %v1527
  %v1529 = vpop.f32.mrf.mxu0
  %v1530 = vpop.f32.mrf.mxu0
  %v1531 = vpop.f32.mrf.mxu0
  %1532 = vdwg.mxu0
  %1533 = vrot.lane.b32.xlu0 %v407, 112
  %v1534 = vpop.permute.xlu0 %1533
  %1535 = vrot.lane.b32.xlu0 %v407, 80
  %v1536 = vpop.permute.xlu0 %1535
  %v1538 = vsel %vm412, %v1534, 0
  %v1541 = vsel %vm412, %v1536, 0
  %1543 = vmatprep.subr.bf16.mxu0 0
  %1544 = vmatpush1.bf16.xpose.msra.mxu0 0
  %1545 = vmatprep.subr.bf16.mxu0 0
  %1546 = vmatpush1.bf16.xpose.msra.mxu0 0
  %1547 = vmatprep.subr.bf16.mxu0 0
  %1548 = vmatpush1.bf16.xpose.msra.mxu0 0
  %1549 = vmatprep.subr.bf16.mxu0 0
  %1550 = vmatpush1.bf16.xpose.msra.mxu0 0
  %1551 = vmatprep.subr.bf16.mxu0 0
  %1552 = vmatpush1.bf16.xpose.msra.mxu0 0
  %1553 = vmatprep.subr.bf16.mxu0 0
  %1554 = vmatpush1.bf16.xpose.msra.mxu0 0
  %1555 = vmatprep.subr.bf16.mxu0 0
  %1556 = vmatpush1.bf16.xpose.msra.mxu0 0
  %1557 = vmatprep.subr.bf16.mxu0 0
  %1558 = vmatpush1.bf16.xpose.msra.mxu0 %v1541
  %1559 = vmatprep.subr.bf16.mxu0 0
  %1560 = vmatpush2.bf16.xpose.msra.mxu0 0
  %1561 = vmatprep.subr.bf16.mxu0 0
  %1562 = vmatpush2.bf16.xpose.msra.mxu0 0
  %1563 = vmatprep.subr.bf16.mxu0 0
  %1564 = vmatpush2.bf16.xpose.msra.mxu0 0
  %1565 = vmatprep.subr.bf16.mxu0 0
  %1566 = vmatpush2.bf16.xpose.msra.mxu0 0
  %1567 = vmatprep.subr.bf16.mxu0 0
  %1568 = vmatpush2.bf16.xpose.msra.mxu0 0
  %1569 = vmatprep.subr.bf16.mxu0 0
  %1570 = vmatpush2.bf16.xpose.msra.mxu0 0
  %1571 = vmatprep.subr.bf16.mxu0 0
  %1572 = vmatpush2.bf16.xpose.msra.mxu0 0
  %1573 = vmatprep.subr.bf16.mxu0 0
  %1574 = vmatpush2.bf16.xpose.msra.mxu0 0
  %1575 = vmatprep.mubr.bf16.mxu0 0
  %1576 = vmatmul.mubr.bf16.gmra.mxu0 %v1538
  %v1577 = vpop.f32.mrf.mxu0
  %v1578 = vadd.f32 %v373, %v1577
  %v1579 = vpop.f32.mrf.mxu0
  %v1580 = vpop.f32.mrf.mxu0
  %v1581 = vpop.f32.mrf.mxu0
  %1582 = vdwg.mxu0
  %1583 = vrot.lane.b32.xlu0 %v408, 112
  %v1584 = vpop.permute.xlu0 %1583
  %1585 = vrot.lane.b32.xlu0 %v408, 80
  %v1586 = vpop.permute.xlu0 %1585
  %v1588 = vsel %vm412, %v1584, 0
  %v1591 = vsel %vm412, %v1586, 0
  %1593 = vmatprep.subr.bf16.mxu0 0
  %1594 = vmatpush1.bf16.xpose.msra.mxu0 0
  %1595 = vmatprep.subr.bf16.mxu0 0
  %1596 = vmatpush1.bf16.xpose.msra.mxu0 0
  %1597 = vmatprep.subr.bf16.mxu0 0
  %1598 = vmatpush1.bf16.xpose.msra.mxu0 0
  %1599 = vmatprep.subr.bf16.mxu0 0
  %1600 = vmatpush1.bf16.xpose.msra.mxu0 0
  %1601 = vmatprep.subr.bf16.mxu0 0
  %1602 = vmatpush1.bf16.xpose.msra.mxu0 0
  %1603 = vmatprep.subr.bf16.mxu0 0
  %1604 = vmatpush1.bf16.xpose.msra.mxu0 0
  %1605 = vmatprep.subr.bf16.mxu0 0
  %1606 = vmatpush1.bf16.xpose.msra.mxu0 0
  %1607 = vmatprep.subr.bf16.mxu0 0
  %1608 = vmatpush1.bf16.xpose.msra.mxu0 %v1591
  %1609 = vmatprep.subr.bf16.mxu0 0
  %1610 = vmatpush2.bf16.xpose.msra.mxu0 0
  %1611 = vmatprep.subr.bf16.mxu0 0
  %1612 = vmatpush2.bf16.xpose.msra.mxu0 0
  %1613 = vmatprep.subr.bf16.mxu0 0
  %1614 = vmatpush2.bf16.xpose.msra.mxu0 0
  %1615 = vmatprep.subr.bf16.mxu0 0
  %1616 = vmatpush2.bf16.xpose.msra.mxu0 0
  %1617 = vmatprep.subr.bf16.mxu0 0
  %1618 = vmatpush2.bf16.xpose.msra.mxu0 0
  %1619 = vmatprep.subr.bf16.mxu0 0
  %1620 = vmatpush2.bf16.xpose.msra.mxu0 0
  %1621 = vmatprep.subr.bf16.mxu0 0
  %1622 = vmatpush2.bf16.xpose.msra.mxu0 0
  %1623 = vmatprep.subr.bf16.mxu0 0
  %1624 = vmatpush2.bf16.xpose.msra.mxu0 0
  %1625 = vmatprep.mubr.bf16.mxu0 0
  %1626 = vmatmul.mubr.bf16.gmra.mxu0 %v1588
  %v1627 = vpop.f32.mrf.mxu0
  %v1628 = vadd.f32 %v377, %v1627
  %v1629 = vpop.f32.mrf.mxu0
  %v1630 = vpop.f32.mrf.mxu0
  %v1631 = vpop.f32.mrf.mxu0
  %1632 = vdwg.mxu0
  %1633 = vrot.lane.b32.xlu0 %v409, 112
  %v1634 = vpop.permute.xlu0 %1633
  %1635 = vrot.lane.b32.xlu0 %v409, 80
  %v1636 = vpop.permute.xlu0 %1635
  %v1638 = vsel %vm412, %v1634, 0
  %v1641 = vsel %vm412, %v1636, 0
  %1643 = vmatprep.subr.bf16.mxu0 0
  %1644 = vmatpush1.bf16.xpose.msra.mxu0 0
  %1645 = vmatprep.subr.bf16.mxu0 0
  %1646 = vmatpush1.bf16.xpose.msra.mxu0 0
  %1647 = vmatprep.subr.bf16.mxu0 0
  %1648 = vmatpush1.bf16.xpose.msra.mxu0 0
  %1649 = vmatprep.subr.bf16.mxu0 0
  %1650 = vmatpush1.bf16.xpose.msra.mxu0 0
  %1651 = vmatprep.subr.bf16.mxu0 0
  %1652 = vmatpush1.bf16.xpose.msra.mxu0 0
  %1653 = vmatprep.subr.bf16.mxu0 0
  %1654 = vmatpush1.bf16.xpose.msra.mxu0 0
  %1655 = vmatprep.subr.bf16.mxu0 0
  %1656 = vmatpush1.bf16.xpose.msra.mxu0 0
  %1657 = vmatprep.subr.bf16.mxu0 0
  %1658 = vmatpush1.bf16.xpose.msra.mxu0 %v1641
  %1659 = vmatprep.subr.bf16.mxu0 0
  %1660 = vmatpush2.bf16.xpose.msra.mxu0 0
  %1661 = vmatprep.subr.bf16.mxu0 0
  %1662 = vmatpush2.bf16.xpose.msra.mxu0 0
  %1663 = vmatprep.subr.bf16.mxu0 0
  %1664 = vmatpush2.bf16.xpose.msra.mxu0 0
  %1665 = vmatprep.subr.bf16.mxu0 0
  %1666 = vmatpush2.bf16.xpose.msra.mxu0 0
  %1667 = vmatprep.subr.bf16.mxu0 0
  %1668 = vmatpush2.bf16.xpose.msra.mxu0 0
  %1669 = vmatprep.subr.bf16.mxu0 0
  %1670 = vmatpush2.bf16.xpose.msra.mxu0 0
  %1671 = vmatprep.subr.bf16.mxu0 0
  %1672 = vmatpush2.bf16.xpose.msra.mxu0 0
  %1673 = vmatprep.subr.bf16.mxu0 0
  %1674 = vmatpush2.bf16.xpose.msra.mxu0 0
  %1675 = vmatprep.mubr.bf16.mxu0 0
  %1676 = vmatmul.mubr.bf16.gmra.mxu0 %v1638
  %v1677 = vpop.f32.mrf.mxu0
  %v1678 = vadd.f32 %v381, %v1677
  %v1679 = vpop.f32.mrf.mxu0
  %v1680 = vpop.f32.mrf.mxu0
  %v1681 = vpop.f32.mrf.mxu0
  %1682 = vdwg.mxu0
  %v1683 = vsel %vm795, %v1328, -inf
  %1684 = vmax.xlane.f32.xlu0 %v1683
  %v1685 = vpop.xlane.xlu0 %1684
  %v1686 = vsel %vm795, %v1378, -inf
  %1687 = vmax.xlane.f32.xlu0 %v1686
  %v1688 = vpop.xlane.xlu0 %1687
  %v1689 = vsel %vm795, %v1428, -inf
  %1690 = vmax.xlane.f32.xlu0 %v1689
  %v1691 = vpop.xlane.xlu0 %1690
  %v1692 = vsel %vm795, %v1478, -inf
  %1693 = vmax.xlane.f32.xlu0 %v1692
  %v1694 = vpop.xlane.xlu0 %1693
  %v1695 = vsel %vm795, %v1528, -inf
  %1696 = vmax.xlane.f32.xlu0 %v1695
  %v1697 = vpop.xlane.xlu0 %1696
  %v1698 = vsel %vm795, %v1578, -inf
  %1699 = vmax.xlane.f32.xlu0 %v1698
  %v1700 = vpop.xlane.xlu0 %1699
  %v1701 = vsel %vm795, %v1628, -inf
  %1702 = vmax.xlane.f32.xlu0 %v1701
  %v1703 = vpop.xlane.xlu0 %1702
  %v1704 = vsel %vm795, %v1678, -inf
  %1705 = vmax.xlane.f32.xlu0 %v1704
  %v1706 = vpop.xlane.xlu0 %1705
  %v1707 = vsub.f32 %v1328, %v1685
  %v1708 = vsub.f32 %v1378, %v1688
  %v1709 = vsub.f32 %v1428, %v1691
  %v1710 = vsub.f32 %v1478, %v1694
  %v1711 = vsub.f32 %v1528, %v1697
  %v1712 = vsub.f32 %v1578, %v1700
  %v1713 = vsub.f32 %v1628, %v1703
  %v1714 = vsub.f32 %v1678, %v1706
  %v1715 = vmul.f32 %v1707, 1.442695
  %v1716 = vpow.pop %v1715
  %v1717 = vmul.f32 %v1708, 1.442695
  %v1718 = vpow.pop %v1717
  %v1719 = vmul.f32 %v1709, 1.442695
  %v1720 = vpow.pop %v1719
  %v1721 = vmul.f32 %v1710, 1.442695
  %v1722 = vpow.pop %v1721
  %v1723 = vmul.f32 %v1711, 1.442695
  %v1724 = vpow.pop %v1723
  %v1725 = vmul.f32 %v1712, 1.442695
  %v1726 = vpow.pop %v1725
  %v1727 = vmul.f32 %v1713, 1.442695
  %v1728 = vpow.pop %v1727
  %v1729 = vmul.f32 %v1714, 1.442695
  %v1730 = vpow.pop %v1729
  %v1731 = vsel %vm795, %v1716, 0.0
  %1732 = vadd.xlane.f32.xlu0 %v1731
  %v1733 = vpop.xlane.xlu0 %1732
  %v1734 = vsel %vm795, %v1718, 0.0
  %1735 = vadd.xlane.f32.xlu0 %v1734
  %v1736 = vpop.xlane.xlu0 %1735
  %v1737 = vsel %vm795, %v1720, 0.0
  %1738 = vadd.xlane.f32.xlu0 %v1737
  %v1739 = vpop.xlane.xlu0 %1738
  %v1740 = vsel %vm795, %v1722, 0.0
  %1741 = vadd.xlane.f32.xlu0 %v1740
  %v1742 = vpop.xlane.xlu0 %1741
  %v1743 = vsel %vm795, %v1724, 0.0
  %1744 = vadd.xlane.f32.xlu0 %v1743
  %v1745 = vpop.xlane.xlu0 %1744
  %v1746 = vsel %vm795, %v1726, 0.0
  %1747 = vadd.xlane.f32.xlu0 %v1746
  %v1748 = vpop.xlane.xlu0 %1747
  %v1749 = vsel %vm795, %v1728, 0.0
  %1750 = vadd.xlane.f32.xlu0 %v1749
  %v1751 = vpop.xlane.xlu0 %1750
  %v1752 = vsel %vm795, %v1730, 0.0
  %1753 = vadd.xlane.f32.xlu0 %v1752
  %v1754 = vpop.xlane.xlu0 %1753
  %v1755 = vrcp.pop %v1733
  %v1756 = vrcp.pop %v1736
  %v1757 = vrcp.pop %v1739
  %v1758 = vrcp.pop %v1742
  %v1759 = vrcp.pop %v1745
  %v1760 = vrcp.pop %v1748
  %v1761 = vrcp.pop %v1751
  %v1762 = vrcp.pop %v1754
  %v1763 = vmul.f32 %v1716, %v1755
  %v1764 = vmul.f32 %v1718, %v1756
  %v1765 = vmul.f32 %v1720, %v1757
  %v1766 = vmul.f32 %v1722, %v1758
  %v1767 = vmul.f32 %v1724, %v1759
  %v1768 = vmul.f32 %v1726, %v1760
  %v1769 = vmul.f32 %v1728, %v1761
  %v1770 = vmul.f32 %v1730, %v1762
  %v1771 = vpack.c.bf16 %v1763, %v1763
  %v1772 = vpack.c.bf16 %v1764, %v1764
  %v1773 = vpack.c.bf16 %v1765, %v1765
  %v1774 = vpack.c.bf16 %v1766, %v1766
  %v1775 = vpack.c.bf16 %v1767, %v1767
  %v1776 = vpack.c.bf16 %v1768, %v1768
  %v1777 = vpack.c.bf16 %v1769, %v1769
  %v1778 = vpack.c.bf16 %v1770, %v1770
  %1779 = vrot.lane.b32.xlu0 %v402, 48
  %v1780 = vpop.permute.xlu0 %1779
  %v1782 = vsel %vm795, %v1771, 0
  %v1785 = vsel %vm897, %v1780, 0
  %1787 = vmatprep.subr.bf16.mxu0 0
  %1788 = vmatpush1.bf16.msra.mxu0 0
  %1789 = vmatprep.subr.bf16.mxu0 0
  %1790 = vmatpush1.bf16.msra.mxu0 0
  %1791 = vmatprep.subr.bf16.mxu0 0
  %1792 = vmatpush1.bf16.msra.mxu0 0
  %1793 = vmatprep.subr.bf16.mxu0 0
  %1794 = vmatpush1.bf16.msra.mxu0 0
  %1795 = vmatprep.subr.bf16.mxu0 0
  %1796 = vmatpush1.bf16.msra.mxu0 0
  %1797 = vmatprep.subr.bf16.mxu0 0
  %1798 = vmatpush1.bf16.msra.mxu0 0
  %1799 = vmatprep.subr.bf16.mxu0 0
  %1800 = vmatpush1.bf16.msra.mxu0 0
  %1801 = vmatprep.subr.bf16.mxu0 0
  %1802 = vmatpush1.bf16.msra.mxu0 %v1785
  %1803 = vmatprep.subr.bf16.mxu0 0
  %1804 = vmatpush2.bf16.msra.mxu0 0
  %1805 = vmatprep.subr.bf16.mxu0 0
  %1806 = vmatpush2.bf16.msra.mxu0 0
  %1807 = vmatprep.subr.bf16.mxu0 0
  %1808 = vmatpush2.bf16.msra.mxu0 0
  %1809 = vmatprep.subr.bf16.mxu0 0
  %1810 = vmatpush2.bf16.msra.mxu0 0
  %1811 = vmatprep.subr.bf16.mxu0 0
  %1812 = vmatpush2.bf16.msra.mxu0 0
  %1813 = vmatprep.subr.bf16.mxu0 0
  %1814 = vmatpush2.bf16.msra.mxu0 0
  %1815 = vmatprep.subr.bf16.mxu0 0
  %1816 = vmatpush2.bf16.msra.mxu0 0
  %1817 = vmatprep.subr.bf16.mxu0 0
  %1818 = vmatpush2.bf16.msra.mxu0 0
  %1819 = vmatprep.mubr.bf16.mxu0 0
  %1820 = vmatmul.mubr.bf16.gmra.mxu0 %v1782
  %v1821 = vpop.f32.mrf.mxu0
  %v1822 = vadd.f32 0.0, %v1821
  %v1823 = vpop.f32.mrf.mxu0
  %v1824 = vpop.f32.mrf.mxu0
  %v1825 = vpop.f32.mrf.mxu0
  %1826 = vdwg.mxu0
  %1827 = vrot.lane.b32.xlu0 %v403, 48
  %v1828 = vpop.permute.xlu0 %1827
  %v1830 = vsel %vm795, %v1772, 0
  %v1833 = vsel %vm897, %v1828, 0
  %1835 = vmatprep.subr.bf16.mxu0 0
  %1836 = vmatpush1.bf16.msra.mxu0 0
  %1837 = vmatprep.subr.bf16.mxu0 0
  %1838 = vmatpush1.bf16.msra.mxu0 0
  %1839 = vmatprep.subr.bf16.mxu0 0
  %1840 = vmatpush1.bf16.msra.mxu0 0
  %1841 = vmatprep.subr.bf16.mxu0 0
  %1842 = vmatpush1.bf16.msra.mxu0 0
  %1843 = vmatprep.subr.bf16.mxu0 0
  %1844 = vmatpush1.bf16.msra.mxu0 0
  %1845 = vmatprep.subr.bf16.mxu0 0
  %1846 = vmatpush1.bf16.msra.mxu0 0
  %1847 = vmatprep.subr.bf16.mxu0 0
  %1848 = vmatpush1.bf16.msra.mxu0 0
  %1849 = vmatprep.subr.bf16.mxu0 0
  %1850 = vmatpush1.bf16.msra.mxu0 %v1833
  %1851 = vmatprep.subr.bf16.mxu0 0
  %1852 = vmatpush2.bf16.msra.mxu0 0
  %1853 = vmatprep.subr.bf16.mxu0 0
  %1854 = vmatpush2.bf16.msra.mxu0 0
  %1855 = vmatprep.subr.bf16.mxu0 0
  %1856 = vmatpush2.bf16.msra.mxu0 0
  %1857 = vmatprep.subr.bf16.mxu0 0
  %1858 = vmatpush2.bf16.msra.mxu0 0
  %1859 = vmatprep.subr.bf16.mxu0 0
  %1860 = vmatpush2.bf16.msra.mxu0 0
  %1861 = vmatprep.subr.bf16.mxu0 0
  %1862 = vmatpush2.bf16.msra.mxu0 0
  %1863 = vmatprep.subr.bf16.mxu0 0
  %1864 = vmatpush2.bf16.msra.mxu0 0
  %1865 = vmatprep.subr.bf16.mxu0 0
  %1866 = vmatpush2.bf16.msra.mxu0 0
  %1867 = vmatprep.mubr.bf16.mxu0 0
  %1868 = vmatmul.mubr.bf16.gmra.mxu0 %v1830
  %v1869 = vpop.f32.mrf.mxu0
  %v1870 = vadd.f32 0.0, %v1869
  %v1871 = vpop.f32.mrf.mxu0
  %v1872 = vpop.f32.mrf.mxu0
  %v1873 = vpop.f32.mrf.mxu0
  %1874 = vdwg.mxu0
  %1875 = vrot.lane.b32.xlu0 %v404, 48
  %v1876 = vpop.permute.xlu0 %1875
  %v1878 = vsel %vm795, %v1773, 0
  %v1881 = vsel %vm897, %v1876, 0
  %1883 = vmatprep.subr.bf16.mxu0 0
  %1884 = vmatpush1.bf16.msra.mxu0 0
  %1885 = vmatprep.subr.bf16.mxu0 0
  %1886 = vmatpush1.bf16.msra.mxu0 0
  %1887 = vmatprep.subr.bf16.mxu0 0
  %1888 = vmatpush1.bf16.msra.mxu0 0
  %1889 = vmatprep.subr.bf16.mxu0 0
  %1890 = vmatpush1.bf16.msra.mxu0 0
  %1891 = vmatprep.subr.bf16.mxu0 0
  %1892 = vmatpush1.bf16.msra.mxu0 0
  %1893 = vmatprep.subr.bf16.mxu0 0
  %1894 = vmatpush1.bf16.msra.mxu0 0
  %1895 = vmatprep.subr.bf16.mxu0 0
  %1896 = vmatpush1.bf16.msra.mxu0 0
  %1897 = vmatprep.subr.bf16.mxu0 0
  %1898 = vmatpush1.bf16.msra.mxu0 %v1881
  %1899 = vmatprep.subr.bf16.mxu0 0
  %1900 = vmatpush2.bf16.msra.mxu0 0
  %1901 = vmatprep.subr.bf16.mxu0 0
  %1902 = vmatpush2.bf16.msra.mxu0 0
  %1903 = vmatprep.subr.bf16.mxu0 0
  %1904 = vmatpush2.bf16.msra.mxu0 0
  %1905 = vmatprep.subr.bf16.mxu0 0
  %1906 = vmatpush2.bf16.msra.mxu0 0
  %1907 = vmatprep.subr.bf16.mxu0 0
  %1908 = vmatpush2.bf16.msra.mxu0 0
  %1909 = vmatprep.subr.bf16.mxu0 0
  %1910 = vmatpush2.bf16.msra.mxu0 0
  %1911 = vmatprep.subr.bf16.mxu0 0
  %1912 = vmatpush2.bf16.msra.mxu0 0
  %1913 = vmatprep.subr.bf16.mxu0 0
  %1914 = vmatpush2.bf16.msra.mxu0 0
  %1915 = vmatprep.mubr.bf16.mxu0 0
  %1916 = vmatmul.mubr.bf16.gmra.mxu0 %v1878
  %v1917 = vpop.f32.mrf.mxu0
  %v1918 = vadd.f32 0.0, %v1917
  %v1919 = vpop.f32.mrf.mxu0
  %v1920 = vpop.f32.mrf.mxu0
  %v1921 = vpop.f32.mrf.mxu0
  %1922 = vdwg.mxu0
  %1923 = vrot.lane.b32.xlu0 %v405, 48
  %v1924 = vpop.permute.xlu0 %1923
  %v1926 = vsel %vm795, %v1774, 0
  %v1929 = vsel %vm897, %v1924, 0
  %1931 = vmatprep.subr.bf16.mxu0 0
  %1932 = vmatpush1.bf16.msra.mxu0 0
  %1933 = vmatprep.subr.bf16.mxu0 0
  %1934 = vmatpush1.bf16.msra.mxu0 0
  %1935 = vmatprep.subr.bf16.mxu0 0
  %1936 = vmatpush1.bf16.msra.mxu0 0
  %1937 = vmatprep.subr.bf16.mxu0 0
  %1938 = vmatpush1.bf16.msra.mxu0 0
  %1939 = vmatprep.subr.bf16.mxu0 0
  %1940 = vmatpush1.bf16.msra.mxu0 0
  %1941 = vmatprep.subr.bf16.mxu0 0
  %1942 = vmatpush1.bf16.msra.mxu0 0
  %1943 = vmatprep.subr.bf16.mxu0 0
  %1944 = vmatpush1.bf16.msra.mxu0 0
  %1945 = vmatprep.subr.bf16.mxu0 0
  %1946 = vmatpush1.bf16.msra.mxu0 %v1929
  %1947 = vmatprep.subr.bf16.mxu0 0
  %1948 = vmatpush2.bf16.msra.mxu0 0
  %1949 = vmatprep.subr.bf16.mxu0 0
  %1950 = vmatpush2.bf16.msra.mxu0 0
  %1951 = vmatprep.subr.bf16.mxu0 0
  %1952 = vmatpush2.bf16.msra.mxu0 0
  %1953 = vmatprep.subr.bf16.mxu0 0
  %1954 = vmatpush2.bf16.msra.mxu0 0
  %1955 = vmatprep.subr.bf16.mxu0 0
  %1956 = vmatpush2.bf16.msra.mxu0 0
  %1957 = vmatprep.subr.bf16.mxu0 0
  %1958 = vmatpush2.bf16.msra.mxu0 0
  %1959 = vmatprep.subr.bf16.mxu0 0
  %1960 = vmatpush2.bf16.msra.mxu0 0
  %1961 = vmatprep.subr.bf16.mxu0 0
  %1962 = vmatpush2.bf16.msra.mxu0 0
  %1963 = vmatprep.mubr.bf16.mxu0 0
  %1964 = vmatmul.mubr.bf16.gmra.mxu0 %v1926
  %v1965 = vpop.f32.mrf.mxu0
  %v1966 = vadd.f32 0.0, %v1965
  %v1967 = vpop.f32.mrf.mxu0
  %v1968 = vpop.f32.mrf.mxu0
  %v1969 = vpop.f32.mrf.mxu0
  %1970 = vdwg.mxu0
  %1971 = vrot.lane.b32.xlu0 %v406, 48
  %v1972 = vpop.permute.xlu0 %1971
  %v1974 = vsel %vm795, %v1775, 0
  %v1977 = vsel %vm897, %v1972, 0
  %1979 = vmatprep.subr.bf16.mxu0 0
  %1980 = vmatpush1.bf16.msra.mxu0 0
  %1981 = vmatprep.subr.bf16.mxu0 0
  %1982 = vmatpush1.bf16.msra.mxu0 0
  %1983 = vmatprep.subr.bf16.mxu0 0
  %1984 = vmatpush1.bf16.msra.mxu0 0
  %1985 = vmatprep.subr.bf16.mxu0 0
  %1986 = vmatpush1.bf16.msra.mxu0 0
  %1987 = vmatprep.subr.bf16.mxu0 0
  %1988 = vmatpush1.bf16.msra.mxu0 0
  %1989 = vmatprep.subr.bf16.mxu0 0
  %1990 = vmatpush1.bf16.msra.mxu0 0
  %1991 = vmatprep.subr.bf16.mxu0 0
  %1992 = vmatpush1.bf16.msra.mxu0 0
  %1993 = vmatprep.subr.bf16.mxu0 0
  %1994 = vmatpush1.bf16.msra.mxu0 %v1977
  %1995 = vmatprep.subr.bf16.mxu0 0
  %1996 = vmatpush2.bf16.msra.mxu0 0
  %1997 = vmatprep.subr.bf16.mxu0 0
  %1998 = vmatpush2.bf16.msra.mxu0 0
  %1999 = vmatprep.subr.bf16.mxu0 0
  %2000 = vmatpush2.bf16.msra.mxu0 0
  %2001 = vmatprep.subr.bf16.mxu0 0
  %2002 = vmatpush2.bf16.msra.mxu0 0
  %2003 = vmatprep.subr.bf16.mxu0 0
  %2004 = vmatpush2.bf16.msra.mxu0 0
  %2005 = vmatprep.subr.bf16.mxu0 0
  %2006 = vmatpush2.bf16.msra.mxu0 0
  %2007 = vmatprep.subr.bf16.mxu0 0
  %2008 = vmatpush2.bf16.msra.mxu0 0
  %2009 = vmatprep.subr.bf16.mxu0 0
  %2010 = vmatpush2.bf16.msra.mxu0 0
  %2011 = vmatprep.mubr.bf16.mxu0 0
  %2012 = vmatmul.mubr.bf16.gmra.mxu0 %v1974
  %v2013 = vpop.f32.mrf.mxu0
  %v2014 = vadd.f32 0.0, %v2013
  %v2015 = vpop.f32.mrf.mxu0
  %v2016 = vpop.f32.mrf.mxu0
  %v2017 = vpop.f32.mrf.mxu0
  %2018 = vdwg.mxu0
  %2019 = vrot.lane.b32.xlu0 %v407, 48
  %v2020 = vpop.permute.xlu0 %2019
  %v2022 = vsel %vm795, %v1776, 0
  %v2025 = vsel %vm897, %v2020, 0
  %2027 = vmatprep.subr.bf16.mxu0 0
  %2028 = vmatpush1.bf16.msra.mxu0 0
  %2029 = vmatprep.subr.bf16.mxu0 0
  %2030 = vmatpush1.bf16.msra.mxu0 0
  %2031 = vmatprep.subr.bf16.mxu0 0
  %2032 = vmatpush1.bf16.msra.mxu0 0
  %2033 = vmatprep.subr.bf16.mxu0 0
  %2034 = vmatpush1.bf16.msra.mxu0 0
  %2035 = vmatprep.subr.bf16.mxu0 0
  %2036 = vmatpush1.bf16.msra.mxu0 0
  %2037 = vmatprep.subr.bf16.mxu0 0
  %2038 = vmatpush1.bf16.msra.mxu0 0
  %2039 = vmatprep.subr.bf16.mxu0 0
  %2040 = vmatpush1.bf16.msra.mxu0 0
  %2041 = vmatprep.subr.bf16.mxu0 0
  %2042 = vmatpush1.bf16.msra.mxu0 %v2025
  %2043 = vmatprep.subr.bf16.mxu0 0
  %2044 = vmatpush2.bf16.msra.mxu0 0
  %2045 = vmatprep.subr.bf16.mxu0 0
  %2046 = vmatpush2.bf16.msra.mxu0 0
  %2047 = vmatprep.subr.bf16.mxu0 0
  %2048 = vmatpush2.bf16.msra.mxu0 0
  %2049 = vmatprep.subr.bf16.mxu0 0
  %2050 = vmatpush2.bf16.msra.mxu0 0
  %2051 = vmatprep.subr.bf16.mxu0 0
  %2052 = vmatpush2.bf16.msra.mxu0 0
  %2053 = vmatprep.subr.bf16.mxu0 0
  %2054 = vmatpush2.bf16.msra.mxu0 0
  %2055 = vmatprep.subr.bf16.mxu0 0
  %2056 = vmatpush2.bf16.msra.mxu0 0
  %2057 = vmatprep.subr.bf16.mxu0 0
  %2058 = vmatpush2.bf16.msra.mxu0 0
  %2059 = vmatprep.mubr.bf16.mxu0 0
  %2060 = vmatmul.mubr.bf16.gmra.mxu0 %v2022
  %v2061 = vpop.f32.mrf.mxu0
  %v2062 = vadd.f32 0.0, %v2061
  %v2063 = vpop.f32.mrf.mxu0
  %v2064 = vpop.f32.mrf.mxu0
  %v2065 = vpop.f32.mrf.mxu0
  %2066 = vdwg.mxu0
  %2067 = vrot.lane.b32.xlu0 %v408, 48
  %v2068 = vpop.permute.xlu0 %2067
  %v2070 = vsel %vm795, %v1777, 0
  %v2073 = vsel %vm897, %v2068, 0
  %2075 = vmatprep.subr.bf16.mxu0 0
  %2076 = vmatpush1.bf16.msra.mxu0 0
  %2077 = vmatprep.subr.bf16.mxu0 0
  %2078 = vmatpush1.bf16.msra.mxu0 0
  %2079 = vmatprep.subr.bf16.mxu0 0
  %2080 = vmatpush1.bf16.msra.mxu0 0
  %2081 = vmatprep.subr.bf16.mxu0 0
  %2082 = vmatpush1.bf16.msra.mxu0 0
  %2083 = vmatprep.subr.bf16.mxu0 0
  %2084 = vmatpush1.bf16.msra.mxu0 0
  %2085 = vmatprep.subr.bf16.mxu0 0
  %2086 = vmatpush1.bf16.msra.mxu0 0
  %2087 = vmatprep.subr.bf16.mxu0 0
  %2088 = vmatpush1.bf16.msra.mxu0 0
  %2089 = vmatprep.subr.bf16.mxu0 0
  %2090 = vmatpush1.bf16.msra.mxu0 %v2073
  %2091 = vmatprep.subr.bf16.mxu0 0
  %2092 = vmatpush2.bf16.msra.mxu0 0
  %2093 = vmatprep.subr.bf16.mxu0 0
  %2094 = vmatpush2.bf16.msra.mxu0 0
  %2095 = vmatprep.subr.bf16.mxu0 0
  %2096 = vmatpush2.bf16.msra.mxu0 0
  %2097 = vmatprep.subr.bf16.mxu0 0
  %2098 = vmatpush2.bf16.msra.mxu0 0
  %2099 = vmatprep.subr.bf16.mxu0 0
  %2100 = vmatpush2.bf16.msra.mxu0 0
  %2101 = vmatprep.subr.bf16.mxu0 0
  %2102 = vmatpush2.bf16.msra.mxu0 0
  %2103 = vmatprep.subr.bf16.mxu0 0
  %2104 = vmatpush2.bf16.msra.mxu0 0
  %2105 = vmatprep.subr.bf16.mxu0 0
  %2106 = vmatpush2.bf16.msra.mxu0 0
  %2107 = vmatprep.mubr.bf16.mxu0 0
  %2108 = vmatmul.mubr.bf16.gmra.mxu0 %v2070
  %v2109 = vpop.f32.mrf.mxu0
  %v2110 = vadd.f32 0.0, %v2109
  %v2111 = vpop.f32.mrf.mxu0
  %v2112 = vpop.f32.mrf.mxu0
  %v2113 = vpop.f32.mrf.mxu0
  %2114 = vdwg.mxu0
  %2115 = vrot.lane.b32.xlu0 %v409, 48
  %v2116 = vpop.permute.xlu0 %2115
  %v2118 = vsel %vm795, %v1778, 0
  %v2121 = vsel %vm897, %v2116, 0
  %2123 = vmatprep.subr.bf16.mxu0 0
  %2124 = vmatpush1.bf16.msra.mxu0 0
  %2125 = vmatprep.subr.bf16.mxu0 0
  %2126 = vmatpush1.bf16.msra.mxu0 0
  %2127 = vmatprep.subr.bf16.mxu0 0
  %2128 = vmatpush1.bf16.msra.mxu0 0
  %2129 = vmatprep.subr.bf16.mxu0 0
  %2130 = vmatpush1.bf16.msra.mxu0 0
  %2131 = vmatprep.subr.bf16.mxu0 0
  %2132 = vmatpush1.bf16.msra.mxu0 0
  %2133 = vmatprep.subr.bf16.mxu0 0
  %2134 = vmatpush1.bf16.msra.mxu0 0
  %2135 = vmatprep.subr.bf16.mxu0 0
  %2136 = vmatpush1.bf16.msra.mxu0 0
  %2137 = vmatprep.subr.bf16.mxu0 0
  %2138 = vmatpush1.bf16.msra.mxu0 %v2121
  %2139 = vmatprep.subr.bf16.mxu0 0
  %2140 = vmatpush2.bf16.msra.mxu0 0
  %2141 = vmatprep.subr.bf16.mxu0 0
  %2142 = vmatpush2.bf16.msra.mxu0 0
  %2143 = vmatprep.subr.bf16.mxu0 0
  %2144 = vmatpush2.bf16.msra.mxu0 0
  %2145 = vmatprep.subr.bf16.mxu0 0
  %2146 = vmatpush2.bf16.msra.mxu0 0
  %2147 = vmatprep.subr.bf16.mxu0 0
  %2148 = vmatpush2.bf16.msra.mxu0 0
  %2149 = vmatprep.subr.bf16.mxu0 0
  %2150 = vmatpush2.bf16.msra.mxu0 0
  %2151 = vmatprep.subr.bf16.mxu0 0
  %2152 = vmatpush2.bf16.msra.mxu0 0
  %2153 = vmatprep.subr.bf16.mxu0 0
  %2154 = vmatpush2.bf16.msra.mxu0 0
  %2155 = vmatprep.mubr.bf16.mxu0 0
  %2156 = vmatmul.mubr.bf16.gmra.mxu0 %v2118
  %v2157 = vpop.f32.mrf.mxu0
  %v2158 = vadd.f32 0.0, %v2157
  %v2159 = vpop.f32.mrf.mxu0
  %v2160 = vpop.f32.mrf.mxu0
  %v2161 = vpop.f32.mrf.mxu0
  %2162 = vdwg.mxu0
  %v2163 = vpack.c.bf16 %v1870, %v1822
  %v2164 = vpack.c.bf16 %v1966, %v1918
  %v2165 = vpack.c.bf16 %v2062, %v2014
  %v2166 = vpack.c.bf16 %v2158, %v2110
  %v2167 = vld [vmem:[%s6 + $0x8] sm:$0xf]
  %v2168 = vld [vmem:[%s6 + $0xc] sm:$0xf]
  %v2171 = vunpack.c.l.b16 %v2167
  %v2172 = vunpack.c.l.b16 %v2168
  %v2173 = vpack.c.b16 %v2172, %v2171
  %v2176 = vsel %vm412, %v2163, 0
  %v2179 = vsel %vm412, %v2164, 0
  %v2182 = vsel %vm412, %v2165, 0
  %v2185 = vsel %vm412, %v2166, 0
  %2187 = vmatprep.subr.bf16.mxu0 0
  %2188 = vmatpush1.bf16.msra.mxu0 0
  %2189 = vmatprep.subr.bf16.mxu0 0
  %2190 = vmatpush1.bf16.msra.mxu0 0
  %2191 = vmatprep.subr.bf16.mxu0 0
  %2192 = vmatpush1.bf16.msra.mxu0 0
  %2193 = vmatprep.subr.bf16.mxu0 0
  %2194 = vmatpush1.bf16.msra.mxu0 0
  %2195 = vmatprep.subr.bf16.mxu0 0
  %2196 = vmatpush1.bf16.msra.mxu0 0
  %2197 = vmatprep.subr.bf16.mxu0 0
  %2198 = vmatpush1.bf16.msra.mxu0 0
  %2199 = vmatprep.subr.bf16.mxu0 0
  %2200 = vmatpush1.bf16.msra.mxu0 0
  %2201 = vmatprep.subr.bf16.mxu0 0
  %2202 = vmatpush1.bf16.msra.mxu0 %v2173
  %2203 = vmatprep.subr.bf16.mxu0 0
  %2204 = vmatpush2.bf16.msra.mxu0 0
  %2205 = vmatprep.subr.bf16.mxu0 0
  %2206 = vmatpush2.bf16.msra.mxu0 0
  %2207 = vmatprep.subr.bf16.mxu0 0
  %2208 = vmatpush2.bf16.msra.mxu0 0
  %2209 = vmatprep.subr.bf16.mxu0 0
  %2210 = vmatpush2.bf16.msra.mxu0 0
  %2211 = vmatprep.subr.bf16.mxu0 0
  %2212 = vmatpush2.bf16.msra.mxu0 0
  %2213 = vmatprep.subr.bf16.mxu0 0
  %2214 = vmatpush2.bf16.msra.mxu0 0
  %2215 = vmatprep.subr.bf16.mxu0 0
  %2216 = vmatpush2.bf16.msra.mxu0 0
  %2217 = vmatprep.subr.bf16.mxu0 0
  %2218 = vmatpush2.bf16.msra.mxu0 0
  %2219 = vmatprep.mubr.bf16.mxu0 0
  %2220 = vmatmul.mubr.bf16.gmra.mxu0 %v2176
  %v2221 = vpop.f32.mrf.mxu0
  %v2222 = vadd.f32 0.0, %v2221
  %v2223 = vpop.f32.mrf.mxu0
  %v2224 = vpop.f32.mrf.mxu0
  %v2225 = vadd.f32 0.0, %v2224
  %v2226 = vpop.f32.mrf.mxu0
  %2227 = vmatprep.mubr.bf16.mxu0 0
  %2228 = vmatmul.mubr.bf16.gmra.mxu0 %v2179
  %v2229 = vpop.f32.mrf.mxu0
  %v2230 = vadd.f32 0.0, %v2229
  %v2231 = vpop.f32.mrf.mxu0
  %v2232 = vpop.f32.mrf.mxu0
  %v2233 = vadd.f32 0.0, %v2232
  %v2234 = vpop.f32.mrf.mxu0
  %2235 = vmatprep.mubr.bf16.mxu0 0
  %2236 = vmatmul.mubr.bf16.gmra.mxu0 %v2182
  %v2237 = vpop.f32.mrf.mxu0
  %v2238 = vadd.f32 0.0, %v2237
  %v2239 = vpop.f32.mrf.mxu0
  %v2240 = vpop.f32.mrf.mxu0
  %v2241 = vadd.f32 0.0, %v2240
  %v2242 = vpop.f32.mrf.mxu0
  %2243 = vmatprep.mubr.bf16.mxu0 0
  %2244 = vmatmul.mubr.bf16.gmra.mxu0 %v2185
  %v2245 = vpop.f32.mrf.mxu0
  %v2246 = vadd.f32 0.0, %v2245
  %v2247 = vpop.f32.mrf.mxu0
  %v2248 = vpop.f32.mrf.mxu0
  %v2249 = vadd.f32 0.0, %v2248
  %v2250 = vpop.f32.mrf.mxu0
  %2251 = vdwg.mxu0
  %v2254 = vunpack.c.l.b16 %v1281
  %v2255 = vunpack.c.l.b16 %v1282
  %v2256 = vpack.c.b16 %v2255, %v2254
  %v2259 = vsel %vm412, %v1277, 0
  %v2262 = vsel %vm412, %v1278, 0
  %v2265 = vsel %vm412, %v1279, 0
  %v2268 = vsel %vm412, %v1280, 0
  %2270 = vmatprep.subr.bf16.mxu0 0
  %2271 = vmatpush1.bf16.msra.mxu0 0
  %2272 = vmatprep.subr.bf16.mxu0 0
  %2273 = vmatpush1.bf16.msra.mxu0 0
  %2274 = vmatprep.subr.bf16.mxu0 0
  %2275 = vmatpush1.bf16.msra.mxu0 0
  %2276 = vmatprep.subr.bf16.mxu0 0
  %2277 = vmatpush1.bf16.msra.mxu0 0
  %2278 = vmatprep.subr.bf16.mxu0 0
  %2279 = vmatpush1.bf16.msra.mxu0 0
  %2280 = vmatprep.subr.bf16.mxu0 0
  %2281 = vmatpush1.bf16.msra.mxu0 0
  %2282 = vmatprep.subr.bf16.mxu0 0
  %2283 = vmatpush1.bf16.msra.mxu0 0
  %2284 = vmatprep.subr.bf16.mxu0 0
  %2285 = vmatpush1.bf16.msra.mxu0 %v2256
  %2286 = vmatprep.subr.bf16.mxu0 0
  %2287 = vmatpush2.bf16.msra.mxu0 0
  %2288 = vmatprep.subr.bf16.mxu0 0
  %2289 = vmatpush2.bf16.msra.mxu0 0
  %2290 = vmatprep.subr.bf16.mxu0 0
  %2291 = vmatpush2.bf16.msra.mxu0 0
  %2292 = vmatprep.subr.bf16.mxu0 0
  %2293 = vmatpush2.bf16.msra.mxu0 0
  %2294 = vmatprep.subr.bf16.mxu0 0
  %2295 = vmatpush2.bf16.msra.mxu0 0
  %2296 = vmatprep.subr.bf16.mxu0 0
  %2297 = vmatpush2.bf16.msra.mxu0 0
  %2298 = vmatprep.subr.bf16.mxu0 0
  %2299 = vmatpush2.bf16.msra.mxu0 0
  %2300 = vmatprep.subr.bf16.mxu0 0
  %2301 = vmatpush2.bf16.msra.mxu0 0
  %2302 = vmatprep.mubr.bf16.mxu0 0
  %2303 = vmatmul.mubr.bf16.gmra.mxu0 %v2259
  %v2304 = vpop.f32.mrf.mxu0
  %v2305 = vadd.f32 %v2222, %v2304
  %v2306 = vpop.f32.mrf.mxu0
  %v2307 = vpop.f32.mrf.mxu0
  %v2308 = vadd.f32 %v2225, %v2307
  %v2309 = vpop.f32.mrf.mxu0
  %2310 = vmatprep.mubr.bf16.mxu0 0
  %2311 = vmatmul.mubr.bf16.gmra.mxu0 %v2262
  %v2312 = vpop.f32.mrf.mxu0
  %v2313 = vadd.f32 %v2230, %v2312
  %v2314 = vpop.f32.mrf.mxu0
  %v2315 = vpop.f32.mrf.mxu0
  %v2316 = vadd.f32 %v2233, %v2315
  %v2317 = vpop.f32.mrf.mxu0
  %2318 = vmatprep.mubr.bf16.mxu0 0
  %2319 = vmatmul.mubr.bf16.gmra.mxu0 %v2265
  %v2320 = vpop.f32.mrf.mxu0
  %v2321 = vadd.f32 %v2238, %v2320
  %v2322 = vpop.f32.mrf.mxu0
  %v2323 = vpop.f32.mrf.mxu0
  %v2324 = vadd.f32 %v2241, %v2323
  %v2325 = vpop.f32.mrf.mxu0
  %2326 = vmatprep.mubr.bf16.mxu0 0
  %2327 = vmatmul.mubr.bf16.gmra.mxu0 %v2268
  %v2328 = vpop.f32.mrf.mxu0
  %v2329 = vadd.f32 %v2246, %v2328
  %v2330 = vpop.f32.mrf.mxu0
  %v2331 = vpop.f32.mrf.mxu0
  %v2332 = vadd.f32 %v2249, %v2331
  %v2333 = vpop.f32.mrf.mxu0
  %2334 = vdwg.mxu0
  %v2335 = vld [vmem:[%s7] sm:$0x1]
  %v2337 = vlaneseq
  %v2338 = vshrl.u32 %v2337, 7
  %v2339 = vsub.s32 0, %v2338
  %v2340 = vrot.slane %v2335, %v2339
  %v2342 = vadd.f32 %v2305, %v2340
  %v2343 = vadd.f32 %v2308, %v2340
  %v2344 = vadd.f32 %v2313, %v2340
  %v2345 = vadd.f32 %v2316, %v2340
  %v2346 = vadd.f32 %v2321, %v2340
  %v2347 = vadd.f32 %v2324, %v2340
  %v2348 = vadd.f32 %v2329, %v2340
  %v2349 = vadd.f32 %v2332, %v2340
  %v2350 = vadd.f32 %v48, %v2342
  %v2351 = vadd.f32 %v49, %v2343
  %v2352 = vadd.f32 %v50, %v2344
  %v2353 = vadd.f32 %v51, %v2345
  %v2354 = vadd.f32 %v52, %v2346
  %v2355 = vadd.f32 %v53, %v2347
  %v2356 = vadd.f32 %v54, %v2348
  %v2357 = vadd.f32 %v55, %v2349
  %v2358 = vld [vmem:[%s8] sm:$0x1]
  %v2359 = vld [vmem:[%s9] sm:$0x1]
  %2360 = vadd.xlane.f32.xlu0 %v2350
  %v2361 = vpop.xlane.xlu0 %2360
  %2362 = vadd.xlane.f32.xlu0 %v2351
  %v2363 = vpop.xlane.xlu0 %2362
  %2364 = vadd.xlane.f32.xlu0 %v2352
  %v2365 = vpop.xlane.xlu0 %2364
  %2366 = vadd.xlane.f32.xlu0 %v2353
  %v2367 = vpop.xlane.xlu0 %2366
  %2368 = vadd.xlane.f32.xlu0 %v2354
  %v2369 = vpop.xlane.xlu0 %2368
  %2370 = vadd.xlane.f32.xlu0 %v2355
  %v2371 = vpop.xlane.xlu0 %2370
  %2372 = vadd.xlane.f32.xlu0 %v2356
  %v2373 = vpop.xlane.xlu0 %2372
  %2374 = vadd.xlane.f32.xlu0 %v2357
  %v2375 = vpop.xlane.xlu0 %2374
  %v2376 = vmul.f32 %v2361, 0.020833334
  %v2377 = vmul.f32 %v2363, 0.020833334
  %v2378 = vmul.f32 %v2365, 0.020833334
  %v2379 = vmul.f32 %v2367, 0.020833334
  %v2380 = vmul.f32 %v2369, 0.020833334
  %v2381 = vmul.f32 %v2371, 0.020833334
  %v2382 = vmul.f32 %v2373, 0.020833334
  %v2383 = vmul.f32 %v2375, 0.020833334
  %v2384 = vmul.f32 %v2350, %v2350
  %v2385 = vmul.f32 %v2351, %v2351
  %v2386 = vmul.f32 %v2352, %v2352
  %v2387 = vmul.f32 %v2353, %v2353
  %v2388 = vmul.f32 %v2354, %v2354
  %v2389 = vmul.f32 %v2355, %v2355
  %v2390 = vmul.f32 %v2356, %v2356
  %v2391 = vmul.f32 %v2357, %v2357
  %2392 = vadd.xlane.f32.xlu0 %v2384
  %v2393 = vpop.xlane.xlu0 %2392
  %2394 = vadd.xlane.f32.xlu0 %v2385
  %v2395 = vpop.xlane.xlu0 %2394
  %2396 = vadd.xlane.f32.xlu0 %v2386
  %v2397 = vpop.xlane.xlu0 %2396
  %2398 = vadd.xlane.f32.xlu0 %v2387
  %v2399 = vpop.xlane.xlu0 %2398
  %2400 = vadd.xlane.f32.xlu0 %v2388
  %v2401 = vpop.xlane.xlu0 %2400
  %2402 = vadd.xlane.f32.xlu0 %v2389
  %v2403 = vpop.xlane.xlu0 %2402
  %2404 = vadd.xlane.f32.xlu0 %v2390
  %v2405 = vpop.xlane.xlu0 %2404
  %2406 = vadd.xlane.f32.xlu0 %v2391
  %v2407 = vpop.xlane.xlu0 %2406
  %v2408 = vmul.f32 %v2393, 0.020833334
  %v2409 = vmul.f32 %v2395, 0.020833334
  %v2410 = vmul.f32 %v2397, 0.020833334
  %v2411 = vmul.f32 %v2399, 0.020833334
  %v2412 = vmul.f32 %v2401, 0.020833334
  %v2413 = vmul.f32 %v2403, 0.020833334
  %v2414 = vmul.f32 %v2405, 0.020833334
  %v2415 = vmul.f32 %v2407, 0.020833334
  %v2416 = vmul.f32 %v2376, %v2376
  %v2417 = vmul.f32 %v2377, %v2377
  %v2418 = vmul.f32 %v2378, %v2378
  %v2419 = vmul.f32 %v2379, %v2379
  %v2420 = vmul.f32 %v2380, %v2380
  %v2421 = vmul.f32 %v2381, %v2381
  %v2422 = vmul.f32 %v2382, %v2382
  %v2423 = vmul.f32 %v2383, %v2383
  %v2424 = vsub.f32 %v2408, %v2416
  %v2425 = vsub.f32 %v2409, %v2417
  %v2426 = vsub.f32 %v2410, %v2418
  %v2427 = vsub.f32 %v2411, %v2419
  %v2428 = vsub.f32 %v2412, %v2420
  %v2429 = vsub.f32 %v2413, %v2421
  %v2430 = vsub.f32 %v2414, %v2422
  %v2431 = vsub.f32 %v2415, %v2423
  %v2432 = vsub.f32 %v2350, %v2376
  %v2433 = vsub.f32 %v2351, %v2377
  %v2434 = vsub.f32 %v2352, %v2378
  %v2435 = vsub.f32 %v2353, %v2379
  %v2436 = vsub.f32 %v2354, %v2380
  %v2437 = vsub.f32 %v2355, %v2381
  %v2438 = vsub.f32 %v2356, %v2382
  %v2439 = vsub.f32 %v2357, %v2383
  %v2440 = vadd.f32 %v2424, 1e-05
  %v2441 = vadd.f32 %v2425, 1e-05
  %v2442 = vadd.f32 %v2426, 1e-05
  %v2443 = vadd.f32 %v2427, 1e-05
  %v2444 = vadd.f32 %v2428, 1e-05
  %v2445 = vadd.f32 %v2429, 1e-05
  %v2446 = vadd.f32 %v2430, 1e-05
  %v2447 = vadd.f32 %v2431, 1e-05
  %v2448 = vrsqrt.pop %v2440
  %v2449 = vrsqrt.pop %v2441
  %v2450 = vrsqrt.pop %v2442
  %v2451 = vrsqrt.pop %v2443
  %v2452 = vrsqrt.pop %v2444
  %v2453 = vrsqrt.pop %v2445
  %v2454 = vrsqrt.pop %v2446
  %v2455 = vrsqrt.pop %v2447
  %v2456 = vmul.f32 %v2432, %v2448
  %v2457 = vmul.f32 %v2433, %v2449
  %v2458 = vmul.f32 %v2434, %v2450
  %v2459 = vmul.f32 %v2435, %v2451
  %v2460 = vmul.f32 %v2436, %v2452
  %v2461 = vmul.f32 %v2437, %v2453
  %v2462 = vmul.f32 %v2438, %v2454
  %v2463 = vmul.f32 %v2439, %v2455
  %v2465 = vlaneseq
  %v2466 = vshrl.u32 %v2465, 7
  %v2467 = vsub.s32 0, %v2466
  %v2468 = vrot.slane %v2358, %v2467
  %v2470 = vmul.f32 %v2456, %v2468
  %v2471 = vmul.f32 %v2457, %v2468
  %v2472 = vmul.f32 %v2458, %v2468
  %v2473 = vmul.f32 %v2459, %v2468
  %v2474 = vmul.f32 %v2460, %v2468
  %v2475 = vmul.f32 %v2461, %v2468
  %v2476 = vmul.f32 %v2462, %v2468
  %v2477 = vmul.f32 %v2463, %v2468
  %v2479 = vlaneseq
  %v2480 = vshrl.u32 %v2479, 7
  %v2481 = vsub.s32 0, %v2480
  %v2482 = vrot.slane %v2359, %v2481
  %v2484 = vadd.f32 %v2470, %v2482
  %v2485 = vadd.f32 %v2471, %v2482
  %v2486 = vadd.f32 %v2472, %v2482
  %v2487 = vadd.f32 %v2473, %v2482
  %v2488 = vadd.f32 %v2474, %v2482
  %v2489 = vadd.f32 %v2475, %v2482
  %v2490 = vadd.f32 %v2476, %v2482
  %v2491 = vadd.f32 %v2477, %v2482
  %v2492 = vpack.c.bf16 %v2485, %v2484
  %v2493 = vpack.c.bf16 %v2487, %v2486
  %v2494 = vpack.c.bf16 %v2489, %v2488
  %v2495 = vpack.c.bf16 %v2491, %v2490
  %v2496 = vld [vmem:[%s10] sm:$0xf]
  %v2497 = vld [vmem:[%s10 + $0x4] sm:$0xf]
  %v2498 = vld [vmem:[%s10 + $0x8] sm:$0xf]
  %v2499 = vld [vmem:[%s10 + $0xc] sm:$0xf]
  %v2500 = vld [vmem:[%s10 + $0x10] sm:$0xf]
  %v2501 = vld [vmem:[%s10 + $0x14] sm:$0xf]
  %v2502 = vld [vmem:[%s10 + $0x18] sm:$0xf]
  %v2503 = vld [vmem:[%s10 + $0x1c] sm:$0xf]
  %v2504 = vld [vmem:[%s10 + $0x20] sm:$0xf]
  %v2505 = vld [vmem:[%s10 + $0x24] sm:$0xf]
  %v2506 = vld [vmem:[%s10 + $0x28] sm:$0xf]
  %v2507 = vld [vmem:[%s10 + $0x2c] sm:$0xf]
  %v2508 = vld [vmem:[%s10 + $0x30] sm:$0xf]
  %v2509 = vld [vmem:[%s10 + $0x34] sm:$0xf]
  %v2510 = vld [vmem:[%s10 + $0x38] sm:$0xf]
  %v2511 = vld [vmem:[%s10 + $0x3c] sm:$0xf]
  %v2512 = vld [vmem:[%s11] sm:$0x1]
  %v2514 = vlaneseq
  %v2515 = vshrl.u32 %v2514, 7
  %v2516 = vsub.s32 0, %v2515
  %v2517 = vrot.slane %v2512, %v2516
  %v2535 = vunpack.c.l.b16 %v2496
  %v2536 = vunpack.c.l.b16 %v2497
  %v2537 = vunpack.c.l.b16 %v2498
  %v2538 = vunpack.c.l.b16 %v2499
  %v2539 = vunpack.c.l.b16 %v2500
  %v2540 = vunpack.c.l.b16 %v2501
  %v2541 = vunpack.c.l.b16 %v2502
  %v2542 = vunpack.c.l.b16 %v2503
  %v2543 = vunpack.c.l.b16 %v2504
  %v2544 = vunpack.c.l.b16 %v2505
  %v2545 = vunpack.c.l.b16 %v2506
  %v2546 = vunpack.c.l.b16 %v2507
  %v2547 = vunpack.c.l.b16 %v2508
  %v2548 = vunpack.c.l.b16 %v2509
  %v2549 = vunpack.c.l.b16 %v2510
  %v2550 = vunpack.c.l.b16 %v2511
  %v2551 = vpack.c.b16 %v2536, %v2535
  %v2552 = vpack.c.b16 %v2538, %v2537
  %v2553 = vpack.c.b16 %v2540, %v2539
  %v2554 = vpack.c.b16 %v2542, %v2541
  %v2555 = vpack.c.b16 %v2544, %v2543
  %v2556 = vpack.c.b16 %v2546, %v2545
  %v2557 = vpack.c.b16 %v2548, %v2547
  %v2558 = vpack.c.b16 %v2550, %v2549
  %2567 = vmatprep.subr.bf16.mxu0 0
  %2568 = vmatpush1.bf16.msra.mxu0 %v2558
  %2569 = vmatprep.subr.bf16.mxu0 0
  %2570 = vmatpush1.bf16.msra.mxu0 %v2557
  %2571 = vmatprep.subr.bf16.mxu0 0
  %2572 = vmatpush1.bf16.msra.mxu0 %v2556
  %2573 = vmatprep.subr.bf16.mxu0 0
  %2574 = vmatpush1.bf16.msra.mxu0 %v2555
  %2575 = vmatprep.subr.bf16.mxu0 0
  %2576 = vmatpush1.bf16.msra.mxu0 %v2554
  %2577 = vmatprep.subr.bf16.mxu0 0
  %2578 = vmatpush1.bf16.msra.mxu0 %v2553
  %2579 = vmatprep.subr.bf16.mxu0 0
  %2580 = vmatpush1.bf16.msra.mxu0 %v2552
  %2581 = vmatprep.subr.bf16.mxu0 0
  %2582 = vmatpush1.bf16.msra.mxu0 %v2551
  %2583 = vmatprep.subr.bf16.mxu0 0
  %2584 = vmatpush2.bf16.msra.mxu0 0
  %2585 = vmatprep.subr.bf16.mxu0 0
  %2586 = vmatpush2.bf16.msra.mxu0 0
  %2587 = vmatprep.subr.bf16.mxu0 0
  %2588 = vmatpush2.bf16.msra.mxu0 0
  %2589 = vmatprep.subr.bf16.mxu0 0
  %2590 = vmatpush2.bf16.msra.mxu0 0
  %2591 = vmatprep.subr.bf16.mxu0 0
  %2592 = vmatpush2.bf16.msra.mxu0 0
  %2593 = vmatprep.subr.bf16.mxu0 0
  %2594 = vmatpush2.bf16.msra.mxu0 0
  %2595 = vmatprep.subr.bf16.mxu0 0
  %2596 = vmatpush2.bf16.msra.mxu0 0
  %2597 = vmatprep.subr.bf16.mxu0 0
  %2598 = vmatpush2.bf16.msra.mxu0 0
  %2599 = vmatprep.mubr.bf16.mxu0 0
  %2600 = vmatmul.mubr.bf16.gmra.mxu0 %v2492
  %v2601 = vpop.f32.mrf.mxu0
  %v2602 = vadd.f32 %v2517, %v2601
  %v2603 = vpop.f32.mrf.mxu0
  %v2604 = vpop.f32.mrf.mxu0
  %v2605 = vadd.f32 %v2517, %v2604
  %v2606 = vpop.f32.mrf.mxu0
  %2607 = vmatprep.mubr.bf16.mxu0 0
  %2608 = vmatmul.mubr.bf16.gmra.mxu0 %v2493
  %v2609 = vpop.f32.mrf.mxu0
  %v2610 = vadd.f32 %v2517, %v2609
  %v2611 = vpop.f32.mrf.mxu0
  %v2612 = vpop.f32.mrf.mxu0
  %v2613 = vadd.f32 %v2517, %v2612
  %v2614 = vpop.f32.mrf.mxu0
  %2615 = vmatprep.mubr.bf16.mxu0 0
  %2616 = vmatmul.mubr.bf16.gmra.mxu0 %v2494
  %v2617 = vpop.f32.mrf.mxu0
  %v2618 = vadd.f32 %v2517, %v2617
  %v2619 = vpop.f32.mrf.mxu0
  %v2620 = vpop.f32.mrf.mxu0
  %v2621 = vadd.f32 %v2517, %v2620
  %v2622 = vpop.f32.mrf.mxu0
  %2623 = vmatprep.mubr.bf16.mxu0 0
  %2624 = vmatmul.mubr.bf16.gmra.mxu0 %v2495
  %v2625 = vpop.f32.mrf.mxu0
  %v2626 = vadd.f32 %v2517, %v2625
  %v2627 = vpop.f32.mrf.mxu0
  %v2628 = vpop.f32.mrf.mxu0
  %v2629 = vadd.f32 %v2517, %v2628
  %v2630 = vpop.f32.mrf.mxu0
  %2631 = vdwg.mxu0
  %v2632 = vmax.f32 %v2602, 0.0
  %v2633 = vmax.f32 %v2605, 0.0
  %v2634 = vmax.f32 %v2610, 0.0
  %v2635 = vmax.f32 %v2613, 0.0
  %v2636 = vmax.f32 %v2618, 0.0
  %v2637 = vmax.f32 %v2621, 0.0
  %v2638 = vmax.f32 %v2626, 0.0
  %v2639 = vmax.f32 %v2629, 0.0
  %v2640 = vpack.c.bf16 %v2633, %v2632
  %v2641 = vpack.c.bf16 %v2635, %v2634
  %v2642 = vpack.c.bf16 %v2637, %v2636
  %v2643 = vpack.c.bf16 %v2639, %v2638
  %v2644 = vld [vmem:[%s12] sm:$0xf]
  %v2645 = vld [vmem:[%s12 + $0x4] sm:$0xf]
  %v2646 = vld [vmem:[%s12 + $0x8] sm:$0xf]
  %v2647 = vld [vmem:[%s12 + $0xc] sm:$0xf]
  %v2648 = vld [vmem:[%s12 + $0x10] sm:$0xf]
  %v2649 = vld [vmem:[%s12 + $0x14] sm:$0xf]
  %v2650 = vld [vmem:[%s12 + $0x18] sm:$0xf]
  %v2651 = vld [vmem:[%s12 + $0x1c] sm:$0xf]
  %v2652 = vld [vmem:[%s12 + $0x20] sm:$0xf]
  %v2653 = vld [vmem:[%s12 + $0x24] sm:$0xf]
  %v2654 = vld [vmem:[%s12 + $0x28] sm:$0xf]
  %v2655 = vld [vmem:[%s12 + $0x2c] sm:$0xf]
  %v2656 = vld [vmem:[%s12 + $0x30] sm:$0xf]
  %v2657 = vld [vmem:[%s12 + $0x34] sm:$0xf]
  %v2658 = vld [vmem:[%s12 + $0x38] sm:$0xf]
  %v2659 = vld [vmem:[%s12 + $0x3c] sm:$0xf]
  %v2660 = vld [vmem:[%s13] sm:$0x1]
  %v2662 = vlaneseq
  %v2663 = vshrl.u32 %v2662, 7
  %v2664 = vsub.s32 0, %v2663
  %v2665 = vrot.slane %v2660, %v2664
  %v2683 = vunpack.c.l.b16 %v2644
  %v2684 = vunpack.c.l.b16 %v2645
  %v2685 = vunpack.c.l.b16 %v2646
  %v2686 = vunpack.c.l.b16 %v2647
  %v2687 = vunpack.c.l.b16 %v2648
  %v2688 = vunpack.c.l.b16 %v2649
  %v2689 = vunpack.c.l.b16 %v2650
  %v2690 = vunpack.c.l.b16 %v2651
  %v2691 = vunpack.c.l.b16 %v2652
  %v2692 = vunpack.c.l.b16 %v2653
  %v2693 = vunpack.c.l.b16 %v2654
  %v2694 = vunpack.c.l.b16 %v2655
  %v2695 = vunpack.c.l.b16 %v2656
  %v2696 = vunpack.c.l.b16 %v2657
  %v2697 = vunpack.c.l.b16 %v2658
  %v2698 = vunpack.c.l.b16 %v2659
  %v2699 = vpack.c.b16 %v2684, %v2683
  %v2700 = vpack.c.b16 %v2686, %v2685
  %v2701 = vpack.c.b16 %v2688, %v2687
  %v2702 = vpack.c.b16 %v2690, %v2689
  %v2703 = vpack.c.b16 %v2692, %v2691
  %v2704 = vpack.c.b16 %v2694, %v2693
  %v2705 = vpack.c.b16 %v2696, %v2695
  %v2706 = vpack.c.b16 %v2698, %v2697
  %2715 = vmatprep.subr.bf16.mxu0 0
  %2716 = vmatpush1.bf16.msra.mxu0 %v2706
  %2717 = vmatprep.subr.bf16.mxu0 0
  %2718 = vmatpush1.bf16.msra.mxu0 %v2705
  %2719 = vmatprep.subr.bf16.mxu0 0
  %2720 = vmatpush1.bf16.msra.mxu0 %v2704
  %2721 = vmatprep.subr.bf16.mxu0 0
  %2722 = vmatpush1.bf16.msra.mxu0 %v2703
  %2723 = vmatprep.subr.bf16.mxu0 0
  %2724 = vmatpush1.bf16.msra.mxu0 %v2702
  %2725 = vmatprep.subr.bf16.mxu0 0
  %2726 = vmatpush1.bf16.msra.mxu0 %v2701
  %2727 = vmatprep.subr.bf16.mxu0 0
  %2728 = vmatpush1.bf16.msra.mxu0 %v2700
  %2729 = vmatprep.subr.bf16.mxu0 0
  %2730 = vmatpush1.bf16.msra.mxu0 %v2699
  %2731 = vmatprep.subr.bf16.mxu0 0
  %2732 = vmatpush2.bf16.msra.mxu0 0
  %2733 = vmatprep.subr.bf16.mxu0 0
  %2734 = vmatpush2.bf16.msra.mxu0 0
  %2735 = vmatprep.subr.bf16.mxu0 0
  %2736 = vmatpush2.bf16.msra.mxu0 0
  %2737 = vmatprep.subr.bf16.mxu0 0
  %2738 = vmatpush2.bf16.msra.mxu0 0
  %2739 = vmatprep.subr.bf16.mxu0 0
  %2740 = vmatpush2.bf16.msra.mxu0 0
  %2741 = vmatprep.subr.bf16.mxu0 0
  %2742 = vmatpush2.bf16.msra.mxu0 0
  %2743 = vmatprep.subr.bf16.mxu0 0
  %2744 = vmatpush2.bf16.msra.mxu0 0
  %2745 = vmatprep.subr.bf16.mxu0 0
  %2746 = vmatpush2.bf16.msra.mxu0 0
  %2747 = vmatprep.mubr.bf16.mxu0 0
  %2748 = vmatmul.mubr.bf16.gmra.mxu0 %v2640
  %v2749 = vpop.f32.mrf.mxu0
  %v2750 = vadd.f32 %v2665, %v2749
  %v2751 = vpop.f32.mrf.mxu0
  %v2752 = vpop.f32.mrf.mxu0
  %v2753 = vadd.f32 %v2665, %v2752
  %v2754 = vpop.f32.mrf.mxu0
  %2755 = vmatprep.mubr.bf16.mxu0 0
  %2756 = vmatmul.mubr.bf16.gmra.mxu0 %v2641
  %v2757 = vpop.f32.mrf.mxu0
  %v2758 = vadd.f32 %v2665, %v2757
  %v2759 = vpop.f32.mrf.mxu0
  %v2760 = vpop.f32.mrf.mxu0
  %v2761 = vadd.f32 %v2665, %v2760
  %v2762 = vpop.f32.mrf.mxu0
  %2763 = vmatprep.mubr.bf16.mxu0 0
  %2764 = vmatmul.mubr.bf16.gmra.mxu0 %v2642
  %v2765 = vpop.f32.mrf.mxu0
  %v2766 = vadd.f32 %v2665, %v2765
  %v2767 = vpop.f32.mrf.mxu0
  %v2768 = vpop.f32.mrf.mxu0
  %v2769 = vadd.f32 %v2665, %v2768
  %v2770 = vpop.f32.mrf.mxu0
  %2771 = vmatprep.mubr.bf16.mxu0 0
  %2772 = vmatmul.mubr.bf16.gmra.mxu0 %v2643
  %v2773 = vpop.f32.mrf.mxu0
  %v2774 = vadd.f32 %v2665, %v2773
  %v2775 = vpop.f32.mrf.mxu0
  %v2776 = vpop.f32.mrf.mxu0
  %v2777 = vadd.f32 %v2665, %v2776
  %v2778 = vpop.f32.mrf.mxu0
  %2779 = vdwg.mxu0
  %v2780 = vadd.f32 %v2350, %v2750
  %v2781 = vadd.f32 %v2351, %v2753
  %v2782 = vadd.f32 %v2352, %v2758
  %v2783 = vadd.f32 %v2353, %v2761
  %v2784 = vadd.f32 %v2354, %v2766
  %v2785 = vadd.f32 %v2355, %v2769
  %v2786 = vadd.f32 %v2356, %v2774
  %v2787 = vadd.f32 %v2357, %v2777
  %v2788 = vadd.f32 %v48, %v2780
  %v2789 = vadd.f32 %v49, %v2781
  %v2790 = vadd.f32 %v50, %v2782
  %v2791 = vadd.f32 %v51, %v2783
  %v2792 = vadd.f32 %v52, %v2784
  %v2793 = vadd.f32 %v53, %v2785
  %v2794 = vadd.f32 %v54, %v2786
  %v2795 = vadd.f32 %v55, %v2787
  %2796 = vst [vmem:[%s14] sm:$0xff] %v2788
  %2797 = vst [vmem:[%s14 + $0x8] sm:$0xff] %v2789
  %2798 = vst [vmem:[%s14 + $0x10] sm:$0xff] %v2790
  %2799 = vst [vmem:[%s14 + $0x18] sm:$0xff] %v2791
  %2800 = vst [vmem:[%s14 + $0x20] sm:$0xff] %v2792
  %2801 = vst [vmem:[%s14 + $0x28] sm:$0xff] %v2793
  %2802 = vst [vmem:[%s14 + $0x30] sm:$0xff] %v2794
  %2803 = vst [vmem:[%s14 + $0x38] sm:$0xff] %v2795
  // Predicated region
  $region58: #{cross_attention_forward.1} parent=0 // pred_check
    _
  $region59: #{cross_attention_forward.1} parent=0 // pred_check_branch
    %2805 = sbr.rel (0) target = $region61
  $region60: #{cross_attention_forward.1} parent=0 // pred_region
    _
  $region61: #{cross_attention_forward.1} parent=0 // pred_fallthru
    _
  // Predicated region
  $region62: #{cross_attention_forward.1} parent=0 // pred_check
    _
  $region63: #{cross_attention_forward.1} parent=0 // pred_check_branch
    %2807 = sbr.rel (0) target = $region65
  $region64: #{cross_attention_forward.1} parent=0 // pred_region
    _
  $region65: #{cross_attention_forward.1} parent=0 // pred_fallthru
    _

</llo_original>
